<compile_context>
chip_gen: v5e
topology: v5e:2x2
jax: 0.10.0
libtpu: 0.0.40
codegen_flags: <defaults>
</compile_context>

<pallas_src>
import functools

import jax
import jax.numpy as jnp
from jax.experimental import pallas as pl
from jax.experimental.pallas import tpu as pltpu

# Hyperparameters of the CVAE module (N categorical variables, K categories).
N = 8
K = 10
NK = N * K
TAU = 1.0

TB_MAX = 512  # batch tile; fits comfortably in v7x's 64 MiB VMEM with bf16 weights

_LAYER_DIMS = [(784, 512), (512, 256), (256, NK),
               (NK, 256), (256, 512), (512, 784)]


# --------------------------------------------------------------------------
# Grouped softmax: softmax over each contiguous group of K columns of a
# lane-dense (TB, N*K) tile.  Uses only full-width masked reductions
# (no lane-slicing / concatenation), which lower robustly on Mosaic.
# --------------------------------------------------------------------------
def _group_masks(shape):
    col = jax.lax.broadcasted_iota(jnp.int32, shape, 1)
    return [((col >= n * K) & (col < (n + 1) * K)) for n in range(N)]


def _grouped_softmax(v, masks):
    neg = jnp.float32(-1e30)
    m = jnp.full_like(v, neg)
    for msk in masks:
        gmax = jnp.max(jnp.where(msk, v, neg), axis=-1, keepdims=True)
        m = jnp.where(msk, gmax, m)
    e = jnp.exp(v - m)                       # per-group max subtracted -> e in (0, 1]
    s = jnp.zeros_like(v)
    for msk in masks:
        gsum = jnp.sum(jnp.where(msk, e, 0.0), axis=-1, keepdims=True)
        s = jnp.where(msk, gsum, s)
    return e / s


# --------------------------------------------------------------------------
# Fused kernel: encoder -> gumbel softmax -> decoder on one batch tile.
# --------------------------------------------------------------------------
def _cvae_kernel(tau,
                 x_ref, w1_ref, b1_ref, w2_ref, b2_ref, w3_ref, b3_ref,
                 w4_ref, b4_ref, w5_ref, b5_ref, w6_ref, b6_ref, g_ref,
                 qy_ref, px_ref, lx_ref):
    f32 = jnp.float32
    bf16 = jnp.bfloat16

    # ---- encoder: fc1+ReLU -> fc2+ReLU -> fc3 -----------------------------
    h1 = jnp.dot(x_ref[...], w1_ref[...], preferred_element_type=f32) + b1_ref[...]
    h1 = jnp.maximum(h1, 0.0).astype(bf16)
    h2 = jnp.dot(h1, w2_ref[...], preferred_element_type=f32) + b2_ref[...]
    h2 = jnp.maximum(h2, 0.0).astype(bf16)
    logits_y = jnp.dot(h2, w3_ref[...], preferred_element_type=f32) + b3_ref[...]  # (TB, N*K) f32

    # ---- gumbel softmax (per-group over K, lane-dense (TB, N*K) layout) ----
    masks = _group_masks(logits_y.shape)             # built once, shared below
    qy_ref[...] = _grouped_softmax(logits_y, masks)  # q_y
    z = (logits_y + g_ref[...]) * (1.0 / tau)
    y = _grouped_softmax(z, masks).astype(bf16)      # relaxed categorical sample

    # ---- decoder: fc4+ReLU -> fc5+ReLU -> fc6, sigmoid ---------------------
    h3 = jnp.dot(y, w4_ref[...], preferred_element_type=f32) + b4_ref[...]
    h3 = jnp.maximum(h3, 0.0).astype(bf16)
    h4 = jnp.dot(h3, w5_ref[...], preferred_element_type=f32) + b5_ref[...]
    h4 = jnp.maximum(h4, 0.0).astype(bf16)
    lx = jnp.dot(h4, w6_ref[...], preferred_element_type=f32) + b6_ref[...]
    lx_ref[...] = lx
    px_ref[...] = jax.nn.sigmoid(lx)


# --------------------------------------------------------------------------
# Wrapper: flatten/view glue, bf16 casts, BlockSpec plumbing.
# --------------------------------------------------------------------------
def cvae_forward(x, params, gumbel_noise, tau=TAU):
    """Returns (p_x, q_y, logits_x) matching CVAE.forward."""
    # Weights must be stored as (in_features, out_features) — i.e. the
    # transpose of a PyTorch nn.Linear state_dict entry.
    assert params["w1"].shape == (784, 512), "weights must be (in, out)"

    x2 = x.reshape(-1, 784).astype(jnp.bfloat16)          # .view(-1, 784)
    B = x2.shape[0]
    TB = min(TB_MAX, B)                                   # TB == B or TB % 8 == 0
    grid = (pl.cdiv(B, TB),)

    # bf16 weights (halves DMA bytes, MXU-native); f32 biases.
    w = {k: v.astype(jnp.bfloat16) for k, v in params.items() if k.startswith("w")}
    b = {k: v.astype(jnp.float32) for k, v in params.items() if k.startswith("b")}

    # Single (K,) gumbel draw broadcast to all rows & all N groups — same
    # semantics as torch.rand(logits.size(-1)) in the reference module,
    # tiled once to the lane-dense (1, N*K) layout.
    g80 = jnp.tile(gumbel_noise.reshape(1, K).astype(jnp.float32), (1, N))

    def full_spec(shape):
        return pl.BlockSpec(shape, lambda i: (0, 0))      # resident across grid steps

    def row_spec(d):
        return pl.BlockSpec((TB, d), lambda i: (i, 0))    # streamed batch tiles

    in_specs = [row_spec(784)]
    for li in range(1, 7):
        in_specs.append(full_spec(w[f"w{li}"].shape))
        in_specs.append(full_spec(b[f"b{li}"].shape))
    in_specs.append(full_spec((1, NK)))

    out_shape = (jax.ShapeDtypeStruct((B, NK), jnp.float32),      # q_y (lane-dense)
                 jax.ShapeDtypeStruct((B, 784), jnp.float32),     # p_x
                 jax.ShapeDtypeStruct((B, 784), jnp.float32))     # logits_x
    out_specs = (row_spec(NK), row_spec(784), row_spec(784))

    # Advisory scheduling hint: 6 GEMMs + exp/sigmoid transcendentals.
    flops = 2 * B * sum(din * dout for din, dout in _LAYER_DIMS)
    transcendentals = B * (2 * NK + 784)
    bytes_accessed = (x2.size * 2
                      + sum(v.size * 2 for v in w.values())
                      + sum(v.size * 4 for v in b.values())
                      + B * (NK + 784 + 784) * 4)
    cost = pl.CostEstimate(flops=int(flops),
                           transcendentals=int(transcendentals),
                           bytes_accessed=int(bytes_accessed))

    q_y80, p_x, logits_x = pl.pallas_call(
        functools.partial(_cvae_kernel, float(tau)),
        grid=grid,
        in_specs=in_specs,
        out_specs=out_specs,
        out_shape=out_shape,
        compiler_params=pltpu.CompilerParams(
            dimension_semantics=("parallel",),            # shard batch tiles on v7x's 2 TCs
            vmem_limit_bytes=48 * 1024 * 1024),           # > v5e's 16 MiB default, < v7x's 64 MiB
        cost_estimate=cost,
    )(x2, w["w1"], b["b1"], w["w2"], b["b2"], w["w3"], b["b3"],
      w["w4"], b["b4"], w["w5"], b["b5"], w["w6"], b["b6"], g80)

    q_y = q_y80.reshape(-1, K)                            # free metadata .view(-1, K)
    return p_x, q_y, logits_x


# --------------------------------------------------------------------------
# Deterministic parameter init (mimics nn.Linear's U(-1/sqrt(in), 1/sqrt(in))).
# Weights stored pre-transposed as (in_features, out_features).
# --------------------------------------------------------------------------
def init_params(key):
    params = {}
    for i, (din, dout) in enumerate(_LAYER_DIMS, start=1):
        key, kw, kb = jax.random.split(key, 3)
        bound = 1.0 / jnp.sqrt(jnp.float32(din))
        params[f"w{i}"] = jax.random.uniform(
            kw, (din, dout), jnp.float32, minval=-bound, maxval=bound)
        params[f"b{i}"] = jax.random.uniform(
            kb, (1, dout), jnp.float32, minval=-bound, maxval=bound)
    return params


if __name__ == "__main__":
    key = jax.random.PRNGKey(0)
    k_param, k_x, k_gumbel = jax.random.split(key, 3)

    params = init_params(k_param)

    # Small deterministic input, NCHW like the PyTorch module expects.
    B = 2
    x = jax.random.uniform(k_x, (B, 1, 28, 28), jnp.float32)

    # Gumbel noise of shape (1, K) — one draw per category, shared across rows
    # (matches torch.rand(logits.size()[-1]) in _sample_gumbel).
    # TODO(synk): torch.rand-based gumbel sampling is done host-side for
    # determinism and passed in, rather than generated inside the kernel.
    eps = 1e-20
    U = jax.random.uniform(k_gumbel, (1, K), jnp.float32)
    gumbel_noise = -jnp.log(-jnp.log(U + eps) + eps)

    p_x, q_y, logits_x = cvae_forward(x, params, gumbel_noise, TAU)
    jax.block_until_ready((p_x, q_y, logits_x))

    assert p_x.shape == (B, 784)
    assert logits_x.shape == (B, 784)
    assert q_y.shape == (B * N, K)
    # sanity: q_y rows are softmax distributions, p_x in [0, 1]
    assert bool(jnp.allclose(q_y.sum(axis=-1), 1.0, atol=1e-3))
    assert bool(jnp.all((p_x >= 0.0) & (p_x <= 1.0)))

    print("KERNEL_OK")
</pallas_src>

<mosaic_0001>
module attributes {stable_mosaic.version = 11 : i64} {
  func.func @_cvae_kernel(%arg0: i32, %arg1: memref<2x784xbf16, #tpu.memory_space<vmem>>, %arg2: memref<784x512xbf16, #tpu.memory_space<vmem>>, %arg3: memref<1x512xf32, #tpu.memory_space<vmem>>, %arg4: memref<512x256xbf16, #tpu.memory_space<vmem>>, %arg5: memref<1x256xf32, #tpu.memory_space<vmem>>, %arg6: memref<256x80xbf16, #tpu.memory_space<vmem>>, %arg7: memref<1x80xf32, #tpu.memory_space<vmem>>, %arg8: memref<80x256xbf16, #tpu.memory_space<vmem>>, %arg9: memref<1x256xf32, #tpu.memory_space<vmem>>, %arg10: memref<256x512xbf16, #tpu.memory_space<vmem>>, %arg11: memref<1x512xf32, #tpu.memory_space<vmem>>, %arg12: memref<512x784xbf16, #tpu.memory_space<vmem>>, %arg13: memref<1x784xf32, #tpu.memory_space<vmem>>, %arg14: memref<1x80xf32, #tpu.memory_space<vmem>>, %arg15: memref<2x80xf32, #tpu.memory_space<vmem>>, %arg16: memref<2x784xf32, #tpu.memory_space<vmem>>, %arg17: memref<2x784xf32, #tpu.memory_space<vmem>>) attributes {dimension_semantics = [#tpu.dimension_semantics<parallel>], iteration_bounds = array<i64: 1>, scalar_prefetch = 0 : i64, scratch_operands = 0 : i64, tpu.core_type = #tpu.core_type<tc>, window_params = [{transform_indices = @transform_0, window_bounds = array<i64: 2, 784>}, {pipeline_mode = #tpu.pipeline_mode<synchronous>, transform_indices = @transform_1, window_bounds = array<i64: 784, 512>}, {pipeline_mode = #tpu.pipeline_mode<synchronous>, transform_indices = @transform_2, window_bounds = array<i64: 1, 512>}, {pipeline_mode = #tpu.pipeline_mode<synchronous>, transform_indices = @transform_3, window_bounds = array<i64: 512, 256>}, {pipeline_mode = #tpu.pipeline_mode<synchronous>, transform_indices = @transform_4, window_bounds = array<i64: 1, 256>}, {pipeline_mode = #tpu.pipeline_mode<synchronous>, transform_indices = @transform_5, window_bounds = array<i64: 256, 80>}, {pipeline_mode = #tpu.pipeline_mode<synchronous>, transform_indices = @transform_6, window_bounds = array<i64: 1, 80>}, {pipeline_mode = #tpu.pipeline_mode<synchronous>, transform_indices = @transform_7, window_bounds = array<i64: 80, 256>}, {pipeline_mode = #tpu.pipeline_mode<synchronous>, transform_indices = @transform_8, window_bounds = array<i64: 1, 256>}, {pipeline_mode = #tpu.pipeline_mode<synchronous>, transform_indices = @transform_9, window_bounds = array<i64: 256, 512>}, {pipeline_mode = #tpu.pipeline_mode<synchronous>, transform_indices = @transform_10, window_bounds = array<i64: 1, 512>}, {pipeline_mode = #tpu.pipeline_mode<synchronous>, transform_indices = @transform_11, window_bounds = array<i64: 512, 784>}, {pipeline_mode = #tpu.pipeline_mode<synchronous>, transform_indices = @transform_12, window_bounds = array<i64: 1, 784>}, {pipeline_mode = #tpu.pipeline_mode<synchronous>, transform_indices = @transform_13, window_bounds = array<i64: 1, 80>}, {transform_indices = @transform_14, window_bounds = array<i64: 2, 80>}, {transform_indices = @transform_15, window_bounds = array<i64: 2, 784>}, {transform_indices = @transform_16, window_bounds = array<i64: 2, 784>}]} {
    %c0 = arith.constant 0 : index
    %c0_0 = arith.constant 0 : index
    %0 = vector.load %arg1[%c0, %c0_0] : memref<2x784xbf16, #tpu.memory_space<vmem>>, vector<2x784xbf16>
    %c0_1 = arith.constant 0 : index
    %c0_2 = arith.constant 0 : index
    %1 = vector.load %arg2[%c0_1, %c0_2] : memref<784x512xbf16, #tpu.memory_space<vmem>>, vector<784x512xbf16>
    %cst = arith.constant dense<0.000000e+00> : vector<2x512xf32>
    %2 = tpu.matmul %0, %1, %cst {dimension_numbers = #tpu.dot_dimension_numbers<[1], [0], [0], [1], [0, 0, 1, 1], [], []>} : vector<2x784xbf16>, vector<784x512xbf16>, vector<2x512xf32> -> vector<2x512xf32>
    %c0_3 = arith.constant 0 : index
    %c0_4 = arith.constant 0 : index
    %3 = vector.load %arg3[%c0_3, %c0_4] : memref<1x512xf32, #tpu.memory_space<vmem>>, vector<1x512xf32>
    %4 = vector.broadcast %3 : vector<1x512xf32> to vector<2x512xf32>
    %5 = arith.addf %2, %4 : vector<2x512xf32>
    %cst_5 = arith.constant 0.000000e+00 : f32
    %6 = vector.broadcast %cst_5 : f32 to vector<2x512xf32>
    %7 = arith.maximumf %5, %6 : vector<2x512xf32>
    %8 = arith.truncf %7 : vector<2x512xf32> to vector<2x512xbf16>
    %c0_6 = arith.constant 0 : index
    %c0_7 = arith.constant 0 : index
    %9 = vector.load %arg4[%c0_6, %c0_7] : memref<512x256xbf16, #tpu.memory_space<vmem>>, vector<512x256xbf16>
    %cst_8 = arith.constant dense<0.000000e+00> : vector<2x256xf32>
    %10 = tpu.matmul %8, %9, %cst_8 {dimension_numbers = #tpu.dot_dimension_numbers<[1], [0], [0], [1], [0, 0, 1, 1], [], []>} : vector<2x512xbf16>, vector<512x256xbf16>, vector<2x256xf32> -> vector<2x256xf32>
    %c0_9 = arith.constant 0 : index
    %c0_10 = arith.constant 0 : index
    %11 = vector.load %arg5[%c0_9, %c0_10] : memref<1x256xf32, #tpu.memory_space<vmem>>, vector<1x256xf32>
    %12 = vector.broadcast %11 : vector<1x256xf32> to vector<2x256xf32>
    %13 = arith.addf %10, %12 : vector<2x256xf32>
    %cst_11 = arith.constant 0.000000e+00 : f32
    %14 = vector.broadcast %cst_11 : f32 to vector<2x256xf32>
    %15 = arith.maximumf %13, %14 : vector<2x256xf32>
    %16 = arith.truncf %15 : vector<2x256xf32> to vector<2x256xbf16>
    %c0_12 = arith.constant 0 : index
    %c0_13 = arith.constant 0 : index
    %17 = vector.load %arg6[%c0_12, %c0_13] : memref<256x80xbf16, #tpu.memory_space<vmem>>, vector<256x80xbf16>
    %cst_14 = arith.constant dense<0.000000e+00> : vector<2x80xf32>
    %18 = tpu.matmul %16, %17, %cst_14 {dimension_numbers = #tpu.dot_dimension_numbers<[1], [0], [0], [1], [0, 0, 1, 1], [], []>} : vector<2x256xbf16>, vector<256x80xbf16>, vector<2x80xf32> -> vector<2x80xf32>
    %c0_15 = arith.constant 0 : index
    %c0_16 = arith.constant 0 : index
    %19 = vector.load %arg7[%c0_15, %c0_16] : memref<1x80xf32, #tpu.memory_space<vmem>>, vector<1x80xf32>
    %20 = vector.broadcast %19 : vector<1x80xf32> to vector<2x80xf32>
    %21 = arith.addf %18, %20 : vector<2x80xf32>
    %22 = tpu.iota {dimensions = array<i32: 1>} : vector<2x80xi32>
    %c0_i32 = arith.constant 0 : i32
    %23 = vector.broadcast %c0_i32 : i32 to vector<2x80xi32>
    %24 = arith.cmpi sge, %22, %23 : vector<2x80xi32>
    %c10_i32 = arith.constant 10 : i32
    %25 = vector.broadcast %c10_i32 : i32 to vector<2x80xi32>
    %26 = arith.cmpi slt, %22, %25 : vector<2x80xi32>
    %27 = arith.andi %24, %26 : vector<2x80xi1>
    %c10_i32_17 = arith.constant 10 : i32
    %28 = vector.broadcast %c10_i32_17 : i32 to vector<2x80xi32>
    %29 = arith.cmpi sge, %22, %28 : vector<2x80xi32>
    %c20_i32 = arith.constant 20 : i32
    %30 = vector.broadcast %c20_i32 : i32 to vector<2x80xi32>
    %31 = arith.cmpi slt, %22, %30 : vector<2x80xi32>
    %32 = arith.andi %29, %31 : vector<2x80xi1>
    %c20_i32_18 = arith.constant 20 : i32
    %33 = vector.broadcast %c20_i32_18 : i32 to vector<2x80xi32>
    %34 = arith.cmpi sge, %22, %33 : vector<2x80xi32>
    %c30_i32 = arith.constant 30 : i32
    %35 = vector.broadcast %c30_i32 : i32 to vector<2x80xi32>
    %36 = arith.cmpi slt, %22, %35 : vector<2x80xi32>
    %37 = arith.andi %34, %36 : vector<2x80xi1>
    %c30_i32_19 = arith.constant 30 : i32
    %38 = vector.broadcast %c30_i32_19 : i32 to vector<2x80xi32>
    %39 = arith.cmpi sge, %22, %38 : vector<2x80xi32>
    %c40_i32 = arith.constant 40 : i32
    %40 = vector.broadcast %c40_i32 : i32 to vector<2x80xi32>
    %41 = arith.cmpi slt, %22, %40 : vector<2x80xi32>
    %42 = arith.andi %39, %41 : vector<2x80xi1>
    %c40_i32_20 = arith.constant 40 : i32
    %43 = vector.broadcast %c40_i32_20 : i32 to vector<2x80xi32>
    %44 = arith.cmpi sge, %22, %43 : vector<2x80xi32>
    %c50_i32 = arith.constant 50 : i32
    %45 = vector.broadcast %c50_i32 : i32 to vector<2x80xi32>
    %46 = arith.cmpi slt, %22, %45 : vector<2x80xi32>
    %47 = arith.andi %44, %46 : vector<2x80xi1>
    %c50_i32_21 = arith.constant 50 : i32
    %48 = vector.broadcast %c50_i32_21 : i32 to vector<2x80xi32>
    %49 = arith.cmpi sge, %22, %48 : vector<2x80xi32>
    %c60_i32 = arith.constant 60 : i32
    %50 = vector.broadcast %c60_i32 : i32 to vector<2x80xi32>
    %51 = arith.cmpi slt, %22, %50 : vector<2x80xi32>
    %52 = arith.andi %49, %51 : vector<2x80xi1>
    %c60_i32_22 = arith.constant 60 : i32
    %53 = vector.broadcast %c60_i32_22 : i32 to vector<2x80xi32>
    %54 = arith.cmpi sge, %22, %53 : vector<2x80xi32>
    %c70_i32 = arith.constant 70 : i32
    %55 = vector.broadcast %c70_i32 : i32 to vector<2x80xi32>
    %56 = arith.cmpi slt, %22, %55 : vector<2x80xi32>
    %57 = arith.andi %54, %56 : vector<2x80xi1>
    %c70_i32_23 = arith.constant 70 : i32
    %58 = vector.broadcast %c70_i32_23 : i32 to vector<2x80xi32>
    %59 = arith.cmpi sge, %22, %58 : vector<2x80xi32>
    %c80_i32 = arith.constant 80 : i32
    %60 = vector.broadcast %c80_i32 : i32 to vector<2x80xi32>
    %61 = arith.cmpi slt, %22, %60 : vector<2x80xi32>
    %62 = arith.andi %59, %61 : vector<2x80xi1>
    %cst_24 = arith.constant -1.000000e+30 : f32
    %63 = vector.broadcast %cst_24 : f32 to vector<2x80xf32>
    %cst_25 = arith.constant -1.000000e+30 : f32
    %64 = vector.broadcast %cst_25 : f32 to vector<2x80xf32>
    %65 = arith.select %27, %21, %64 : vector<2x80xi1>, vector<2x80xf32>
    %cst_26 = arith.constant dense<0xFF800000> : vector<2xf32>
    %66 = vector.multi_reduction <maximumf>, %65, %cst_26 [1] : vector<2x80xf32> to vector<2xf32>
    %67 = vector.shape_cast %66 : vector<2xf32> to vector<2x1xf32>
    %68 = vector.shape_cast %67 : vector<2x1xf32> to vector<2x1xf32>
    %69 = vector.broadcast %68 : vector<2x1xf32> to vector<2x80xf32>
    %70 = arith.select %27, %69, %63 : vector<2x80xi1>, vector<2x80xf32>
    %cst_27 = arith.constant -1.000000e+30 : f32
    %71 = vector.broadcast %cst_27 : f32 to vector<2x80xf32>
    %72 = arith.select %32, %21, %71 : vector<2x80xi1>, vector<2x80xf32>
    %cst_28 = arith.constant dense<0xFF800000> : vector<2xf32>
    %73 = vector.multi_reduction <maximumf>, %72, %cst_28 [1] : vector<2x80xf32> to vector<2xf32>
    %74 = vector.shape_cast %73 : vector<2xf32> to vector<2x1xf32>
    %75 = vector.shape_cast %74 : vector<2x1xf32> to vector<2x1xf32>
    %76 = vector.broadcast %75 : vector<2x1xf32> to vector<2x80xf32>
    %77 = arith.select %32, %76, %70 : vector<2x80xi1>, vector<2x80xf32>
    %cst_29 = arith.constant -1.000000e+30 : f32
    %78 = vector.broadcast %cst_29 : f32 to vector<2x80xf32>
    %79 = arith.select %37, %21, %78 : vector<2x80xi1>, vector<2x80xf32>
    %cst_30 = arith.constant dense<0xFF800000> : vector<2xf32>
    %80 = vector.multi_reduction <maximumf>, %79, %cst_30 [1] : vector<2x80xf32> to vector<2xf32>
    %81 = vector.shape_cast %80 : vector<2xf32> to vector<2x1xf32>
    %82 = vector.shape_cast %81 : vector<2x1xf32> to vector<2x1xf32>
    %83 = vector.broadcast %82 : vector<2x1xf32> to vector<2x80xf32>
    %84 = arith.select %37, %83, %77 : vector<2x80xi1>, vector<2x80xf32>
    %cst_31 = arith.constant -1.000000e+30 : f32
    %85 = vector.broadcast %cst_31 : f32 to vector<2x80xf32>
    %86 = arith.select %42, %21, %85 : vector<2x80xi1>, vector<2x80xf32>
    %cst_32 = arith.constant dense<0xFF800000> : vector<2xf32>
    %87 = vector.multi_reduction <maximumf>, %86, %cst_32 [1] : vector<2x80xf32> to vector<2xf32>
    %88 = vector.shape_cast %87 : vector<2xf32> to vector<2x1xf32>
    %89 = vector.shape_cast %88 : vector<2x1xf32> to vector<2x1xf32>
    %90 = vector.broadcast %89 : vector<2x1xf32> to vector<2x80xf32>
    %91 = arith.select %42, %90, %84 : vector<2x80xi1>, vector<2x80xf32>
    %cst_33 = arith.constant -1.000000e+30 : f32
    %92 = vector.broadcast %cst_33 : f32 to vector<2x80xf32>
    %93 = arith.select %47, %21, %92 : vector<2x80xi1>, vector<2x80xf32>
    %cst_34 = arith.constant dense<0xFF800000> : vector<2xf32>
    %94 = vector.multi_reduction <maximumf>, %93, %cst_34 [1] : vector<2x80xf32> to vector<2xf32>
    %95 = vector.shape_cast %94 : vector<2xf32> to vector<2x1xf32>
    %96 = vector.shape_cast %95 : vector<2x1xf32> to vector<2x1xf32>
    %97 = vector.broadcast %96 : vector<2x1xf32> to vector<2x80xf32>
    %98 = arith.select %47, %97, %91 : vector<2x80xi1>, vector<2x80xf32>
    %cst_35 = arith.constant -1.000000e+30 : f32
    %99 = vector.broadcast %cst_35 : f32 to vector<2x80xf32>
    %100 = arith.select %52, %21, %99 : vector<2x80xi1>, vector<2x80xf32>
    %cst_36 = arith.constant dense<0xFF800000> : vector<2xf32>
    %101 = vector.multi_reduction <maximumf>, %100, %cst_36 [1] : vector<2x80xf32> to vector<2xf32>
    %102 = vector.shape_cast %101 : vector<2xf32> to vector<2x1xf32>
    %103 = vector.shape_cast %102 : vector<2x1xf32> to vector<2x1xf32>
    %104 = vector.broadcast %103 : vector<2x1xf32> to vector<2x80xf32>
    %105 = arith.select %52, %104, %98 : vector<2x80xi1>, vector<2x80xf32>
    %cst_37 = arith.constant -1.000000e+30 : f32
    %106 = vector.broadcast %cst_37 : f32 to vector<2x80xf32>
    %107 = arith.select %57, %21, %106 : vector<2x80xi1>, vector<2x80xf32>
    %cst_38 = arith.constant dense<0xFF800000> : vector<2xf32>
    %108 = vector.multi_reduction <maximumf>, %107, %cst_38 [1] : vector<2x80xf32> to vector<2xf32>
    %109 = vector.shape_cast %108 : vector<2xf32> to vector<2x1xf32>
    %110 = vector.shape_cast %109 : vector<2x1xf32> to vector<2x1xf32>
    %111 = vector.broadcast %110 : vector<2x1xf32> to vector<2x80xf32>
    %112 = arith.select %57, %111, %105 : vector<2x80xi1>, vector<2x80xf32>
    %cst_39 = arith.constant -1.000000e+30 : f32
    %113 = vector.broadcast %cst_39 : f32 to vector<2x80xf32>
    %114 = arith.select %62, %21, %113 : vector<2x80xi1>, vector<2x80xf32>
    %cst_40 = arith.constant dense<0xFF800000> : vector<2xf32>
    %115 = vector.multi_reduction <maximumf>, %114, %cst_40 [1] : vector<2x80xf32> to vector<2xf32>
    %116 = vector.shape_cast %115 : vector<2xf32> to vector<2x1xf32>
    %117 = vector.shape_cast %116 : vector<2x1xf32> to vector<2x1xf32>
    %118 = vector.broadcast %117 : vector<2x1xf32> to vector<2x80xf32>
    %119 = arith.select %62, %118, %112 : vector<2x80xi1>, vector<2x80xf32>
    %120 = arith.subf %21, %119 : vector<2x80xf32>
    %121 = math.exp %120 : vector<2x80xf32>
    %cst_41 = arith.constant 0.000000e+00 : f32
    %122 = vector.broadcast %cst_41 : f32 to vector<2x80xf32>
    %cst_42 = arith.constant 0.000000e+00 : f32
    %123 = vector.broadcast %cst_42 : f32 to vector<2x80xf32>
    %124 = arith.select %27, %121, %123 : vector<2x80xi1>, vector<2x80xf32>
    %cst_43 = arith.constant dense<0.000000e+00> : vector<2xf32>
    %125 = vector.multi_reduction <add>, %124, %cst_43 [1] : vector<2x80xf32> to vector<2xf32>
    %126 = vector.shape_cast %125 : vector<2xf32> to vector<2x1xf32>
    %127 = vector.shape_cast %126 : vector<2x1xf32> to vector<2x1xf32>
    %128 = vector.broadcast %127 : vector<2x1xf32> to vector<2x80xf32>
    %129 = arith.select %27, %128, %122 : vector<2x80xi1>, vector<2x80xf32>
    %cst_44 = arith.constant 0.000000e+00 : f32
    %130 = vector.broadcast %cst_44 : f32 to vector<2x80xf32>
    %131 = arith.select %32, %121, %130 : vector<2x80xi1>, vector<2x80xf32>
    %cst_45 = arith.constant dense<0.000000e+00> : vector<2xf32>
    %132 = vector.multi_reduction <add>, %131, %cst_45 [1] : vector<2x80xf32> to vector<2xf32>
    %133 = vector.shape_cast %132 : vector<2xf32> to vector<2x1xf32>
    %134 = vector.shape_cast %133 : vector<2x1xf32> to vector<2x1xf32>
    %135 = vector.broadcast %134 : vector<2x1xf32> to vector<2x80xf32>
    %136 = arith.select %32, %135, %129 : vector<2x80xi1>, vector<2x80xf32>
    %cst_46 = arith.constant 0.000000e+00 : f32
    %137 = vector.broadcast %cst_46 : f32 to vector<2x80xf32>
    %138 = arith.select %37, %121, %137 : vector<2x80xi1>, vector<2x80xf32>
    %cst_47 = arith.constant dense<0.000000e+00> : vector<2xf32>
    %139 = vector.multi_reduction <add>, %138, %cst_47 [1] : vector<2x80xf32> to vector<2xf32>
    %140 = vector.shape_cast %139 : vector<2xf32> to vector<2x1xf32>
    %141 = vector.shape_cast %140 : vector<2x1xf32> to vector<2x1xf32>
    %142 = vector.broadcast %141 : vector<2x1xf32> to vector<2x80xf32>
    %143 = arith.select %37, %142, %136 : vector<2x80xi1>, vector<2x80xf32>
    %cst_48 = arith.constant 0.000000e+00 : f32
    %144 = vector.broadcast %cst_48 : f32 to vector<2x80xf32>
    %145 = arith.select %42, %121, %144 : vector<2x80xi1>, vector<2x80xf32>
    %cst_49 = arith.constant dense<0.000000e+00> : vector<2xf32>
    %146 = vector.multi_reduction <add>, %145, %cst_49 [1] : vector<2x80xf32> to vector<2xf32>
    %147 = vector.shape_cast %146 : vector<2xf32> to vector<2x1xf32>
    %148 = vector.shape_cast %147 : vector<2x1xf32> to vector<2x1xf32>
    %149 = vector.broadcast %148 : vector<2x1xf32> to vector<2x80xf32>
    %150 = arith.select %42, %149, %143 : vector<2x80xi1>, vector<2x80xf32>
    %cst_50 = arith.constant 0.000000e+00 : f32
    %151 = vector.broadcast %cst_50 : f32 to vector<2x80xf32>
    %152 = arith.select %47, %121, %151 : vector<2x80xi1>, vector<2x80xf32>
    %cst_51 = arith.constant dense<0.000000e+00> : vector<2xf32>
    %153 = vector.multi_reduction <add>, %152, %cst_51 [1] : vector<2x80xf32> to vector<2xf32>
    %154 = vector.shape_cast %153 : vector<2xf32> to vector<2x1xf32>
    %155 = vector.shape_cast %154 : vector<2x1xf32> to vector<2x1xf32>
    %156 = vector.broadcast %155 : vector<2x1xf32> to vector<2x80xf32>
    %157 = arith.select %47, %156, %150 : vector<2x80xi1>, vector<2x80xf32>
    %cst_52 = arith.constant 0.000000e+00 : f32
    %158 = vector.broadcast %cst_52 : f32 to vector<2x80xf32>
    %159 = arith.select %52, %121, %158 : vector<2x80xi1>, vector<2x80xf32>
    %cst_53 = arith.constant dense<0.000000e+00> : vector<2xf32>
    %160 = vector.multi_reduction <add>, %159, %cst_53 [1] : vector<2x80xf32> to vector<2xf32>
    %161 = vector.shape_cast %160 : vector<2xf32> to vector<2x1xf32>
    %162 = vector.shape_cast %161 : vector<2x1xf32> to vector<2x1xf32>
    %163 = vector.broadcast %162 : vector<2x1xf32> to vector<2x80xf32>
    %164 = arith.select %52, %163, %157 : vector<2x80xi1>, vector<2x80xf32>
    %cst_54 = arith.constant 0.000000e+00 : f32
    %165 = vector.broadcast %cst_54 : f32 to vector<2x80xf32>
    %166 = arith.select %57, %121, %165 : vector<2x80xi1>, vector<2x80xf32>
    %cst_55 = arith.constant dense<0.000000e+00> : vector<2xf32>
    %167 = vector.multi_reduction <add>, %166, %cst_55 [1] : vector<2x80xf32> to vector<2xf32>
    %168 = vector.shape_cast %167 : vector<2xf32> to vector<2x1xf32>
    %169 = vector.shape_cast %168 : vector<2x1xf32> to vector<2x1xf32>
    %170 = vector.broadcast %169 : vector<2x1xf32> to vector<2x80xf32>
    %171 = arith.select %57, %170, %164 : vector<2x80xi1>, vector<2x80xf32>
    %cst_56 = arith.constant 0.000000e+00 : f32
    %172 = vector.broadcast %cst_56 : f32 to vector<2x80xf32>
    %173 = arith.select %62, %121, %172 : vector<2x80xi1>, vector<2x80xf32>
    %cst_57 = arith.constant dense<0.000000e+00> : vector<2xf32>
    %174 = vector.multi_reduction <add>, %173, %cst_57 [1] : vector<2x80xf32> to vector<2xf32>
    %175 = vector.shape_cast %174 : vector<2xf32> to vector<2x1xf32>
    %176 = vector.shape_cast %175 : vector<2x1xf32> to vector<2x1xf32>
    %177 = vector.broadcast %176 : vector<2x1xf32> to vector<2x80xf32>
    %178 = arith.select %62, %177, %171 : vector<2x80xi1>, vector<2x80xf32>
    %179 = arith.divf %121, %178 : vector<2x80xf32>
    %c0_58 = arith.constant 0 : index
    %c0_59 = arith.constant 0 : index
    %180 = vector.load %arg15[%c0_58, %c0_59] : memref<2x80xf32, #tpu.memory_space<vmem>>, vector<2x80xf32>
    tpu.vector_store %arg15[%c0_58, %c0_59], %179 {strides = array<i32>} : memref<2x80xf32, #tpu.memory_space<vmem>>, vector<2x80xf32>,
    %c0_60 = arith.constant 0 : index
    %c0_61 = arith.constant 0 : index
    %181 = vector.load %arg14[%c0_60, %c0_61] : memref<1x80xf32, #tpu.memory_space<vmem>>, vector<1x80xf32>
    %182 = vector.broadcast %181 : vector<1x80xf32> to vector<2x80xf32>
    %183 = arith.addf %21, %182 : vector<2x80xf32>
    %cst_62 = arith.constant 1.000000e+00 : f32
    %184 = vector.broadcast %cst_62 : f32 to vector<2x80xf32>
    %185 = arith.mulf %183, %184 : vector<2x80xf32>
    %cst_63 = arith.constant -1.000000e+30 : f32
    %186 = vector.broadcast %cst_63 : f32 to vector<2x80xf32>
    %cst_64 = arith.constant -1.000000e+30 : f32
    %187 = vector.broadcast %cst_64 : f32 to vector<2x80xf32>
    %188 = arith.select %27, %185, %187 : vector<2x80xi1>, vector<2x80xf32>
    %cst_65 = arith.constant dense<0xFF800000> : vector<2xf32>
    %189 = vector.multi_reduction <maximumf>, %188, %cst_65 [1] : vector<2x80xf32> to vector<2xf32>
    %190 = vector.shape_cast %189 : vector<2xf32> to vector<2x1xf32>
    %191 = vector.shape_cast %190 : vector<2x1xf32> to vector<2x1xf32>
    %192 = vector.broadcast %191 : vector<2x1xf32> to vector<2x80xf32>
    %193 = arith.select %27, %192, %186 : vector<2x80xi1>, vector<2x80xf32>
    %cst_66 = arith.constant -1.000000e+30 : f32
    %194 = vector.broadcast %cst_66 : f32 to vector<2x80xf32>
    %195 = arith.select %32, %185, %194 : vector<2x80xi1>, vector<2x80xf32>
    %cst_67 = arith.constant dense<0xFF800000> : vector<2xf32>
    %196 = vector.multi_reduction <maximumf>, %195, %cst_67 [1] : vector<2x80xf32> to vector<2xf32>
    %197 = vector.shape_cast %196 : vector<2xf32> to vector<2x1xf32>
    %198 = vector.shape_cast %197 : vector<2x1xf32> to vector<2x1xf32>
    %199 = vector.broadcast %198 : vector<2x1xf32> to vector<2x80xf32>
    %200 = arith.select %32, %199, %193 : vector<2x80xi1>, vector<2x80xf32>
    %cst_68 = arith.constant -1.000000e+30 : f32
    %201 = vector.broadcast %cst_68 : f32 to vector<2x80xf32>
    %202 = arith.select %37, %185, %201 : vector<2x80xi1>, vector<2x80xf32>
    %cst_69 = arith.constant dense<0xFF800000> : vector<2xf32>
    %203 = vector.multi_reduction <maximumf>, %202, %cst_69 [1] : vector<2x80xf32> to vector<2xf32>
    %204 = vector.shape_cast %203 : vector<2xf32> to vector<2x1xf32>
    %205 = vector.shape_cast %204 : vector<2x1xf32> to vector<2x1xf32>
    %206 = vector.broadcast %205 : vector<2x1xf32> to vector<2x80xf32>
    %207 = arith.select %37, %206, %200 : vector<2x80xi1>, vector<2x80xf32>
    %cst_70 = arith.constant -1.000000e+30 : f32
    %208 = vector.broadcast %cst_70 : f32 to vector<2x80xf32>
    %209 = arith.select %42, %185, %208 : vector<2x80xi1>, vector<2x80xf32>
    %cst_71 = arith.constant dense<0xFF800000> : vector<2xf32>
    %210 = vector.multi_reduction <maximumf>, %209, %cst_71 [1] : vector<2x80xf32> to vector<2xf32>
    %211 = vector.shape_cast %210 : vector<2xf32> to vector<2x1xf32>
    %212 = vector.shape_cast %211 : vector<2x1xf32> to vector<2x1xf32>
    %213 = vector.broadcast %212 : vector<2x1xf32> to vector<2x80xf32>
    %214 = arith.select %42, %213, %207 : vector<2x80xi1>, vector<2x80xf32>
    %cst_72 = arith.constant -1.000000e+30 : f32
    %215 = vector.broadcast %cst_72 : f32 to vector<2x80xf32>
    %216 = arith.select %47, %185, %215 : vector<2x80xi1>, vector<2x80xf32>
    %cst_73 = arith.constant dense<0xFF800000> : vector<2xf32>
    %217 = vector.multi_reduction <maximumf>, %216, %cst_73 [1] : vector<2x80xf32> to vector<2xf32>
    %218 = vector.shape_cast %217 : vector<2xf32> to vector<2x1xf32>
    %219 = vector.shape_cast %218 : vector<2x1xf32> to vector<2x1xf32>
    %220 = vector.broadcast %219 : vector<2x1xf32> to vector<2x80xf32>
    %221 = arith.select %47, %220, %214 : vector<2x80xi1>, vector<2x80xf32>
    %cst_74 = arith.constant -1.000000e+30 : f32
    %222 = vector.broadcast %cst_74 : f32 to vector<2x80xf32>
    %223 = arith.select %52, %185, %222 : vector<2x80xi1>, vector<2x80xf32>
    %cst_75 = arith.constant dense<0xFF800000> : vector<2xf32>
    %224 = vector.multi_reduction <maximumf>, %223, %cst_75 [1] : vector<2x80xf32> to vector<2xf32>
    %225 = vector.shape_cast %224 : vector<2xf32> to vector<2x1xf32>
    %226 = vector.shape_cast %225 : vector<2x1xf32> to vector<2x1xf32>
    %227 = vector.broadcast %226 : vector<2x1xf32> to vector<2x80xf32>
    %228 = arith.select %52, %227, %221 : vector<2x80xi1>, vector<2x80xf32>
    %cst_76 = arith.constant -1.000000e+30 : f32
    %229 = vector.broadcast %cst_76 : f32 to vector<2x80xf32>
    %230 = arith.select %57, %185, %229 : vector<2x80xi1>, vector<2x80xf32>
    %cst_77 = arith.constant dense<0xFF800000> : vector<2xf32>
    %231 = vector.multi_reduction <maximumf>, %230, %cst_77 [1] : vector<2x80xf32> to vector<2xf32>
    %232 = vector.shape_cast %231 : vector<2xf32> to vector<2x1xf32>
    %233 = vector.shape_cast %232 : vector<2x1xf32> to vector<2x1xf32>
    %234 = vector.broadcast %233 : vector<2x1xf32> to vector<2x80xf32>
    %235 = arith.select %57, %234, %228 : vector<2x80xi1>, vector<2x80xf32>
    %cst_78 = arith.constant -1.000000e+30 : f32
    %236 = vector.broadcast %cst_78 : f32 to vector<2x80xf32>
    %237 = arith.select %62, %185, %236 : vector<2x80xi1>, vector<2x80xf32>
    %cst_79 = arith.constant dense<0xFF800000> : vector<2xf32>
    %238 = vector.multi_reduction <maximumf>, %237, %cst_79 [1] : vector<2x80xf32> to vector<2xf32>
    %239 = vector.shape_cast %238 : vector<2xf32> to vector<2x1xf32>
    %240 = vector.shape_cast %239 : vector<2x1xf32> to vector<2x1xf32>
    %241 = vector.broadcast %240 : vector<2x1xf32> to vector<2x80xf32>
    %242 = arith.select %62, %241, %235 : vector<2x80xi1>, vector<2x80xf32>
    %243 = arith.subf %185, %242 : vector<2x80xf32>
    %244 = math.exp %243 : vector<2x80xf32>
    %cst_80 = arith.constant 0.000000e+00 : f32
    %245 = vector.broadcast %cst_80 : f32 to vector<2x80xf32>
    %cst_81 = arith.constant 0.000000e+00 : f32
    %246 = vector.broadcast %cst_81 : f32 to vector<2x80xf32>
    %247 = arith.select %27, %244, %246 : vector<2x80xi1>, vector<2x80xf32>
    %cst_82 = arith.constant dense<0.000000e+00> : vector<2xf32>
    %248 = vector.multi_reduction <add>, %247, %cst_82 [1] : vector<2x80xf32> to vector<2xf32>
    %249 = vector.shape_cast %248 : vector<2xf32> to vector<2x1xf32>
    %250 = vector.shape_cast %249 : vector<2x1xf32> to vector<2x1xf32>
    %251 = vector.broadcast %250 : vector<2x1xf32> to vector<2x80xf32>
    %252 = arith.select %27, %251, %245 : vector<2x80xi1>, vector<2x80xf32>
    %cst_83 = arith.constant 0.000000e+00 : f32
    %253 = vector.broadcast %cst_83 : f32 to vector<2x80xf32>
    %254 = arith.select %32, %244, %253 : vector<2x80xi1>, vector<2x80xf32>
    %cst_84 = arith.constant dense<0.000000e+00> : vector<2xf32>
    %255 = vector.multi_reduction <add>, %254, %cst_84 [1] : vector<2x80xf32> to vector<2xf32>
    %256 = vector.shape_cast %255 : vector<2xf32> to vector<2x1xf32>
    %257 = vector.shape_cast %256 : vector<2x1xf32> to vector<2x1xf32>
    %258 = vector.broadcast %257 : vector<2x1xf32> to vector<2x80xf32>
    %259 = arith.select %32, %258, %252 : vector<2x80xi1>, vector<2x80xf32>
    %cst_85 = arith.constant 0.000000e+00 : f32
    %260 = vector.broadcast %cst_85 : f32 to vector<2x80xf32>
    %261 = arith.select %37, %244, %260 : vector<2x80xi1>, vector<2x80xf32>
    %cst_86 = arith.constant dense<0.000000e+00> : vector<2xf32>
    %262 = vector.multi_reduction <add>, %261, %cst_86 [1] : vector<2x80xf32> to vector<2xf32>
    %263 = vector.shape_cast %262 : vector<2xf32> to vector<2x1xf32>
    %264 = vector.shape_cast %263 : vector<2x1xf32> to vector<2x1xf32>
    %265 = vector.broadcast %264 : vector<2x1xf32> to vector<2x80xf32>
    %266 = arith.select %37, %265, %259 : vector<2x80xi1>, vector<2x80xf32>
    %cst_87 = arith.constant 0.000000e+00 : f32
    %267 = vector.broadcast %cst_87 : f32 to vector<2x80xf32>
    %268 = arith.select %42, %244, %267 : vector<2x80xi1>, vector<2x80xf32>
    %cst_88 = arith.constant dense<0.000000e+00> : vector<2xf32>
    %269 = vector.multi_reduction <add>, %268, %cst_88 [1] : vector<2x80xf32> to vector<2xf32>
    %270 = vector.shape_cast %269 : vector<2xf32> to vector<2x1xf32>
    %271 = vector.shape_cast %270 : vector<2x1xf32> to vector<2x1xf32>
    %272 = vector.broadcast %271 : vector<2x1xf32> to vector<2x80xf32>
    %273 = arith.select %42, %272, %266 : vector<2x80xi1>, vector<2x80xf32>
    %cst_89 = arith.constant 0.000000e+00 : f32
    %274 = vector.broadcast %cst_89 : f32 to vector<2x80xf32>
    %275 = arith.select %47, %244, %274 : vector<2x80xi1>, vector<2x80xf32>
    %cst_90 = arith.constant dense<0.000000e+00> : vector<2xf32>
    %276 = vector.multi_reduction <add>, %275, %cst_90 [1] : vector<2x80xf32> to vector<2xf32>
    %277 = vector.shape_cast %276 : vector<2xf32> to vector<2x1xf32>
    %278 = vector.shape_cast %277 : vector<2x1xf32> to vector<2x1xf32>
    %279 = vector.broadcast %278 : vector<2x1xf32> to vector<2x80xf32>
    %280 = arith.select %47, %279, %273 : vector<2x80xi1>, vector<2x80xf32>
    %cst_91 = arith.constant 0.000000e+00 : f32
    %281 = vector.broadcast %cst_91 : f32 to vector<2x80xf32>
    %282 = arith.select %52, %244, %281 : vector<2x80xi1>, vector<2x80xf32>
    %cst_92 = arith.constant dense<0.000000e+00> : vector<2xf32>
    %283 = vector.multi_reduction <add>, %282, %cst_92 [1] : vector<2x80xf32> to vector<2xf32>
    %284 = vector.shape_cast %283 : vector<2xf32> to vector<2x1xf32>
    %285 = vector.shape_cast %284 : vector<2x1xf32> to vector<2x1xf32>
    %286 = vector.broadcast %285 : vector<2x1xf32> to vector<2x80xf32>
    %287 = arith.select %52, %286, %280 : vector<2x80xi1>, vector<2x80xf32>
    %cst_93 = arith.constant 0.000000e+00 : f32
    %288 = vector.broadcast %cst_93 : f32 to vector<2x80xf32>
    %289 = arith.select %57, %244, %288 : vector<2x80xi1>, vector<2x80xf32>
    %cst_94 = arith.constant dense<0.000000e+00> : vector<2xf32>
    %290 = vector.multi_reduction <add>, %289, %cst_94 [1] : vector<2x80xf32> to vector<2xf32>
    %291 = vector.shape_cast %290 : vector<2xf32> to vector<2x1xf32>
    %292 = vector.shape_cast %291 : vector<2x1xf32> to vector<2x1xf32>
    %293 = vector.broadcast %292 : vector<2x1xf32> to vector<2x80xf32>
    %294 = arith.select %57, %293, %287 : vector<2x80xi1>, vector<2x80xf32>
    %cst_95 = arith.constant 0.000000e+00 : f32
    %295 = vector.broadcast %cst_95 : f32 to vector<2x80xf32>
    %296 = arith.select %62, %244, %295 : vector<2x80xi1>, vector<2x80xf32>
    %cst_96 = arith.constant dense<0.000000e+00> : vector<2xf32>
    %297 = vector.multi_reduction <add>, %296, %cst_96 [1] : vector<2x80xf32> to vector<2xf32>
    %298 = vector.shape_cast %297 : vector<2xf32> to vector<2x1xf32>
    %299 = vector.shape_cast %298 : vector<2x1xf32> to vector<2x1xf32>
    %300 = vector.broadcast %299 : vector<2x1xf32> to vector<2x80xf32>
    %301 = arith.select %62, %300, %294 : vector<2x80xi1>, vector<2x80xf32>
    %302 = arith.divf %244, %301 : vector<2x80xf32>
    %303 = arith.truncf %302 : vector<2x80xf32> to vector<2x80xbf16>
    %c0_97 = arith.constant 0 : index
    %c0_98 = arith.constant 0 : index
    %304 = vector.load %arg8[%c0_97, %c0_98] : memref<80x256xbf16, #tpu.memory_space<vmem>>, vector<80x256xbf16>
    %cst_99 = arith.constant dense<0.000000e+00> : vector<2x256xf32>
    %305 = tpu.matmul %303, %304, %cst_99 {dimension_numbers = #tpu.dot_dimension_numbers<[1], [0], [0], [1], [0, 0, 1, 1], [], []>} : vector<2x80xbf16>, vector<80x256xbf16>, vector<2x256xf32> -> vector<2x256xf32>
    %c0_100 = arith.constant 0 : index
    %c0_101 = arith.constant 0 : index
    %306 = vector.load %arg9[%c0_100, %c0_101] : memref<1x256xf32, #tpu.memory_space<vmem>>, vector<1x256xf32>
    %307 = vector.broadcast %306 : vector<1x256xf32> to vector<2x256xf32>
    %308 = arith.addf %305, %307 : vector<2x256xf32>
    %cst_102 = arith.constant 0.000000e+00 : f32
    %309 = vector.broadcast %cst_102 : f32 to vector<2x256xf32>
    %310 = arith.maximumf %308, %309 : vector<2x256xf32>
    %311 = arith.truncf %310 : vector<2x256xf32> to vector<2x256xbf16>
    %c0_103 = arith.constant 0 : index
    %c0_104 = arith.constant 0 : index
    %312 = vector.load %arg10[%c0_103, %c0_104] : memref<256x512xbf16, #tpu.memory_space<vmem>>, vector<256x512xbf16>
    %cst_105 = arith.constant dense<0.000000e+00> : vector<2x512xf32>
    %313 = tpu.matmul %311, %312, %cst_105 {dimension_numbers = #tpu.dot_dimension_numbers<[1], [0], [0], [1], [0, 0, 1, 1], [], []>} : vector<2x256xbf16>, vector<256x512xbf16>, vector<2x512xf32> -> vector<2x512xf32>
    %c0_106 = arith.constant 0 : index
    %c0_107 = arith.constant 0 : index
    %314 = vector.load %arg11[%c0_106, %c0_107] : memref<1x512xf32, #tpu.memory_space<vmem>>, vector<1x512xf32>
    %315 = vector.broadcast %314 : vector<1x512xf32> to vector<2x512xf32>
    %316 = arith.addf %313, %315 : vector<2x512xf32>
    %cst_108 = arith.constant 0.000000e+00 : f32
    %317 = vector.broadcast %cst_108 : f32 to vector<2x512xf32>
    %318 = arith.maximumf %316, %317 : vector<2x512xf32>
    %319 = arith.truncf %318 : vector<2x512xf32> to vector<2x512xbf16>
    %c0_109 = arith.constant 0 : index
    %c0_110 = arith.constant 0 : index
    %320 = vector.load %arg12[%c0_109, %c0_110] : memref<512x784xbf16, #tpu.memory_space<vmem>>, vector<512x784xbf16>
    %cst_111 = arith.constant dense<0.000000e+00> : vector<2x784xf32>
    %321 = tpu.matmul %319, %320, %cst_111 {dimension_numbers = #tpu.dot_dimension_numbers<[1], [0], [0], [1], [0, 0, 1, 1], [], []>} : vector<2x512xbf16>, vector<512x784xbf16>, vector<2x784xf32> -> vector<2x784xf32>
    %c0_112 = arith.constant 0 : index
    %c0_113 = arith.constant 0 : index
    %322 = vector.load %arg13[%c0_112, %c0_113] : memref<1x784xf32, #tpu.memory_space<vmem>>, vector<1x784xf32>
    %323 = vector.broadcast %322 : vector<1x784xf32> to vector<2x784xf32>
    %324 = arith.addf %321, %323 : vector<2x784xf32>
    %c0_114 = arith.constant 0 : index
    %c0_115 = arith.constant 0 : index
    %325 = vector.load %arg17[%c0_114, %c0_115] : memref<2x784xf32, #tpu.memory_space<vmem>>, vector<2x784xf32>
    tpu.vector_store %arg17[%c0_114, %c0_115], %324 {strides = array<i32>} : memref<2x784xf32, #tpu.memory_space<vmem>>, vector<2x784xf32>,
    %326 = arith.negf %324 : vector<2x784xf32>
    %327 = math.exp %326 : vector<2x784xf32>
    %cst_116 = arith.constant 1.000000e+00 : f32
    %328 = vector.broadcast %cst_116 : f32 to vector<2x784xf32>
    %329 = arith.addf %328, %327 : vector<2x784xf32>
    %330 = arith.divf %328, %329 : vector<2x784xf32>
    %c0_117 = arith.constant 0 : index
    %c0_118 = arith.constant 0 : index
    %331 = vector.load %arg16[%c0_117, %c0_118] : memref<2x784xf32, #tpu.memory_space<vmem>>, vector<2x784xf32>
    tpu.vector_store %arg16[%c0_117, %c0_118], %330 {strides = array<i32>} : memref<2x784xf32, #tpu.memory_space<vmem>>, vector<2x784xf32>,
    return
  }
  func.func @transform_0(%arg0: i32) -> (i32, i32) {
    %c0_i32 = arith.constant 0 : i32
    %c0_i32_0 = arith.constant 0 : i32
    return %arg0, %c0_i32 : i32, i32
  }
  func.func @transform_1(%arg0: i32) -> (i32, i32) {
    %c0_i32 = arith.constant 0 : i32
    %c0_i32_0 = arith.constant 0 : i32
    %c0_i32_1 = arith.constant 0 : i32
    return %c0_i32, %c0_i32_0 : i32, i32
  }
  func.func @transform_2(%arg0: i32) -> (i32, i32) {
    %c0_i32 = arith.constant 0 : i32
    %c0_i32_0 = arith.constant 0 : i32
    %c0_i32_1 = arith.constant 0 : i32
    return %c0_i32, %c0_i32_0 : i32, i32
  }
  func.func @transform_3(%arg0: i32) -> (i32, i32) {
    %c0_i32 = arith.constant 0 : i32
    %c0_i32_0 = arith.constant 0 : i32
    %c0_i32_1 = arith.constant 0 : i32
    return %c0_i32, %c0_i32_0 : i32, i32
  }
  func.func @transform_4(%arg0: i32) -> (i32, i32) {
    %c0_i32 = arith.constant 0 : i32
    %c0_i32_0 = arith.constant 0 : i32
    %c0_i32_1 = arith.constant 0 : i32
    return %c0_i32, %c0_i32_0 : i32, i32
  }
  func.func @transform_5(%arg0: i32) -> (i32, i32) {
    %c0_i32 = arith.constant 0 : i32
    %c0_i32_0 = arith.constant 0 : i32
    %c0_i32_1 = arith.constant 0 : i32
    return %c0_i32, %c0_i32_0 : i32, i32
  }
  func.func @transform_6(%arg0: i32) -> (i32, i32) {
    %c0_i32 = arith.constant 0 : i32
    %c0_i32_0 = arith.constant 0 : i32
    %c0_i32_1 = arith.constant 0 : i32
    return %c0_i32, %c0_i32_0 : i32, i32
  }
  func.func @transform_7(%arg0: i32) -> (i32, i32) {
    %c0_i32 = arith.constant 0 : i32
    %c0_i32_0 = arith.constant 0 : i32
    %c0_i32_1 = arith.constant 0 : i32
    return %c0_i32, %c0_i32_0 : i32, i32
  }
  func.func @transform_8(%arg0: i32) -> (i32, i32) {
    %c0_i32 = arith.constant 0 : i32
    %c0_i32_0 = arith.constant 0 : i32
    %c0_i32_1 = arith.constant 0 : i32
    return %c0_i32, %c0_i32_0 : i32, i32
  }
  func.func @transform_9(%arg0: i32) -> (i32, i32) {
    %c0_i32 = arith.constant 0 : i32
    %c0_i32_0 = arith.constant 0 : i32
    %c0_i32_1 = arith.constant 0 : i32
    return %c0_i32, %c0_i32_0 : i32, i32
  }
  func.func @transform_10(%arg0: i32) -> (i32, i32) {
    %c0_i32 = arith.constant 0 : i32
    %c0_i32_0 = arith.constant 0 : i32
    %c0_i32_1 = arith.constant 0 : i32
    return %c0_i32, %c0_i32_0 : i32, i32
  }
  func.func @transform_11(%arg0: i32) -> (i32, i32) {
    %c0_i32 = arith.constant 0 : i32
    %c0_i32_0 = arith.constant 0 : i32
    %c0_i32_1 = arith.constant 0 : i32
    return %c0_i32, %c0_i32_0 : i32, i32
  }
  func.func @transform_12(%arg0: i32) -> (i32, i32) {
    %c0_i32 = arith.constant 0 : i32
    %c0_i32_0 = arith.constant 0 : i32
    %c0_i32_1 = arith.constant 0 : i32
    return %c0_i32, %c0_i32_0 : i32, i32
  }
  func.func @transform_13(%arg0: i32) -> (i32, i32) {
    %c0_i32 = arith.constant 0 : i32
    %c0_i32_0 = arith.constant 0 : i32
    %c0_i32_1 = arith.constant 0 : i32
    return %c0_i32, %c0_i32_0 : i32, i32
  }
  func.func @transform_14(%arg0: i32) -> (i32, i32) {
    %c0_i32 = arith.constant 0 : i32
    %c0_i32_0 = arith.constant 0 : i32
    return %arg0, %c0_i32 : i32, i32
  }
  func.func @transform_15(%arg0: i32) -> (i32, i32) {
    %c0_i32 = arith.constant 0 : i32
    %c0_i32_0 = arith.constant 0 : i32
    return %arg0, %c0_i32 : i32, i32
  }
  func.func @transform_16(%arg0: i32) -> (i32, i32) {
    %c0_i32 = arith.constant 0 : i32
    %c0_i32_0 = arith.constant 0 : i32
    return %arg0, %c0_i32 : i32, i32
  }
}

</mosaic_0001>

<llo_original>
// kernel: tpu_custom_call.1
$region0: #{tpu_custom_call.1}
  #allocation0 [shape = 'u32[]', space=smem, size = 0x4, offset = 0x4, fixed_abs, tag = 'smem constant byte address 0x4 - core index']
  #allocation1 [shape = 'u32[72,128]{1,0:T(1,128)}', space=vmem, size = 0x9000, scoped, tag = 'internal scratch']
  %s0 = inlined_call_operand.vmem [shape: bf16[2,784], index: 0, kind: input, shape index: {}]
  %s1 = inlined_call_operand.vmem [shape: bf16[784,512], index: 1, kind: input, shape index: {}]
  %s2 = inlined_call_operand.vmem [shape: f32[1,512], index: 2, kind: input, shape index: {}]
  %s3 = inlined_call_operand.vmem [shape: bf16[512,256], index: 3, kind: input, shape index: {}]
  %s4 = inlined_call_operand.vmem [shape: f32[1,256], index: 4, kind: input, shape index: {}]
  %s5 = inlined_call_operand.vmem [shape: bf16[256,80], index: 5, kind: input, shape index: {}]
  %s6 = inlined_call_operand.vmem [shape: f32[1,80], index: 6, kind: input, shape index: {}]
  %s7 = inlined_call_operand.vmem [shape: bf16[80,256], index: 7, kind: input, shape index: {}]
  %s8 = inlined_call_operand.vmem [shape: f32[1,256], index: 8, kind: input, shape index: {}]
  %s9 = inlined_call_operand.vmem [shape: bf16[256,512], index: 9, kind: input, shape index: {}]
  %s10 = inlined_call_operand.vmem [shape: f32[1,512], index: 10, kind: input, shape index: {}]
  %s11 = inlined_call_operand.vmem [shape: bf16[512,784], index: 11, kind: input, shape index: {}]
  %s12 = inlined_call_operand.vmem [shape: f32[1,784], index: 12, kind: input, shape index: {}]
  %s13 = inlined_call_operand.vmem [shape: f32[1,80], index: 13, kind: input, shape index: {}]
  %s14 = inlined_call_operand.hbm [shape: f32[2,80], index: 14, kind: output, shape index: {0}]
  %s15 = inlined_call_operand.hbm [shape: f32[2,784], index: 15, kind: output, shape index: {1}]
  %s16 = inlined_call_operand.hbm [shape: f32[2,784], index: 16, kind: output, shape index: {2}]
  %17 = xla_tuple %s14, %s15, %s16
  %s18 = sld [smem:[#allocation0]]
  $region82: #{tpu_custom_call.1} parent=0
    _
  %s20 = ssub.s32 1, %s18
  %s21 = scalar_select 0, %s20, %s18
  $region1: #{tpu_custom_call.1} parent=0
    #allocation2 [shape = 'u8[1024]{0}', space=vmem, size = 0x400, scoped, tag = 'output window, operand 0, single buffered']
    #allocation3 [shape = 's32[1]{0}', space=sflag, size = 0x4, scoped, tag = 'scoped memory for tpu_custom_call.1']
    #allocation4 [shape = 'u8[7168]{0}', space=vmem, size = 0x1c00, scoped, tag = 'output window, operand 1, single buffered']
    #allocation5 [shape = 's32[1]{0}', space=sflag, size = 0x4, scoped, tag = 'scoped memory for tpu_custom_call.1']
    #allocation6 [shape = 'u8[7168]{0}', space=vmem, size = 0x1c00, scoped, tag = 'output window, operand 2, single buffered']
    %22 = vsyncpa [#allocation3], 0
    %23 = vsyncpa [#allocation5], 0
    // Predicated region
    $region2: #{tpu_custom_call.1} parent=1 // pred_check
      _
    $region3: #{tpu_custom_call.1} parent=1 // pred_check_branch
      %25 = sbr.rel (0) target = $region5
    $region4: #{tpu_custom_call.1} parent=1 // pred_region
      _
    $region5: #{tpu_custom_call.1} parent=1 // pred_fallthru
      _
    // Predicated region
    $region6: #{tpu_custom_call.1} parent=1 // pred_check
      _
    $region7: #{tpu_custom_call.1} parent=1 // pred_check_branch
      %27 = sbr.rel (0) target = $region9
    $region8: #{tpu_custom_call.1} parent=1 // pred_region
      _
    $region9: #{tpu_custom_call.1} parent=1 // pred_fallthru
      _
    // Predicated region
    $region10: #{tpu_custom_call.1} parent=1 // pred_check
      _
    $region11: #{tpu_custom_call.1} parent=1 // pred_check_branch
      %29 = sbr.rel (0) target = $region13
    $region12: #{tpu_custom_call.1} parent=1 // pred_region
      _
    $region13: #{tpu_custom_call.1} parent=1 // pred_fallthru
      _
    // Predicated region
    $region14: #{tpu_custom_call.1} parent=1 // pred_check
      _
    $region15: #{tpu_custom_call.1} parent=1 // pred_check_branch
      %31 = sbr.rel (0) target = $region17
    $region16: #{tpu_custom_call.1} parent=1 // pred_region
      _
    $region17: #{tpu_custom_call.1} parent=1 // pred_fallthru
      _
    // Predicated region
    $region18: #{tpu_custom_call.1} parent=1 // pred_check
      _
    $region19: #{tpu_custom_call.1} parent=1 // pred_check_branch
      %33 = sbr.rel (0) target = $region21
    $region20: #{tpu_custom_call.1} parent=1 // pred_region
      _
    $region21: #{tpu_custom_call.1} parent=1 // pred_fallthru
      _
    // Predicated region
    $region22: #{tpu_custom_call.1} parent=1 // pred_check
      _
    $region23: #{tpu_custom_call.1} parent=1 // pred_check_branch
      %35 = sbr.rel (0) target = $region25
    $region24: #{tpu_custom_call.1} parent=1 // pred_region
      _
    $region25: #{tpu_custom_call.1} parent=1 // pred_fallthru
      _
    // Predicated region
    $region26: #{tpu_custom_call.1} parent=1 // pred_check
      _
    $region27: #{tpu_custom_call.1} parent=1 // pred_check_branch
      %37 = sbr.rel (0) target = $region29
    $region28: #{tpu_custom_call.1} parent=1 // pred_region
      _
    $region29: #{tpu_custom_call.1} parent=1 // pred_fallthru
      _
    // Predicated region
    $region30: #{tpu_custom_call.1} parent=1 // pred_check
      _
    $region31: #{tpu_custom_call.1} parent=1 // pred_check_branch
      %39 = sbr.rel (0) target = $region33
    $region32: #{tpu_custom_call.1} parent=1 // pred_region
      _
    $region33: #{tpu_custom_call.1} parent=1 // pred_fallthru
      _
    // Predicated region
    $region34: #{tpu_custom_call.1} parent=1 // pred_check
      _
    $region35: #{tpu_custom_call.1} parent=1 // pred_check_branch
      %41 = sbr.rel (0) target = $region37
    $region36: #{tpu_custom_call.1} parent=1 // pred_region
      _
    $region37: #{tpu_custom_call.1} parent=1 // pred_fallthru
      _
    // Predicated region
    $region38: #{tpu_custom_call.1} parent=1 // pred_check
      _
    $region39: #{tpu_custom_call.1} parent=1 // pred_check_branch
      %43 = sbr.rel (0) target = $region41
    $region40: #{tpu_custom_call.1} parent=1 // pred_region
      _
    $region41: #{tpu_custom_call.1} parent=1 // pred_fallthru
      _
    // Predicated region
    $region42: #{tpu_custom_call.1} parent=1 // pred_check
      _
    $region43: #{tpu_custom_call.1} parent=1 // pred_check_branch
      %45 = sbr.rel (0) target = $region45
    $region44: #{tpu_custom_call.1} parent=1 // pred_region
      _
    $region45: #{tpu_custom_call.1} parent=1 // pred_fallthru
      _
    // Predicated region
    $region46: #{tpu_custom_call.1} parent=1 // pred_check
      _
    $region47: #{tpu_custom_call.1} parent=1 // pred_check_branch
      %47 = sbr.rel (0) target = $region49
    $region48: #{tpu_custom_call.1} parent=1 // pred_region
      _
    $region49: #{tpu_custom_call.1} parent=1 // pred_fallthru
      _
    // Predicated region
    $region50: #{tpu_custom_call.1} parent=1 // pred_check
      _
    $region51: #{tpu_custom_call.1} parent=1 // pred_check_branch
      %49 = sbr.rel (0) target = $region53
    $region52: #{tpu_custom_call.1} parent=1 // pred_region
      _
    $region53: #{tpu_custom_call.1} parent=1 // pred_fallthru
      _
    // Predicated region
    $region54: #{tpu_custom_call.1} parent=1 // pred_check
      _
    $region55: #{tpu_custom_call.1} parent=1 // pred_check_branch
      %51 = sbr.rel (0) target = $region57
    $region56: #{tpu_custom_call.1} parent=1 // pred_region
      _
    $region57: #{tpu_custom_call.1} parent=1 // pred_fallthru
      _
    %v53 = vld [vmem:[%s0] sm:$0x7f]
    %v54 = vld [vmem:[%s1] sm:$0xff]
    %v55 = vld [vmem:[%s1 + $0x8] sm:$0xff]
    %v56 = vld [vmem:[%s1 + $0x10] sm:$0xff]
    %v57 = vld [vmem:[%s1 + $0x18] sm:$0xff]
    %v58 = vld [vmem:[%s1 + $0x20] sm:$0xff]
    %v59 = vld [vmem:[%s1 + $0x28] sm:$0xff]
    %v60 = vld [vmem:[%s1 + $0x30] sm:$0xff]
    %v61 = vld [vmem:[%s1 + $0x38] sm:$0xff]
    %v62 = vld [vmem:[%s1 + $0x40] sm:$0xff]
    %v63 = vld [vmem:[%s1 + $0x48] sm:$0xff]
    %v64 = vld [vmem:[%s1 + $0x50] sm:$0xff]
    %v65 = vld [vmem:[%s1 + $0x58] sm:$0xff]
    %v66 = vld [vmem:[%s1 + $0x60] sm:$0xff]
    %v67 = vld [vmem:[%s1 + $0x68] sm:$0xff]
    %v68 = vld [vmem:[%s1 + $0x70] sm:$0xff]
    %v69 = vld [vmem:[%s1 + $0x78] sm:$0xff]
    %v70 = vld [vmem:[%s1 + $0x80] sm:$0xff]
    %v71 = vld [vmem:[%s1 + $0x88] sm:$0xff]
    %v72 = vld [vmem:[%s1 + $0x90] sm:$0xff]
    %v73 = vld [vmem:[%s1 + $0x98] sm:$0xff]
    %v74 = vld [vmem:[%s1 + $0xa0] sm:$0xff]
    %v75 = vld [vmem:[%s1 + $0xa8] sm:$0xff]
    %v76 = vld [vmem:[%s1 + $0xb0] sm:$0xff]
    %v77 = vld [vmem:[%s1 + $0xb8] sm:$0xff]
    %v78 = vld [vmem:[%s1 + $0xc0] sm:$0xff]
    %v79 = vld [vmem:[%s1 + $0xc8] sm:$0xff]
    %v80 = vld [vmem:[%s1 + $0xd0] sm:$0xff]
    %v81 = vld [vmem:[%s1 + $0xd8] sm:$0xff]
    %v82 = vld [vmem:[%s1 + $0xe0] sm:$0xff]
    %v83 = vld [vmem:[%s1 + $0xe8] sm:$0xff]
    %v84 = vld [vmem:[%s1 + $0xf0] sm:$0xff]
    %v85 = vld [vmem:[%s1 + $0xf8] sm:$0xff]
    %v86 = vld [vmem:[%s1 + $0x100] sm:$0xff]
    %v87 = vld [vmem:[%s1 + $0x108] sm:$0xff]
    %v88 = vld [vmem:[%s1 + $0x110] sm:$0xff]
    %v89 = vld [vmem:[%s1 + $0x118] sm:$0xff]
    %v90 = vld [vmem:[%s1 + $0x120] sm:$0xff]
    %v91 = vld [vmem:[%s1 + $0x128] sm:$0xff]
    %v92 = vld [vmem:[%s1 + $0x130] sm:$0xff]
    %v93 = vld [vmem:[%s1 + $0x138] sm:$0xff]
    %v94 = vld [vmem:[%s1 + $0x140] sm:$0xff]
    %v95 = vld [vmem:[%s1 + $0x148] sm:$0xff]
    %v96 = vld [vmem:[%s1 + $0x150] sm:$0xff]
    %v97 = vld [vmem:[%s1 + $0x158] sm:$0xff]
    %v98 = vld [vmem:[%s1 + $0x160] sm:$0xff]
    %v99 = vld [vmem:[%s1 + $0x168] sm:$0xff]
    %v100 = vld [vmem:[%s1 + $0x170] sm:$0xff]
    %v101 = vld [vmem:[%s1 + $0x178] sm:$0xff]
    %v102 = vld [vmem:[%s1 + $0x180] sm:$0xff]
    %v103 = vld [vmem:[%s1 + $0x188] sm:$0xff]
    %v104 = vld [vmem:[%s1 + $0x190] sm:$0xff]
    %v105 = vld [vmem:[%s1 + $0x198] sm:$0xff]
    %v106 = vld [vmem:[%s1 + $0x1a0] sm:$0xff]
    %v107 = vld [vmem:[%s1 + $0x1a8] sm:$0xff]
    %v108 = vld [vmem:[%s1 + $0x1b0] sm:$0xff]
    %v109 = vld [vmem:[%s1 + $0x1b8] sm:$0xff]
    %v110 = vld [vmem:[%s1 + $0x1c0] sm:$0xff]
    %v111 = vld [vmem:[%s1 + $0x1c8] sm:$0xff]
    %v112 = vld [vmem:[%s1 + $0x1d0] sm:$0xff]
    %v113 = vld [vmem:[%s1 + $0x1d8] sm:$0xff]
    %v114 = vld [vmem:[%s1 + $0x1e0] sm:$0xff]
    %v115 = vld [vmem:[%s1 + $0x1e8] sm:$0xff]
    %v116 = vld [vmem:[%s1 + $0x1f0] sm:$0xff]
    %v117 = vld [vmem:[%s1 + $0x1f8] sm:$0xff]
    %v118 = vld [vmem:[%s1 + $0x200] sm:$0xff]
    %v119 = vld [vmem:[%s1 + $0x208] sm:$0xff]
    %v120 = vld [vmem:[%s1 + $0x210] sm:$0xff]
    %v121 = vld [vmem:[%s1 + $0x218] sm:$0xff]
    %v122 = vld [vmem:[%s1 + $0x220] sm:$0xff]
    %v123 = vld [vmem:[%s1 + $0x228] sm:$0xff]
    %v124 = vld [vmem:[%s1 + $0x230] sm:$0xff]
    %v125 = vld [vmem:[%s1 + $0x238] sm:$0xff]
    %v126 = vld [vmem:[%s1 + $0x240] sm:$0xff]
    %v127 = vld [vmem:[%s1 + $0x248] sm:$0xff]
    %v128 = vld [vmem:[%s1 + $0x250] sm:$0xff]
    %v129 = vld [vmem:[%s1 + $0x258] sm:$0xff]
    %v130 = vld [vmem:[%s1 + $0x260] sm:$0xff]
    %v131 = vld [vmem:[%s1 + $0x268] sm:$0xff]
    %v132 = vld [vmem:[%s1 + $0x270] sm:$0xff]
    %v133 = vld [vmem:[%s1 + $0x278] sm:$0xff]
    %v134 = vld [vmem:[%s1 + $0x280] sm:$0xff]
    %v135 = vld [vmem:[%s1 + $0x288] sm:$0xff]
    %v136 = vld [vmem:[%s1 + $0x290] sm:$0xff]
    %v137 = vld [vmem:[%s1 + $0x298] sm:$0xff]
    %v138 = vld [vmem:[%s1 + $0x2a0] sm:$0xff]
    %v139 = vld [vmem:[%s1 + $0x2a8] sm:$0xff]
    %v140 = vld [vmem:[%s1 + $0x2b0] sm:$0xff]
    %v141 = vld [vmem:[%s1 + $0x2b8] sm:$0xff]
    %v142 = vld [vmem:[%s1 + $0x2c0] sm:$0xff]
    %v143 = vld [vmem:[%s1 + $0x2c8] sm:$0xff]
    %v144 = vld [vmem:[%s1 + $0x2d0] sm:$0xff]
    %v145 = vld [vmem:[%s1 + $0x2d8] sm:$0xff]
    %v146 = vld [vmem:[%s1 + $0x2e0] sm:$0xff]
    %v147 = vld [vmem:[%s1 + $0x2e8] sm:$0xff]
    %v148 = vld [vmem:[%s1 + $0x2f0] sm:$0xff]
    %v149 = vld [vmem:[%s1 + $0x2f8] sm:$0xff]
    %v150 = vld [vmem:[%s1 + $0x300] sm:$0xff]
    %v151 = vld [vmem:[%s1 + $0x308] sm:$0xff]
    %v152 = vld [vmem:[%s1 + $0x310] sm:$0xff]
    %v153 = vld [vmem:[%s1 + $0x318] sm:$0xff]
    %v154 = vld [vmem:[%s1 + $0x320] sm:$0xff]
    %v155 = vld [vmem:[%s1 + $0x328] sm:$0xff]
    %v156 = vld [vmem:[%s1 + $0x330] sm:$0xff]
    %v157 = vld [vmem:[%s1 + $0x338] sm:$0xff]
    %v158 = vld [vmem:[%s1 + $0x340] sm:$0xff]
    %v159 = vld [vmem:[%s1 + $0x348] sm:$0xff]
    %v160 = vld [vmem:[%s1 + $0x350] sm:$0xff]
    %v161 = vld [vmem:[%s1 + $0x358] sm:$0xff]
    %v162 = vld [vmem:[%s1 + $0x360] sm:$0xff]
    %v163 = vld [vmem:[%s1 + $0x368] sm:$0xff]
    %v164 = vld [vmem:[%s1 + $0x370] sm:$0xff]
    %v165 = vld [vmem:[%s1 + $0x378] sm:$0xff]
    %v166 = vld [vmem:[%s1 + $0x380] sm:$0xff]
    %v167 = vld [vmem:[%s1 + $0x388] sm:$0xff]
    %v168 = vld [vmem:[%s1 + $0x390] sm:$0xff]
    %v169 = vld [vmem:[%s1 + $0x398] sm:$0xff]
    %v170 = vld [vmem:[%s1 + $0x3a0] sm:$0xff]
    %v171 = vld [vmem:[%s1 + $0x3a8] sm:$0xff]
    %v172 = vld [vmem:[%s1 + $0x3b0] sm:$0xff]
    %v173 = vld [vmem:[%s1 + $0x3b8] sm:$0xff]
    %v174 = vld [vmem:[%s1 + $0x3c0] sm:$0xff]
    %v175 = vld [vmem:[%s1 + $0x3c8] sm:$0xff]
    %v176 = vld [vmem:[%s1 + $0x3d0] sm:$0xff]
    %v177 = vld [vmem:[%s1 + $0x3d8] sm:$0xff]
    %v178 = vld [vmem:[%s1 + $0x3e0] sm:$0xff]
    %v179 = vld [vmem:[%s1 + $0x3e8] sm:$0xff]
    %v180 = vld [vmem:[%s1 + $0x3f0] sm:$0xff]
    %v181 = vld [vmem:[%s1 + $0x3f8] sm:$0xff]
    %v182 = vld [vmem:[%s1 + $0x400] sm:$0xff]
    %v183 = vld [vmem:[%s1 + $0x408] sm:$0xff]
    %v184 = vld [vmem:[%s1 + $0x410] sm:$0xff]
    %v185 = vld [vmem:[%s1 + $0x418] sm:$0xff]
    %v186 = vld [vmem:[%s1 + $0x420] sm:$0xff]
    %v187 = vld [vmem:[%s1 + $0x428] sm:$0xff]
    %v188 = vld [vmem:[%s1 + $0x430] sm:$0xff]
    %v189 = vld [vmem:[%s1 + $0x438] sm:$0xff]
    %v190 = vld [vmem:[%s1 + $0x440] sm:$0xff]
    %v191 = vld [vmem:[%s1 + $0x448] sm:$0xff]
    %v192 = vld [vmem:[%s1 + $0x450] sm:$0xff]
    %v193 = vld [vmem:[%s1 + $0x458] sm:$0xff]
    %v194 = vld [vmem:[%s1 + $0x460] sm:$0xff]
    %v195 = vld [vmem:[%s1 + $0x468] sm:$0xff]
    %v196 = vld [vmem:[%s1 + $0x470] sm:$0xff]
    %v197 = vld [vmem:[%s1 + $0x478] sm:$0xff]
    %v198 = vld [vmem:[%s1 + $0x480] sm:$0xff]
    %v199 = vld [vmem:[%s1 + $0x488] sm:$0xff]
    %v200 = vld [vmem:[%s1 + $0x490] sm:$0xff]
    %v201 = vld [vmem:[%s1 + $0x498] sm:$0xff]
    %v202 = vld [vmem:[%s1 + $0x4a0] sm:$0xff]
    %v203 = vld [vmem:[%s1 + $0x4a8] sm:$0xff]
    %v204 = vld [vmem:[%s1 + $0x4b0] sm:$0xff]
    %v205 = vld [vmem:[%s1 + $0x4b8] sm:$0xff]
    %v206 = vld [vmem:[%s1 + $0x4c0] sm:$0xff]
    %v207 = vld [vmem:[%s1 + $0x4c8] sm:$0xff]
    %v208 = vld [vmem:[%s1 + $0x4d0] sm:$0xff]
    %v209 = vld [vmem:[%s1 + $0x4d8] sm:$0xff]
    %v210 = vld [vmem:[%s1 + $0x4e0] sm:$0xff]
    %v211 = vld [vmem:[%s1 + $0x4e8] sm:$0xff]
    %v212 = vld [vmem:[%s1 + $0x4f0] sm:$0xff]
    %v213 = vld [vmem:[%s1 + $0x4f8] sm:$0xff]
    %v214 = vld [vmem:[%s1 + $0x500] sm:$0xff]
    %v215 = vld [vmem:[%s1 + $0x508] sm:$0xff]
    %v216 = vld [vmem:[%s1 + $0x510] sm:$0xff]
    %v217 = vld [vmem:[%s1 + $0x518] sm:$0xff]
    %v218 = vld [vmem:[%s1 + $0x520] sm:$0xff]
    %v219 = vld [vmem:[%s1 + $0x528] sm:$0xff]
    %v220 = vld [vmem:[%s1 + $0x530] sm:$0xff]
    %v221 = vld [vmem:[%s1 + $0x538] sm:$0xff]
    %v222 = vld [vmem:[%s1 + $0x540] sm:$0xff]
    %v223 = vld [vmem:[%s1 + $0x548] sm:$0xff]
    %v224 = vld [vmem:[%s1 + $0x550] sm:$0xff]
    %v225 = vld [vmem:[%s1 + $0x558] sm:$0xff]
    %v226 = vld [vmem:[%s1 + $0x560] sm:$0xff]
    %v227 = vld [vmem:[%s1 + $0x568] sm:$0xff]
    %v228 = vld [vmem:[%s1 + $0x570] sm:$0xff]
    %v229 = vld [vmem:[%s1 + $0x578] sm:$0xff]
    %v230 = vld [vmem:[%s1 + $0x580] sm:$0xff]
    %v231 = vld [vmem:[%s1 + $0x588] sm:$0xff]
    %v232 = vld [vmem:[%s1 + $0x590] sm:$0xff]
    %v233 = vld [vmem:[%s1 + $0x598] sm:$0xff]
    %v234 = vld [vmem:[%s1 + $0x5a0] sm:$0xff]
    %v235 = vld [vmem:[%s1 + $0x5a8] sm:$0xff]
    %v236 = vld [vmem:[%s1 + $0x5b0] sm:$0xff]
    %v237 = vld [vmem:[%s1 + $0x5b8] sm:$0xff]
    %v238 = vld [vmem:[%s1 + $0x5c0] sm:$0xff]
    %v239 = vld [vmem:[%s1 + $0x5c8] sm:$0xff]
    %v240 = vld [vmem:[%s1 + $0x5d0] sm:$0xff]
    %v241 = vld [vmem:[%s1 + $0x5d8] sm:$0xff]
    %v242 = vld [vmem:[%s1 + $0x5e0] sm:$0xff]
    %v243 = vld [vmem:[%s1 + $0x5e8] sm:$0xff]
    %v244 = vld [vmem:[%s1 + $0x5f0] sm:$0xff]
    %v245 = vld [vmem:[%s1 + $0x5f8] sm:$0xff]
    %v246 = vld [vmem:[%s1 + $0x600] sm:$0xff]
    %v247 = vld [vmem:[%s1 + $0x608] sm:$0xff]
    %v248 = vld [vmem:[%s1 + $0x610] sm:$0xff]
    %v249 = vld [vmem:[%s1 + $0x618] sm:$0xff]
    %v250 = vld [vmem:[%s2] sm:$0xf]
    %v252 = vperm.slane %v250, 0
    %v253 = vperm.slane %v250, 1
    %v254 = vperm.slane %v250, 2
    %v255 = vperm.slane %v250, 3
    %261 = vst [vmem:[#allocation1] ss:$9 sm:$0xff] %v53
    %v262 = vld [vmem:[#allocation1] sm:$0xff]
    %v263 = vld [vmem:[#allocation1 + $0x9] sm:$0xff]
    %v264 = vld [vmem:[#allocation1 + $0x12] sm:$0xff]
    %v265 = vld [vmem:[#allocation1 + $0x1b] sm:$0xff]
    %v266 = vld [vmem:[#allocation1 + $0x24] sm:$0xff]
    %v267 = vld [vmem:[#allocation1 + $0x2d] sm:$0xff]
    %v268 = vld [vmem:[#allocation1 + $0x36] sm:$0xff]
    %v471 = vunpack.c.l.b16 %v54
    %v472 = vunpack.c.h.b16 %v54
    %v473 = vunpack.c.l.b16 %v55
    %v474 = vunpack.c.h.b16 %v55
    %v475 = vunpack.c.l.b16 %v56
    %v476 = vunpack.c.h.b16 %v56
    %v477 = vunpack.c.l.b16 %v57
    %v478 = vunpack.c.h.b16 %v57
    %v479 = vunpack.c.l.b16 %v58
    %v480 = vunpack.c.h.b16 %v58
    %v481 = vunpack.c.l.b16 %v59
    %v482 = vunpack.c.h.b16 %v59
    %v483 = vunpack.c.l.b16 %v60
    %v484 = vunpack.c.h.b16 %v60
    %v485 = vunpack.c.l.b16 %v61
    %v486 = vunpack.c.h.b16 %v61
    %v487 = vunpack.c.l.b16 %v62
    %v488 = vunpack.c.h.b16 %v62
    %v489 = vunpack.c.l.b16 %v63
    %v490 = vunpack.c.h.b16 %v63
    %v491 = vunpack.c.l.b16 %v64
    %v492 = vunpack.c.h.b16 %v64
    %v493 = vunpack.c.l.b16 %v65
    %v494 = vunpack.c.h.b16 %v65
    %v495 = vunpack.c.l.b16 %v66
    %v496 = vunpack.c.h.b16 %v66
    %v497 = vunpack.c.l.b16 %v67
    %v498 = vunpack.c.h.b16 %v67
    %v499 = vunpack.c.l.b16 %v68
    %v500 = vunpack.c.h.b16 %v68
    %v501 = vunpack.c.l.b16 %v69
    %v502 = vunpack.c.h.b16 %v69
    %v503 = vunpack.c.l.b16 %v70
    %v504 = vunpack.c.h.b16 %v70
    %v505 = vunpack.c.l.b16 %v71
    %v506 = vunpack.c.h.b16 %v71
    %v507 = vunpack.c.l.b16 %v72
    %v508 = vunpack.c.h.b16 %v72
    %v509 = vunpack.c.l.b16 %v73
    %v510 = vunpack.c.h.b16 %v73
    %v511 = vunpack.c.l.b16 %v74
    %v512 = vunpack.c.h.b16 %v74
    %v513 = vunpack.c.l.b16 %v75
    %v514 = vunpack.c.h.b16 %v75
    %v515 = vunpack.c.l.b16 %v76
    %v516 = vunpack.c.h.b16 %v76
    %v517 = vunpack.c.l.b16 %v77
    %v518 = vunpack.c.h.b16 %v77
    %v519 = vunpack.c.l.b16 %v78
    %v520 = vunpack.c.h.b16 %v78
    %v521 = vunpack.c.l.b16 %v79
    %v522 = vunpack.c.h.b16 %v79
    %v523 = vunpack.c.l.b16 %v80
    %v524 = vunpack.c.h.b16 %v80
    %v525 = vunpack.c.l.b16 %v81
    %v526 = vunpack.c.h.b16 %v81
    %v527 = vunpack.c.l.b16 %v82
    %v528 = vunpack.c.h.b16 %v82
    %v529 = vunpack.c.l.b16 %v83
    %v530 = vunpack.c.h.b16 %v83
    %v531 = vunpack.c.l.b16 %v84
    %v532 = vunpack.c.h.b16 %v84
    %v533 = vunpack.c.l.b16 %v85
    %v534 = vunpack.c.h.b16 %v85
    %v535 = vunpack.c.l.b16 %v86
    %v536 = vunpack.c.h.b16 %v86
    %v537 = vunpack.c.l.b16 %v87
    %v538 = vunpack.c.h.b16 %v87
    %v539 = vunpack.c.l.b16 %v88
    %v540 = vunpack.c.h.b16 %v88
    %v541 = vunpack.c.l.b16 %v89
    %v542 = vunpack.c.h.b16 %v89
    %v543 = vunpack.c.l.b16 %v90
    %v544 = vunpack.c.h.b16 %v90
    %v545 = vunpack.c.l.b16 %v91
    %v546 = vunpack.c.h.b16 %v91
    %v547 = vunpack.c.l.b16 %v92
    %v548 = vunpack.c.h.b16 %v92
    %v549 = vunpack.c.l.b16 %v93
    %v550 = vunpack.c.h.b16 %v93
    %v551 = vunpack.c.l.b16 %v94
    %v552 = vunpack.c.h.b16 %v94
    %v553 = vunpack.c.l.b16 %v95
    %v554 = vunpack.c.h.b16 %v95
    %v555 = vunpack.c.l.b16 %v96
    %v556 = vunpack.c.h.b16 %v96
    %v557 = vunpack.c.l.b16 %v97
    %v558 = vunpack.c.h.b16 %v97
    %v559 = vunpack.c.l.b16 %v98
    %v560 = vunpack.c.h.b16 %v98
    %v561 = vunpack.c.l.b16 %v99
    %v562 = vunpack.c.h.b16 %v99
    %v563 = vunpack.c.l.b16 %v100
    %v564 = vunpack.c.h.b16 %v100
    %v565 = vunpack.c.l.b16 %v101
    %v566 = vunpack.c.h.b16 %v101
    %v567 = vunpack.c.l.b16 %v102
    %v568 = vunpack.c.h.b16 %v102
    %v569 = vunpack.c.l.b16 %v103
    %v570 = vunpack.c.h.b16 %v103
    %v571 = vunpack.c.l.b16 %v104
    %v572 = vunpack.c.h.b16 %v104
    %v573 = vunpack.c.l.b16 %v105
    %v574 = vunpack.c.h.b16 %v105
    %v575 = vunpack.c.l.b16 %v106
    %v576 = vunpack.c.h.b16 %v106
    %v577 = vunpack.c.l.b16 %v107
    %v578 = vunpack.c.h.b16 %v107
    %v579 = vunpack.c.l.b16 %v108
    %v580 = vunpack.c.h.b16 %v108
    %v581 = vunpack.c.l.b16 %v109
    %v582 = vunpack.c.h.b16 %v109
    %v583 = vunpack.c.l.b16 %v110
    %v584 = vunpack.c.h.b16 %v110
    %v585 = vunpack.c.l.b16 %v111
    %v586 = vunpack.c.h.b16 %v111
    %v587 = vunpack.c.l.b16 %v112
    %v588 = vunpack.c.h.b16 %v112
    %v589 = vunpack.c.l.b16 %v113
    %v590 = vunpack.c.h.b16 %v113
    %v591 = vunpack.c.l.b16 %v114
    %v592 = vunpack.c.h.b16 %v114
    %v593 = vunpack.c.l.b16 %v115
    %v594 = vunpack.c.h.b16 %v115
    %v595 = vunpack.c.l.b16 %v116
    %v596 = vunpack.c.h.b16 %v116
    %v597 = vunpack.c.l.b16 %v117
    %v598 = vunpack.c.h.b16 %v117
    %v599 = vunpack.c.l.b16 %v118
    %v600 = vunpack.c.h.b16 %v118
    %v601 = vunpack.c.l.b16 %v119
    %v602 = vunpack.c.h.b16 %v119
    %v603 = vunpack.c.l.b16 %v120
    %v604 = vunpack.c.h.b16 %v120
    %v605 = vunpack.c.l.b16 %v121
    %v606 = vunpack.c.h.b16 %v121
    %v607 = vunpack.c.l.b16 %v122
    %v608 = vunpack.c.h.b16 %v122
    %v609 = vunpack.c.l.b16 %v123
    %v610 = vunpack.c.h.b16 %v123
    %v611 = vunpack.c.l.b16 %v124
    %v612 = vunpack.c.h.b16 %v124
    %v613 = vunpack.c.l.b16 %v125
    %v614 = vunpack.c.h.b16 %v125
    %v615 = vunpack.c.l.b16 %v126
    %v616 = vunpack.c.h.b16 %v126
    %v617 = vunpack.c.l.b16 %v127
    %v618 = vunpack.c.h.b16 %v127
    %v619 = vunpack.c.l.b16 %v128
    %v620 = vunpack.c.h.b16 %v128
    %v621 = vunpack.c.l.b16 %v129
    %v622 = vunpack.c.h.b16 %v129
    %v623 = vunpack.c.l.b16 %v130
    %v624 = vunpack.c.h.b16 %v130
    %v625 = vunpack.c.l.b16 %v131
    %v626 = vunpack.c.h.b16 %v131
    %v627 = vunpack.c.l.b16 %v132
    %v628 = vunpack.c.h.b16 %v132
    %v629 = vunpack.c.l.b16 %v133
    %v630 = vunpack.c.h.b16 %v133
    %v631 = vunpack.c.l.b16 %v134
    %v632 = vunpack.c.h.b16 %v134
    %v633 = vunpack.c.l.b16 %v135
    %v634 = vunpack.c.h.b16 %v135
    %v635 = vunpack.c.l.b16 %v136
    %v636 = vunpack.c.h.b16 %v136
    %v637 = vunpack.c.l.b16 %v137
    %v638 = vunpack.c.h.b16 %v137
    %v639 = vunpack.c.l.b16 %v138
    %v640 = vunpack.c.h.b16 %v138
    %v641 = vunpack.c.l.b16 %v139
    %v642 = vunpack.c.h.b16 %v139
    %v643 = vunpack.c.l.b16 %v140
    %v644 = vunpack.c.h.b16 %v140
    %v645 = vunpack.c.l.b16 %v141
    %v646 = vunpack.c.h.b16 %v141
    %v647 = vunpack.c.l.b16 %v142
    %v648 = vunpack.c.h.b16 %v142
    %v649 = vunpack.c.l.b16 %v143
    %v650 = vunpack.c.h.b16 %v143
    %v651 = vunpack.c.l.b16 %v144
    %v652 = vunpack.c.h.b16 %v144
    %v653 = vunpack.c.l.b16 %v145
    %v654 = vunpack.c.h.b16 %v145
    %v655 = vunpack.c.l.b16 %v146
    %v656 = vunpack.c.h.b16 %v146
    %v657 = vunpack.c.l.b16 %v147
    %v658 = vunpack.c.h.b16 %v147
    %v659 = vunpack.c.l.b16 %v148
    %v660 = vunpack.c.h.b16 %v148
    %v661 = vunpack.c.l.b16 %v149
    %v662 = vunpack.c.h.b16 %v149
    %v663 = vunpack.c.l.b16 %v150
    %v664 = vunpack.c.h.b16 %v150
    %v665 = vunpack.c.l.b16 %v151
    %v666 = vunpack.c.h.b16 %v151
    %v667 = vunpack.c.l.b16 %v152
    %v668 = vunpack.c.h.b16 %v152
    %v669 = vunpack.c.l.b16 %v153
    %v670 = vunpack.c.h.b16 %v153
    %v671 = vunpack.c.l.b16 %v154
    %v672 = vunpack.c.h.b16 %v154
    %v673 = vunpack.c.l.b16 %v155
    %v674 = vunpack.c.h.b16 %v155
    %v675 = vunpack.c.l.b16 %v156
    %v676 = vunpack.c.h.b16 %v156
    %v677 = vunpack.c.l.b16 %v157
    %v678 = vunpack.c.h.b16 %v157
    %v679 = vunpack.c.l.b16 %v158
    %v680 = vunpack.c.h.b16 %v158
    %v681 = vunpack.c.l.b16 %v159
    %v682 = vunpack.c.h.b16 %v159
    %v683 = vunpack.c.l.b16 %v160
    %v684 = vunpack.c.h.b16 %v160
    %v685 = vunpack.c.l.b16 %v161
    %v686 = vunpack.c.h.b16 %v161
    %v687 = vunpack.c.l.b16 %v162
    %v688 = vunpack.c.h.b16 %v162
    %v689 = vunpack.c.l.b16 %v163
    %v690 = vunpack.c.h.b16 %v163
    %v691 = vunpack.c.l.b16 %v164
    %v692 = vunpack.c.h.b16 %v164
    %v693 = vunpack.c.l.b16 %v165
    %v694 = vunpack.c.h.b16 %v165
    %v695 = vunpack.c.l.b16 %v166
    %v696 = vunpack.c.h.b16 %v166
    %v697 = vunpack.c.l.b16 %v167
    %v698 = vunpack.c.h.b16 %v167
    %v699 = vunpack.c.l.b16 %v168
    %v700 = vunpack.c.h.b16 %v168
    %v701 = vunpack.c.l.b16 %v169
    %v702 = vunpack.c.h.b16 %v169
    %v703 = vunpack.c.l.b16 %v170
    %v704 = vunpack.c.h.b16 %v170
    %v705 = vunpack.c.l.b16 %v171
    %v706 = vunpack.c.h.b16 %v171
    %v707 = vunpack.c.l.b16 %v172
    %v708 = vunpack.c.h.b16 %v172
    %v709 = vunpack.c.l.b16 %v173
    %v710 = vunpack.c.h.b16 %v173
    %v711 = vunpack.c.l.b16 %v174
    %v712 = vunpack.c.h.b16 %v174
    %v713 = vunpack.c.l.b16 %v175
    %v714 = vunpack.c.h.b16 %v175
    %v715 = vunpack.c.l.b16 %v176
    %v716 = vunpack.c.h.b16 %v176
    %v717 = vunpack.c.l.b16 %v177
    %v718 = vunpack.c.h.b16 %v177
    %v719 = vunpack.c.l.b16 %v178
    %v720 = vunpack.c.h.b16 %v178
    %v721 = vunpack.c.l.b16 %v179
    %v722 = vunpack.c.h.b16 %v179
    %v723 = vunpack.c.l.b16 %v180
    %v724 = vunpack.c.h.b16 %v180
    %v725 = vunpack.c.l.b16 %v181
    %v726 = vunpack.c.h.b16 %v181
    %v727 = vunpack.c.l.b16 %v182
    %v728 = vunpack.c.h.b16 %v182
    %v729 = vunpack.c.l.b16 %v183
    %v730 = vunpack.c.h.b16 %v183
    %v731 = vunpack.c.l.b16 %v184
    %v732 = vunpack.c.h.b16 %v184
    %v733 = vunpack.c.l.b16 %v185
    %v734 = vunpack.c.h.b16 %v185
    %v735 = vunpack.c.l.b16 %v186
    %v736 = vunpack.c.h.b16 %v186
    %v737 = vunpack.c.l.b16 %v187
    %v738 = vunpack.c.h.b16 %v187
    %v739 = vunpack.c.l.b16 %v188
    %v740 = vunpack.c.h.b16 %v188
    %v741 = vunpack.c.l.b16 %v189
    %v742 = vunpack.c.h.b16 %v189
    %v743 = vunpack.c.l.b16 %v190
    %v744 = vunpack.c.h.b16 %v190
    %v745 = vunpack.c.l.b16 %v191
    %v746 = vunpack.c.h.b16 %v191
    %v747 = vunpack.c.l.b16 %v192
    %v748 = vunpack.c.h.b16 %v192
    %v749 = vunpack.c.l.b16 %v193
    %v750 = vunpack.c.h.b16 %v193
    %v751 = vunpack.c.l.b16 %v194
    %v752 = vunpack.c.h.b16 %v194
    %v753 = vunpack.c.l.b16 %v195
    %v754 = vunpack.c.h.b16 %v195
    %v755 = vunpack.c.l.b16 %v196
    %v756 = vunpack.c.h.b16 %v196
    %v757 = vunpack.c.l.b16 %v197
    %v758 = vunpack.c.h.b16 %v197
    %v759 = vunpack.c.l.b16 %v198
    %v760 = vunpack.c.h.b16 %v198
    %v761 = vunpack.c.l.b16 %v199
    %v762 = vunpack.c.h.b16 %v199
    %v763 = vunpack.c.l.b16 %v200
    %v764 = vunpack.c.h.b16 %v200
    %v765 = vunpack.c.l.b16 %v201
    %v766 = vunpack.c.h.b16 %v201
    %v767 = vunpack.c.l.b16 %v202
    %v768 = vunpack.c.h.b16 %v202
    %v769 = vunpack.c.l.b16 %v203
    %v770 = vunpack.c.h.b16 %v203
    %v771 = vunpack.c.l.b16 %v204
    %v772 = vunpack.c.h.b16 %v204
    %v773 = vunpack.c.l.b16 %v205
    %v774 = vunpack.c.h.b16 %v205
    %v775 = vunpack.c.l.b16 %v206
    %v776 = vunpack.c.h.b16 %v206
    %v777 = vunpack.c.l.b16 %v207
    %v778 = vunpack.c.h.b16 %v207
    %v779 = vunpack.c.l.b16 %v208
    %v780 = vunpack.c.h.b16 %v208
    %v781 = vunpack.c.l.b16 %v209
    %v782 = vunpack.c.h.b16 %v209
    %v783 = vunpack.c.l.b16 %v210
    %v784 = vunpack.c.h.b16 %v210
    %v785 = vunpack.c.l.b16 %v211
    %v786 = vunpack.c.h.b16 %v211
    %v787 = vunpack.c.l.b16 %v212
    %v788 = vunpack.c.h.b16 %v212
    %v789 = vunpack.c.l.b16 %v213
    %v790 = vunpack.c.h.b16 %v213
    %v791 = vunpack.c.l.b16 %v214
    %v792 = vunpack.c.h.b16 %v214
    %v793 = vunpack.c.l.b16 %v215
    %v794 = vunpack.c.h.b16 %v215
    %v795 = vunpack.c.l.b16 %v216
    %v796 = vunpack.c.h.b16 %v216
    %v797 = vunpack.c.l.b16 %v217
    %v798 = vunpack.c.h.b16 %v217
    %v799 = vunpack.c.l.b16 %v218
    %v800 = vunpack.c.h.b16 %v218
    %v801 = vunpack.c.l.b16 %v219
    %v802 = vunpack.c.h.b16 %v219
    %v803 = vunpack.c.l.b16 %v220
    %v804 = vunpack.c.h.b16 %v220
    %v805 = vunpack.c.l.b16 %v221
    %v806 = vunpack.c.h.b16 %v221
    %v807 = vunpack.c.l.b16 %v222
    %v808 = vunpack.c.h.b16 %v222
    %v809 = vunpack.c.l.b16 %v223
    %v810 = vunpack.c.h.b16 %v223
    %v811 = vunpack.c.l.b16 %v224
    %v812 = vunpack.c.h.b16 %v224
    %v813 = vunpack.c.l.b16 %v225
    %v814 = vunpack.c.h.b16 %v225
    %v815 = vunpack.c.l.b16 %v226
    %v816 = vunpack.c.h.b16 %v226
    %v817 = vunpack.c.l.b16 %v227
    %v818 = vunpack.c.h.b16 %v227
    %v819 = vunpack.c.l.b16 %v228
    %v820 = vunpack.c.h.b16 %v228
    %v821 = vunpack.c.l.b16 %v229
    %v822 = vunpack.c.h.b16 %v229
    %v823 = vunpack.c.l.b16 %v230
    %v824 = vunpack.c.h.b16 %v230
    %v825 = vunpack.c.l.b16 %v231
    %v826 = vunpack.c.h.b16 %v231
    %v827 = vunpack.c.l.b16 %v232
    %v828 = vunpack.c.h.b16 %v232
    %v829 = vunpack.c.l.b16 %v233
    %v830 = vunpack.c.h.b16 %v233
    %v831 = vunpack.c.l.b16 %v234
    %v832 = vunpack.c.h.b16 %v234
    %v833 = vunpack.c.l.b16 %v235
    %v834 = vunpack.c.h.b16 %v235
    %v835 = vunpack.c.l.b16 %v236
    %v836 = vunpack.c.h.b16 %v236
    %v837 = vunpack.c.l.b16 %v237
    %v838 = vunpack.c.h.b16 %v237
    %v839 = vunpack.c.l.b16 %v238
    %v840 = vunpack.c.h.b16 %v238
    %v841 = vunpack.c.l.b16 %v239
    %v842 = vunpack.c.h.b16 %v239
    %v843 = vunpack.c.l.b16 %v240
    %v844 = vunpack.c.h.b16 %v240
    %v845 = vunpack.c.l.b16 %v241
    %v846 = vunpack.c.h.b16 %v241
    %v847 = vunpack.c.l.b16 %v242
    %v848 = vunpack.c.h.b16 %v242
    %v849 = vunpack.c.l.b16 %v243
    %v850 = vunpack.c.h.b16 %v243
    %v851 = vunpack.c.l.b16 %v244
    %v852 = vunpack.c.h.b16 %v244
    %v853 = vunpack.c.l.b16 %v245
    %v854 = vunpack.c.h.b16 %v245
    %v855 = vunpack.c.l.b16 %v246
    %v856 = vunpack.c.h.b16 %v246
    %v857 = vunpack.c.l.b16 %v247
    %v858 = vunpack.c.h.b16 %v247
    %v859 = vunpack.c.l.b16 %v248
    %v860 = vunpack.c.h.b16 %v248
    %v861 = vunpack.c.l.b16 %v249
    %v862 = vunpack.c.h.b16 %v249
    %v863 = vpack.c.b16 %v475, %v471
    %v864 = vpack.c.b16 %v476, %v472
    %v865 = vpack.c.b16 %v477, %v473
    %v866 = vpack.c.b16 %v478, %v474
    %v867 = vpack.c.b16 %v483, %v479
    %v868 = vpack.c.b16 %v484, %v480
    %v869 = vpack.c.b16 %v485, %v481
    %v870 = vpack.c.b16 %v486, %v482
    %v871 = vpack.c.b16 %v491, %v487
    %v872 = vpack.c.b16 %v492, %v488
    %v873 = vpack.c.b16 %v493, %v489
    %v874 = vpack.c.b16 %v494, %v490
    %v875 = vpack.c.b16 %v499, %v495
    %v876 = vpack.c.b16 %v500, %v496
    %v877 = vpack.c.b16 %v501, %v497
    %v878 = vpack.c.b16 %v502, %v498
    %v879 = vpack.c.b16 %v507, %v503
    %v880 = vpack.c.b16 %v508, %v504
    %v881 = vpack.c.b16 %v509, %v505
    %v882 = vpack.c.b16 %v510, %v506
    %v883 = vpack.c.b16 %v515, %v511
    %v884 = vpack.c.b16 %v516, %v512
    %v885 = vpack.c.b16 %v517, %v513
    %v886 = vpack.c.b16 %v518, %v514
    %v887 = vpack.c.b16 %v523, %v519
    %v888 = vpack.c.b16 %v524, %v520
    %v889 = vpack.c.b16 %v525, %v521
    %v890 = vpack.c.b16 %v526, %v522
    %v891 = vpack.c.b16 %v531, %v527
    %v892 = vpack.c.b16 %v532, %v528
    %v893 = vpack.c.b16 %v533, %v529
    %v894 = vpack.c.b16 %v534, %v530
    %v895 = vpack.c.b16 %v539, %v535
    %v896 = vpack.c.b16 %v540, %v536
    %v897 = vpack.c.b16 %v541, %v537
    %v898 = vpack.c.b16 %v542, %v538
    %v899 = vpack.c.b16 %v547, %v543
    %v900 = vpack.c.b16 %v548, %v544
    %v901 = vpack.c.b16 %v549, %v545
    %v902 = vpack.c.b16 %v550, %v546
    %v903 = vpack.c.b16 %v555, %v551
    %v904 = vpack.c.b16 %v556, %v552
    %v905 = vpack.c.b16 %v557, %v553
    %v906 = vpack.c.b16 %v558, %v554
    %v907 = vpack.c.b16 %v563, %v559
    %v908 = vpack.c.b16 %v564, %v560
    %v909 = vpack.c.b16 %v565, %v561
    %v910 = vpack.c.b16 %v566, %v562
    %v911 = vpack.c.b16 %v571, %v567
    %v912 = vpack.c.b16 %v572, %v568
    %v913 = vpack.c.b16 %v573, %v569
    %v914 = vpack.c.b16 %v574, %v570
    %v915 = vpack.c.b16 %v579, %v575
    %v916 = vpack.c.b16 %v580, %v576
    %v917 = vpack.c.b16 %v581, %v577
    %v918 = vpack.c.b16 %v582, %v578
    %v919 = vpack.c.b16 %v587, %v583
    %v920 = vpack.c.b16 %v588, %v584
    %v921 = vpack.c.b16 %v589, %v585
    %v922 = vpack.c.b16 %v590, %v586
    %v923 = vpack.c.b16 %v595, %v591
    %v924 = vpack.c.b16 %v596, %v592
    %v925 = vpack.c.b16 %v597, %v593
    %v926 = vpack.c.b16 %v598, %v594
    %v927 = vpack.c.b16 %v603, %v599
    %v928 = vpack.c.b16 %v604, %v600
    %v929 = vpack.c.b16 %v605, %v601
    %v930 = vpack.c.b16 %v606, %v602
    %v931 = vpack.c.b16 %v611, %v607
    %v932 = vpack.c.b16 %v612, %v608
    %v933 = vpack.c.b16 %v613, %v609
    %v934 = vpack.c.b16 %v614, %v610
    %v935 = vpack.c.b16 %v619, %v615
    %v936 = vpack.c.b16 %v620, %v616
    %v937 = vpack.c.b16 %v621, %v617
    %v938 = vpack.c.b16 %v622, %v618
    %v939 = vpack.c.b16 %v627, %v623
    %v940 = vpack.c.b16 %v628, %v624
    %v941 = vpack.c.b16 %v629, %v625
    %v942 = vpack.c.b16 %v630, %v626
    %v943 = vpack.c.b16 %v635, %v631
    %v944 = vpack.c.b16 %v636, %v632
    %v945 = vpack.c.b16 %v637, %v633
    %v946 = vpack.c.b16 %v638, %v634
    %v947 = vpack.c.b16 %v643, %v639
    %v948 = vpack.c.b16 %v644, %v640
    %v949 = vpack.c.b16 %v645, %v641
    %v950 = vpack.c.b16 %v646, %v642
    %v951 = vpack.c.b16 %v651, %v647
    %v952 = vpack.c.b16 %v652, %v648
    %v953 = vpack.c.b16 %v653, %v649
    %v954 = vpack.c.b16 %v654, %v650
    %v955 = vpack.c.b16 %v659, %v655
    %v956 = vpack.c.b16 %v660, %v656
    %v957 = vpack.c.b16 %v661, %v657
    %v958 = vpack.c.b16 %v662, %v658
    %v959 = vpack.c.b16 %v667, %v663
    %v960 = vpack.c.b16 %v668, %v664
    %v961 = vpack.c.b16 %v669, %v665
    %v962 = vpack.c.b16 %v670, %v666
    %v963 = vpack.c.b16 %v675, %v671
    %v964 = vpack.c.b16 %v676, %v672
    %v965 = vpack.c.b16 %v677, %v673
    %v966 = vpack.c.b16 %v678, %v674
    %v967 = vpack.c.b16 %v683, %v679
    %v968 = vpack.c.b16 %v684, %v680
    %v969 = vpack.c.b16 %v685, %v681
    %v970 = vpack.c.b16 %v686, %v682
    %v971 = vpack.c.b16 %v691, %v687
    %v972 = vpack.c.b16 %v692, %v688
    %v973 = vpack.c.b16 %v693, %v689
    %v974 = vpack.c.b16 %v694, %v690
    %v975 = vpack.c.b16 %v699, %v695
    %v976 = vpack.c.b16 %v700, %v696
    %v977 = vpack.c.b16 %v701, %v697
    %v978 = vpack.c.b16 %v702, %v698
    %v979 = vpack.c.b16 %v707, %v703
    %v980 = vpack.c.b16 %v708, %v704
    %v981 = vpack.c.b16 %v709, %v705
    %v982 = vpack.c.b16 %v710, %v706
    %v983 = vpack.c.b16 %v715, %v711
    %v984 = vpack.c.b16 %v716, %v712
    %v985 = vpack.c.b16 %v717, %v713
    %v986 = vpack.c.b16 %v718, %v714
    %v987 = vpack.c.b16 %v723, %v719
    %v988 = vpack.c.b16 %v724, %v720
    %v989 = vpack.c.b16 %v725, %v721
    %v990 = vpack.c.b16 %v726, %v722
    %v991 = vpack.c.b16 %v731, %v727
    %v992 = vpack.c.b16 %v732, %v728
    %v993 = vpack.c.b16 %v733, %v729
    %v994 = vpack.c.b16 %v734, %v730
    %v995 = vpack.c.b16 %v739, %v735
    %v996 = vpack.c.b16 %v740, %v736
    %v997 = vpack.c.b16 %v741, %v737
    %v998 = vpack.c.b16 %v742, %v738
    %v999 = vpack.c.b16 %v747, %v743
    %v1000 = vpack.c.b16 %v748, %v744
    %v1001 = vpack.c.b16 %v749, %v745
    %v1002 = vpack.c.b16 %v750, %v746
    %v1003 = vpack.c.b16 %v755, %v751
    %v1004 = vpack.c.b16 %v756, %v752
    %v1005 = vpack.c.b16 %v757, %v753
    %v1006 = vpack.c.b16 %v758, %v754
    %v1007 = vpack.c.b16 %v763, %v759
    %v1008 = vpack.c.b16 %v764, %v760
    %v1009 = vpack.c.b16 %v765, %v761
    %v1010 = vpack.c.b16 %v766, %v762
    %v1011 = vpack.c.b16 %v771, %v767
    %v1012 = vpack.c.b16 %v772, %v768
    %v1013 = vpack.c.b16 %v773, %v769
    %v1014 = vpack.c.b16 %v774, %v770
    %v1015 = vpack.c.b16 %v779, %v775
    %v1016 = vpack.c.b16 %v780, %v776
    %v1017 = vpack.c.b16 %v781, %v777
    %v1018 = vpack.c.b16 %v782, %v778
    %v1019 = vpack.c.b16 %v787, %v783
    %v1020 = vpack.c.b16 %v788, %v784
    %v1021 = vpack.c.b16 %v789, %v785
    %v1022 = vpack.c.b16 %v790, %v786
    %v1023 = vpack.c.b16 %v795, %v791
    %v1024 = vpack.c.b16 %v796, %v792
    %v1025 = vpack.c.b16 %v797, %v793
    %v1026 = vpack.c.b16 %v798, %v794
    %v1027 = vpack.c.b16 %v803, %v799
    %v1028 = vpack.c.b16 %v804, %v800
    %v1029 = vpack.c.b16 %v805, %v801
    %v1030 = vpack.c.b16 %v806, %v802
    %v1031 = vpack.c.b16 %v811, %v807
    %v1032 = vpack.c.b16 %v812, %v808
    %v1033 = vpack.c.b16 %v813, %v809
    %v1034 = vpack.c.b16 %v814, %v810
    %v1035 = vpack.c.b16 %v819, %v815
    %v1036 = vpack.c.b16 %v820, %v816
    %v1037 = vpack.c.b16 %v821, %v817
    %v1038 = vpack.c.b16 %v822, %v818
    %v1039 = vpack.c.b16 %v827, %v823
    %v1040 = vpack.c.b16 %v828, %v824
    %v1041 = vpack.c.b16 %v829, %v825
    %v1042 = vpack.c.b16 %v830, %v826
    %v1043 = vpack.c.b16 %v835, %v831
    %v1044 = vpack.c.b16 %v836, %v832
    %v1045 = vpack.c.b16 %v837, %v833
    %v1046 = vpack.c.b16 %v838, %v834
    %v1047 = vpack.c.b16 %v843, %v839
    %v1048 = vpack.c.b16 %v844, %v840
    %v1049 = vpack.c.b16 %v845, %v841
    %v1050 = vpack.c.b16 %v846, %v842
    %v1051 = vpack.c.b16 %v851, %v847
    %v1052 = vpack.c.b16 %v852, %v848
    %v1053 = vpack.c.b16 %v853, %v849
    %v1054 = vpack.c.b16 %v854, %v850
    %v1055 = vpack.c.b16 %v859, %v855
    %v1056 = vpack.c.b16 %v860, %v856
    %v1057 = vpack.c.b16 %v861, %v857
    %v1058 = vpack.c.b16 %v862, %v858
    %vm1255 = vcmask 130048
    %v1256 = vsel %vm1255, %v268, 0
    %1258 = vmatpush.bf16.msra.mxu0 %v891
    %1259 = vmatpush.bf16.msra.mxu0 %v887
    %1260 = vmatpush.bf16.msra.mxu0 %v883
    %1261 = vmatpush.bf16.msra.mxu0 %v879
    %1262 = vmatpush.bf16.msra.mxu0 %v875
    %1263 = vmatpush.bf16.msra.mxu0 %v871
    %1264 = vmatpush.bf16.msra.mxu0 %v867
    %1265 = vmatpush.bf16.msra.mxu0 %v863
    %1266 = vmatmul.bf16.gmra.mxu0 %v262
    %v1267 = vpop.f32.mrf.mxu0
    %v1268 = vadd.f32 %v252, %v1267
    %v1269 = vpop.f32.mrf.mxu0
    %1270 = vdwg.mxu0
    %1271 = vmatpush.bf16.msra.mxu0 %v923
    %1272 = vmatpush.bf16.msra.mxu0 %v919
    %1273 = vmatpush.bf16.msra.mxu0 %v915
    %1274 = vmatpush.bf16.msra.mxu0 %v911
    %1275 = vmatpush.bf16.msra.mxu0 %v907
    %1276 = vmatpush.bf16.msra.mxu0 %v903
    %1277 = vmatpush.bf16.msra.mxu0 %v899
    %1278 = vmatpush.bf16.msra.mxu0 %v895
    %1279 = vmatmul.bf16.gmra.mxu0 %v263
    %v1280 = vpop.f32.mrf.mxu0
    %v1281 = vadd.f32 %v1268, %v1280
    %v1282 = vpop.f32.mrf.mxu0
    %1283 = vdwg.mxu0
    %1284 = vmatpush.bf16.msra.mxu0 %v955
    %1285 = vmatpush.bf16.msra.mxu0 %v951
    %1286 = vmatpush.bf16.msra.mxu0 %v947
    %1287 = vmatpush.bf16.msra.mxu0 %v943
    %1288 = vmatpush.bf16.msra.mxu0 %v939
    %1289 = vmatpush.bf16.msra.mxu0 %v935
    %1290 = vmatpush.bf16.msra.mxu0 %v931
    %1291 = vmatpush.bf16.msra.mxu0 %v927
    %1292 = vmatmul.bf16.gmra.mxu0 %v264
    %v1293 = vpop.f32.mrf.mxu0
    %v1294 = vadd.f32 %v1281, %v1293
    %v1295 = vpop.f32.mrf.mxu0
    %1296 = vdwg.mxu0
    %1297 = vmatpush.bf16.msra.mxu0 %v987
    %1298 = vmatpush.bf16.msra.mxu0 %v983
    %1299 = vmatpush.bf16.msra.mxu0 %v979
    %1300 = vmatpush.bf16.msra.mxu0 %v975
    %1301 = vmatpush.bf16.msra.mxu0 %v971
    %1302 = vmatpush.bf16.msra.mxu0 %v967
    %1303 = vmatpush.bf16.msra.mxu0 %v963
    %1304 = vmatpush.bf16.msra.mxu0 %v959
    %1305 = vmatmul.bf16.gmra.mxu0 %v265
    %v1306 = vpop.f32.mrf.mxu0
    %v1307 = vadd.f32 %v1294, %v1306
    %v1308 = vpop.f32.mrf.mxu0
    %1309 = vdwg.mxu0
    %1310 = vmatpush.bf16.msra.mxu0 %v1019
    %1311 = vmatpush.bf16.msra.mxu0 %v1015
    %1312 = vmatpush.bf16.msra.mxu0 %v1011
    %1313 = vmatpush.bf16.msra.mxu0 %v1007
    %1314 = vmatpush.bf16.msra.mxu0 %v1003
    %1315 = vmatpush.bf16.msra.mxu0 %v999
    %1316 = vmatpush.bf16.msra.mxu0 %v995
    %1317 = vmatpush.bf16.msra.mxu0 %v991
    %1318 = vmatmul.bf16.gmra.mxu0 %v266
    %v1319 = vpop.f32.mrf.mxu0
    %v1320 = vadd.f32 %v1307, %v1319
    %v1321 = vpop.f32.mrf.mxu0
    %1322 = vdwg.mxu0
    %1323 = vmatpush.bf16.msra.mxu0 %v1051
    %1324 = vmatpush.bf16.msra.mxu0 %v1047
    %1325 = vmatpush.bf16.msra.mxu0 %v1043
    %1326 = vmatpush.bf16.msra.mxu0 %v1039
    %1327 = vmatpush.bf16.msra.mxu0 %v1035
    %1328 = vmatpush.bf16.msra.mxu0 %v1031
    %1329 = vmatpush.bf16.msra.mxu0 %v1027
    %1330 = vmatpush.bf16.msra.mxu0 %v1023
    %1331 = vmatmul.bf16.gmra.mxu0 %v267
    %v1332 = vpop.f32.mrf.mxu0
    %v1333 = vadd.f32 %v1320, %v1332
    %v1334 = vpop.f32.mrf.mxu0
    %1335 = vdwg.mxu0
    %1336 = vmatpush.bf16.msra.mxu0 0
    %1337 = vmatpush.bf16.msra.mxu0 0
    %1338 = vmatpush.bf16.msra.mxu0 0
    %1339 = vmatpush.bf16.msra.mxu0 0
    %1340 = vmatpush.bf16.msra.mxu0 0
    %1341 = vmatpush.bf16.msra.mxu0 0
    %1342 = vmatpush.bf16.msra.mxu0 0
    %1343 = vmatpush.bf16.msra.mxu0 %v1055
    %1344 = vmatmul.bf16.gmra.mxu0 %v1256
    %v1345 = vpop.f32.mrf.mxu0
    %v1346 = vadd.f32 %v1333, %v1345
    %v1347 = vpop.f32.mrf.mxu0
    %1348 = vdwg.mxu0
    %1349 = vmatpush.bf16.msra.mxu0 %v892
    %1350 = vmatpush.bf16.msra.mxu0 %v888
    %1351 = vmatpush.bf16.msra.mxu0 %v884
    %1352 = vmatpush.bf16.msra.mxu0 %v880
    %1353 = vmatpush.bf16.msra.mxu0 %v876
    %1354 = vmatpush.bf16.msra.mxu0 %v872
    %1355 = vmatpush.bf16.msra.mxu0 %v868
    %1356 = vmatpush.bf16.msra.mxu0 %v864
    %1357 = vmatmul.bf16.gmra.mxu0 %v262
    %v1358 = vpop.f32.mrf.mxu0
    %v1359 = vadd.f32 %v253, %v1358
    %v1360 = vpop.f32.mrf.mxu0
    %1361 = vdwg.mxu0
    %1362 = vmatpush.bf16.msra.mxu0 %v924
    %1363 = vmatpush.bf16.msra.mxu0 %v920
    %1364 = vmatpush.bf16.msra.mxu0 %v916
    %1365 = vmatpush.bf16.msra.mxu0 %v912
    %1366 = vmatpush.bf16.msra.mxu0 %v908
    %1367 = vmatpush.bf16.msra.mxu0 %v904
    %1368 = vmatpush.bf16.msra.mxu0 %v900
    %1369 = vmatpush.bf16.msra.mxu0 %v896
    %1370 = vmatmul.bf16.gmra.mxu0 %v263
    %v1371 = vpop.f32.mrf.mxu0
    %v1372 = vadd.f32 %v1359, %v1371
    %v1373 = vpop.f32.mrf.mxu0
    %1374 = vdwg.mxu0
    %1375 = vmatpush.bf16.msra.mxu0 %v956
    %1376 = vmatpush.bf16.msra.mxu0 %v952
    %1377 = vmatpush.bf16.msra.mxu0 %v948
    %1378 = vmatpush.bf16.msra.mxu0 %v944
    %1379 = vmatpush.bf16.msra.mxu0 %v940
    %1380 = vmatpush.bf16.msra.mxu0 %v936
    %1381 = vmatpush.bf16.msra.mxu0 %v932
    %1382 = vmatpush.bf16.msra.mxu0 %v928
    %1383 = vmatmul.bf16.gmra.mxu0 %v264
    %v1384 = vpop.f32.mrf.mxu0
    %v1385 = vadd.f32 %v1372, %v1384
    %v1386 = vpop.f32.mrf.mxu0
    %1387 = vdwg.mxu0
    %1388 = vmatpush.bf16.msra.mxu0 %v988
    %1389 = vmatpush.bf16.msra.mxu0 %v984
    %1390 = vmatpush.bf16.msra.mxu0 %v980
    %1391 = vmatpush.bf16.msra.mxu0 %v976
    %1392 = vmatpush.bf16.msra.mxu0 %v972
    %1393 = vmatpush.bf16.msra.mxu0 %v968
    %1394 = vmatpush.bf16.msra.mxu0 %v964
    %1395 = vmatpush.bf16.msra.mxu0 %v960
    %1396 = vmatmul.bf16.gmra.mxu0 %v265
    %v1397 = vpop.f32.mrf.mxu0
    %v1398 = vadd.f32 %v1385, %v1397
    %v1399 = vpop.f32.mrf.mxu0
    %1400 = vdwg.mxu0
    %1401 = vmatpush.bf16.msra.mxu0 %v1020
    %1402 = vmatpush.bf16.msra.mxu0 %v1016
    %1403 = vmatpush.bf16.msra.mxu0 %v1012
    %1404 = vmatpush.bf16.msra.mxu0 %v1008
    %1405 = vmatpush.bf16.msra.mxu0 %v1004
    %1406 = vmatpush.bf16.msra.mxu0 %v1000
    %1407 = vmatpush.bf16.msra.mxu0 %v996
    %1408 = vmatpush.bf16.msra.mxu0 %v992
    %1409 = vmatmul.bf16.gmra.mxu0 %v266
    %v1410 = vpop.f32.mrf.mxu0
    %v1411 = vadd.f32 %v1398, %v1410
    %v1412 = vpop.f32.mrf.mxu0
    %1413 = vdwg.mxu0
    %1414 = vmatpush.bf16.msra.mxu0 %v1052
    %1415 = vmatpush.bf16.msra.mxu0 %v1048
    %1416 = vmatpush.bf16.msra.mxu0 %v1044
    %1417 = vmatpush.bf16.msra.mxu0 %v1040
    %1418 = vmatpush.bf16.msra.mxu0 %v1036
    %1419 = vmatpush.bf16.msra.mxu0 %v1032
    %1420 = vmatpush.bf16.msra.mxu0 %v1028
    %1421 = vmatpush.bf16.msra.mxu0 %v1024
    %1422 = vmatmul.bf16.gmra.mxu0 %v267
    %v1423 = vpop.f32.mrf.mxu0
    %v1424 = vadd.f32 %v1411, %v1423
    %v1425 = vpop.f32.mrf.mxu0
    %1426 = vdwg.mxu0
    %1427 = vmatpush.bf16.msra.mxu0 0
    %1428 = vmatpush.bf16.msra.mxu0 0
    %1429 = vmatpush.bf16.msra.mxu0 0
    %1430 = vmatpush.bf16.msra.mxu0 0
    %1431 = vmatpush.bf16.msra.mxu0 0
    %1432 = vmatpush.bf16.msra.mxu0 0
    %1433 = vmatpush.bf16.msra.mxu0 0
    %1434 = vmatpush.bf16.msra.mxu0 %v1056
    %1435 = vmatmul.bf16.gmra.mxu0 %v1256
    %v1436 = vpop.f32.mrf.mxu0
    %v1437 = vadd.f32 %v1424, %v1436
    %v1438 = vpop.f32.mrf.mxu0
    %1439 = vdwg.mxu0
    %1440 = vmatpush.bf16.msra.mxu0 %v893
    %1441 = vmatpush.bf16.msra.mxu0 %v889
    %1442 = vmatpush.bf16.msra.mxu0 %v885
    %1443 = vmatpush.bf16.msra.mxu0 %v881
    %1444 = vmatpush.bf16.msra.mxu0 %v877
    %1445 = vmatpush.bf16.msra.mxu0 %v873
    %1446 = vmatpush.bf16.msra.mxu0 %v869
    %1447 = vmatpush.bf16.msra.mxu0 %v865
    %1448 = vmatmul.bf16.gmra.mxu0 %v262
    %v1449 = vpop.f32.mrf.mxu0
    %v1450 = vadd.f32 %v254, %v1449
    %v1451 = vpop.f32.mrf.mxu0
    %1452 = vdwg.mxu0
    %1453 = vmatpush.bf16.msra.mxu0 %v925
    %1454 = vmatpush.bf16.msra.mxu0 %v921
    %1455 = vmatpush.bf16.msra.mxu0 %v917
    %1456 = vmatpush.bf16.msra.mxu0 %v913
    %1457 = vmatpush.bf16.msra.mxu0 %v909
    %1458 = vmatpush.bf16.msra.mxu0 %v905
    %1459 = vmatpush.bf16.msra.mxu0 %v901
    %1460 = vmatpush.bf16.msra.mxu0 %v897
    %1461 = vmatmul.bf16.gmra.mxu0 %v263
    %v1462 = vpop.f32.mrf.mxu0
    %v1463 = vadd.f32 %v1450, %v1462
    %v1464 = vpop.f32.mrf.mxu0
    %1465 = vdwg.mxu0
    %1466 = vmatpush.bf16.msra.mxu0 %v957
    %1467 = vmatpush.bf16.msra.mxu0 %v953
    %1468 = vmatpush.bf16.msra.mxu0 %v949
    %1469 = vmatpush.bf16.msra.mxu0 %v945
    %1470 = vmatpush.bf16.msra.mxu0 %v941
    %1471 = vmatpush.bf16.msra.mxu0 %v937
    %1472 = vmatpush.bf16.msra.mxu0 %v933
    %1473 = vmatpush.bf16.msra.mxu0 %v929
    %1474 = vmatmul.bf16.gmra.mxu0 %v264
    %v1475 = vpop.f32.mrf.mxu0
    %v1476 = vadd.f32 %v1463, %v1475
    %v1477 = vpop.f32.mrf.mxu0
    %1478 = vdwg.mxu0
    %1479 = vmatpush.bf16.msra.mxu0 %v989
    %1480 = vmatpush.bf16.msra.mxu0 %v985
    %1481 = vmatpush.bf16.msra.mxu0 %v981
    %1482 = vmatpush.bf16.msra.mxu0 %v977
    %1483 = vmatpush.bf16.msra.mxu0 %v973
    %1484 = vmatpush.bf16.msra.mxu0 %v969
    %1485 = vmatpush.bf16.msra.mxu0 %v965
    %1486 = vmatpush.bf16.msra.mxu0 %v961
    %1487 = vmatmul.bf16.gmra.mxu0 %v265
    %v1488 = vpop.f32.mrf.mxu0
    %v1489 = vadd.f32 %v1476, %v1488
    %v1490 = vpop.f32.mrf.mxu0
    %1491 = vdwg.mxu0
    %1492 = vmatpush.bf16.msra.mxu0 %v1021
    %1493 = vmatpush.bf16.msra.mxu0 %v1017
    %1494 = vmatpush.bf16.msra.mxu0 %v1013
    %1495 = vmatpush.bf16.msra.mxu0 %v1009
    %1496 = vmatpush.bf16.msra.mxu0 %v1005
    %1497 = vmatpush.bf16.msra.mxu0 %v1001
    %1498 = vmatpush.bf16.msra.mxu0 %v997
    %1499 = vmatpush.bf16.msra.mxu0 %v993
    %1500 = vmatmul.bf16.gmra.mxu0 %v266
    %v1501 = vpop.f32.mrf.mxu0
    %v1502 = vadd.f32 %v1489, %v1501
    %v1503 = vpop.f32.mrf.mxu0
    %1504 = vdwg.mxu0
    %1505 = vmatpush.bf16.msra.mxu0 %v1053
    %1506 = vmatpush.bf16.msra.mxu0 %v1049
    %1507 = vmatpush.bf16.msra.mxu0 %v1045
    %1508 = vmatpush.bf16.msra.mxu0 %v1041
    %1509 = vmatpush.bf16.msra.mxu0 %v1037
    %1510 = vmatpush.bf16.msra.mxu0 %v1033
    %1511 = vmatpush.bf16.msra.mxu0 %v1029
    %1512 = vmatpush.bf16.msra.mxu0 %v1025
    %1513 = vmatmul.bf16.gmra.mxu0 %v267
    %v1514 = vpop.f32.mrf.mxu0
    %v1515 = vadd.f32 %v1502, %v1514
    %v1516 = vpop.f32.mrf.mxu0
    %1517 = vdwg.mxu0
    %1518 = vmatpush.bf16.msra.mxu0 0
    %1519 = vmatpush.bf16.msra.mxu0 0
    %1520 = vmatpush.bf16.msra.mxu0 0
    %1521 = vmatpush.bf16.msra.mxu0 0
    %1522 = vmatpush.bf16.msra.mxu0 0
    %1523 = vmatpush.bf16.msra.mxu0 0
    %1524 = vmatpush.bf16.msra.mxu0 0
    %1525 = vmatpush.bf16.msra.mxu0 %v1057
    %1526 = vmatmul.bf16.gmra.mxu0 %v1256
    %v1527 = vpop.f32.mrf.mxu0
    %v1528 = vadd.f32 %v1515, %v1527
    %v1529 = vpop.f32.mrf.mxu0
    %1530 = vdwg.mxu0
    %1531 = vmatpush.bf16.msra.mxu0 %v894
    %1532 = vmatpush.bf16.msra.mxu0 %v890
    %1533 = vmatpush.bf16.msra.mxu0 %v886
    %1534 = vmatpush.bf16.msra.mxu0 %v882
    %1535 = vmatpush.bf16.msra.mxu0 %v878
    %1536 = vmatpush.bf16.msra.mxu0 %v874
    %1537 = vmatpush.bf16.msra.mxu0 %v870
    %1538 = vmatpush.bf16.msra.mxu0 %v866
    %1539 = vmatmul.bf16.gmra.mxu0 %v262
    %v1540 = vpop.f32.mrf.mxu0
    %v1541 = vadd.f32 %v255, %v1540
    %v1542 = vpop.f32.mrf.mxu0
    %1543 = vdwg.mxu0
    %1544 = vmatpush.bf16.msra.mxu0 %v926
    %1545 = vmatpush.bf16.msra.mxu0 %v922
    %1546 = vmatpush.bf16.msra.mxu0 %v918
    %1547 = vmatpush.bf16.msra.mxu0 %v914
    %1548 = vmatpush.bf16.msra.mxu0 %v910
    %1549 = vmatpush.bf16.msra.mxu0 %v906
    %1550 = vmatpush.bf16.msra.mxu0 %v902
    %1551 = vmatpush.bf16.msra.mxu0 %v898
    %1552 = vmatmul.bf16.gmra.mxu0 %v263
    %v1553 = vpop.f32.mrf.mxu0
    %v1554 = vadd.f32 %v1541, %v1553
    %v1555 = vpop.f32.mrf.mxu0
    %1556 = vdwg.mxu0
    %1557 = vmatpush.bf16.msra.mxu0 %v958
    %1558 = vmatpush.bf16.msra.mxu0 %v954
    %1559 = vmatpush.bf16.msra.mxu0 %v950
    %1560 = vmatpush.bf16.msra.mxu0 %v946
    %1561 = vmatpush.bf16.msra.mxu0 %v942
    %1562 = vmatpush.bf16.msra.mxu0 %v938
    %1563 = vmatpush.bf16.msra.mxu0 %v934
    %1564 = vmatpush.bf16.msra.mxu0 %v930
    %1565 = vmatmul.bf16.gmra.mxu0 %v264
    %v1566 = vpop.f32.mrf.mxu0
    %v1567 = vadd.f32 %v1554, %v1566
    %v1568 = vpop.f32.mrf.mxu0
    %1569 = vdwg.mxu0
    %1570 = vmatpush.bf16.msra.mxu0 %v990
    %1571 = vmatpush.bf16.msra.mxu0 %v986
    %1572 = vmatpush.bf16.msra.mxu0 %v982
    %1573 = vmatpush.bf16.msra.mxu0 %v978
    %1574 = vmatpush.bf16.msra.mxu0 %v974
    %1575 = vmatpush.bf16.msra.mxu0 %v970
    %1576 = vmatpush.bf16.msra.mxu0 %v966
    %1577 = vmatpush.bf16.msra.mxu0 %v962
    %1578 = vmatmul.bf16.gmra.mxu0 %v265
    %v1579 = vpop.f32.mrf.mxu0
    %v1580 = vadd.f32 %v1567, %v1579
    %v1581 = vpop.f32.mrf.mxu0
    %1582 = vdwg.mxu0
    %1583 = vmatpush.bf16.msra.mxu0 %v1022
    %1584 = vmatpush.bf16.msra.mxu0 %v1018
    %1585 = vmatpush.bf16.msra.mxu0 %v1014
    %1586 = vmatpush.bf16.msra.mxu0 %v1010
    %1587 = vmatpush.bf16.msra.mxu0 %v1006
    %1588 = vmatpush.bf16.msra.mxu0 %v1002
    %1589 = vmatpush.bf16.msra.mxu0 %v998
    %1590 = vmatpush.bf16.msra.mxu0 %v994
    %1591 = vmatmul.bf16.gmra.mxu0 %v266
    %v1592 = vpop.f32.mrf.mxu0
    %v1593 = vadd.f32 %v1580, %v1592
    %v1594 = vpop.f32.mrf.mxu0
    %1595 = vdwg.mxu0
    %1596 = vmatpush.bf16.msra.mxu0 %v1054
    %1597 = vmatpush.bf16.msra.mxu0 %v1050
    %1598 = vmatpush.bf16.msra.mxu0 %v1046
    %1599 = vmatpush.bf16.msra.mxu0 %v1042
    %1600 = vmatpush.bf16.msra.mxu0 %v1038
    %1601 = vmatpush.bf16.msra.mxu0 %v1034
    %1602 = vmatpush.bf16.msra.mxu0 %v1030
    %1603 = vmatpush.bf16.msra.mxu0 %v1026
    %1604 = vmatmul.bf16.gmra.mxu0 %v267
    %v1605 = vpop.f32.mrf.mxu0
    %v1606 = vadd.f32 %v1593, %v1605
    %v1607 = vpop.f32.mrf.mxu0
    %1608 = vdwg.mxu0
    %1609 = vmatpush.bf16.msra.mxu0 0
    %1610 = vmatpush.bf16.msra.mxu0 0
    %1611 = vmatpush.bf16.msra.mxu0 0
    %1612 = vmatpush.bf16.msra.mxu0 0
    %1613 = vmatpush.bf16.msra.mxu0 0
    %1614 = vmatpush.bf16.msra.mxu0 0
    %1615 = vmatpush.bf16.msra.mxu0 0
    %1616 = vmatpush.bf16.msra.mxu0 %v1058
    %1617 = vmatmul.bf16.gmra.mxu0 %v1256
    %v1618 = vpop.f32.mrf.mxu0
    %v1619 = vadd.f32 %v1606, %v1618
    %v1620 = vpop.f32.mrf.mxu0
    %1621 = vdwg.mxu0
    %v1622 = vmax.f32 %v1346, 0.0
    %v1623 = vmax.f32 %v1437, 0.0
    %v1624 = vmax.f32 %v1528, 0.0
    %v1625 = vmax.f32 %v1619, 0.0
    %v1626 = vpack.c.bf16 %v1622, %v1622
    %v1627 = vpack.c.bf16 %v1623, %v1623
    %v1628 = vpack.c.bf16 %v1624, %v1624
    %v1629 = vpack.c.bf16 %v1625, %v1625
    %v1630 = vld [vmem:[%s3] sm:$0xff]
    %v1631 = vld [vmem:[%s3 + $0x8] sm:$0xff]
    %v1632 = vld [vmem:[%s3 + $0x10] sm:$0xff]
    %v1633 = vld [vmem:[%s3 + $0x18] sm:$0xff]
    %v1634 = vld [vmem:[%s3 + $0x20] sm:$0xff]
    %v1635 = vld [vmem:[%s3 + $0x28] sm:$0xff]
    %v1636 = vld [vmem:[%s3 + $0x30] sm:$0xff]
    %v1637 = vld [vmem:[%s3 + $0x38] sm:$0xff]
    %v1638 = vld [vmem:[%s3 + $0x40] sm:$0xff]
    %v1639 = vld [vmem:[%s3 + $0x48] sm:$0xff]
    %v1640 = vld [vmem:[%s3 + $0x50] sm:$0xff]
    %v1641 = vld [vmem:[%s3 + $0x58] sm:$0xff]
    %v1642 = vld [vmem:[%s3 + $0x60] sm:$0xff]
    %v1643 = vld [vmem:[%s3 + $0x68] sm:$0xff]
    %v1644 = vld [vmem:[%s3 + $0x70] sm:$0xff]
    %v1645 = vld [vmem:[%s3 + $0x78] sm:$0xff]
    %v1646 = vld [vmem:[%s3 + $0x80] sm:$0xff]
    %v1647 = vld [vmem:[%s3 + $0x88] sm:$0xff]
    %v1648 = vld [vmem:[%s3 + $0x90] sm:$0xff]
    %v1649 = vld [vmem:[%s3 + $0x98] sm:$0xff]
    %v1650 = vld [vmem:[%s3 + $0xa0] sm:$0xff]
    %v1651 = vld [vmem:[%s3 + $0xa8] sm:$0xff]
    %v1652 = vld [vmem:[%s3 + $0xb0] sm:$0xff]
    %v1653 = vld [vmem:[%s3 + $0xb8] sm:$0xff]
    %v1654 = vld [vmem:[%s3 + $0xc0] sm:$0xff]
    %v1655 = vld [vmem:[%s3 + $0xc8] sm:$0xff]
    %v1656 = vld [vmem:[%s3 + $0xd0] sm:$0xff]
    %v1657 = vld [vmem:[%s3 + $0xd8] sm:$0xff]
    %v1658 = vld [vmem:[%s3 + $0xe0] sm:$0xff]
    %v1659 = vld [vmem:[%s3 + $0xe8] sm:$0xff]
    %v1660 = vld [vmem:[%s3 + $0xf0] sm:$0xff]
    %v1661 = vld [vmem:[%s3 + $0xf8] sm:$0xff]
    %v1662 = vld [vmem:[%s3 + $0x100] sm:$0xff]
    %v1663 = vld [vmem:[%s3 + $0x108] sm:$0xff]
    %v1664 = vld [vmem:[%s3 + $0x110] sm:$0xff]
    %v1665 = vld [vmem:[%s3 + $0x118] sm:$0xff]
    %v1666 = vld [vmem:[%s3 + $0x120] sm:$0xff]
    %v1667 = vld [vmem:[%s3 + $0x128] sm:$0xff]
    %v1668 = vld [vmem:[%s3 + $0x130] sm:$0xff]
    %v1669 = vld [vmem:[%s3 + $0x138] sm:$0xff]
    %v1670 = vld [vmem:[%s3 + $0x140] sm:$0xff]
    %v1671 = vld [vmem:[%s3 + $0x148] sm:$0xff]
    %v1672 = vld [vmem:[%s3 + $0x150] sm:$0xff]
    %v1673 = vld [vmem:[%s3 + $0x158] sm:$0xff]
    %v1674 = vld [vmem:[%s3 + $0x160] sm:$0xff]
    %v1675 = vld [vmem:[%s3 + $0x168] sm:$0xff]
    %v1676 = vld [vmem:[%s3 + $0x170] sm:$0xff]
    %v1677 = vld [vmem:[%s3 + $0x178] sm:$0xff]
    %v1678 = vld [vmem:[%s3 + $0x180] sm:$0xff]
    %v1679 = vld [vmem:[%s3 + $0x188] sm:$0xff]
    %v1680 = vld [vmem:[%s3 + $0x190] sm:$0xff]
    %v1681 = vld [vmem:[%s3 + $0x198] sm:$0xff]
    %v1682 = vld [vmem:[%s3 + $0x1a0] sm:$0xff]
    %v1683 = vld [vmem:[%s3 + $0x1a8] sm:$0xff]
    %v1684 = vld [vmem:[%s3 + $0x1b0] sm:$0xff]
    %v1685 = vld [vmem:[%s3 + $0x1b8] sm:$0xff]
    %v1686 = vld [vmem:[%s3 + $0x1c0] sm:$0xff]
    %v1687 = vld [vmem:[%s3 + $0x1c8] sm:$0xff]
    %v1688 = vld [vmem:[%s3 + $0x1d0] sm:$0xff]
    %v1689 = vld [vmem:[%s3 + $0x1d8] sm:$0xff]
    %v1690 = vld [vmem:[%s3 + $0x1e0] sm:$0xff]
    %v1691 = vld [vmem:[%s3 + $0x1e8] sm:$0xff]
    %v1692 = vld [vmem:[%s3 + $0x1f0] sm:$0xff]
    %v1693 = vld [vmem:[%s3 + $0x1f8] sm:$0xff]
    %v1694 = vld [vmem:[%s4] sm:$0x3]
    %v1696 = vperm.slane %v1694, 0
    %v1697 = vperm.slane %v1694, 1
    %v1764 = vunpack.c.l.b16 %v1630
    %v1765 = vunpack.c.h.b16 %v1630
    %v1766 = vunpack.c.l.b16 %v1631
    %v1767 = vunpack.c.h.b16 %v1631
    %v1768 = vunpack.c.l.b16 %v1632
    %v1769 = vunpack.c.h.b16 %v1632
    %v1770 = vunpack.c.l.b16 %v1633
    %v1771 = vunpack.c.h.b16 %v1633
    %v1772 = vunpack.c.l.b16 %v1634
    %v1773 = vunpack.c.h.b16 %v1634
    %v1774 = vunpack.c.l.b16 %v1635
    %v1775 = vunpack.c.h.b16 %v1635
    %v1776 = vunpack.c.l.b16 %v1636
    %v1777 = vunpack.c.h.b16 %v1636
    %v1778 = vunpack.c.l.b16 %v1637
    %v1779 = vunpack.c.h.b16 %v1637
    %v1780 = vunpack.c.l.b16 %v1638
    %v1781 = vunpack.c.h.b16 %v1638
    %v1782 = vunpack.c.l.b16 %v1639
    %v1783 = vunpack.c.h.b16 %v1639
    %v1784 = vunpack.c.l.b16 %v1640
    %v1785 = vunpack.c.h.b16 %v1640
    %v1786 = vunpack.c.l.b16 %v1641
    %v1787 = vunpack.c.h.b16 %v1641
    %v1788 = vunpack.c.l.b16 %v1642
    %v1789 = vunpack.c.h.b16 %v1642
    %v1790 = vunpack.c.l.b16 %v1643
    %v1791 = vunpack.c.h.b16 %v1643
    %v1792 = vunpack.c.l.b16 %v1644
    %v1793 = vunpack.c.h.b16 %v1644
    %v1794 = vunpack.c.l.b16 %v1645
    %v1795 = vunpack.c.h.b16 %v1645
    %v1796 = vunpack.c.l.b16 %v1646
    %v1797 = vunpack.c.h.b16 %v1646
    %v1798 = vunpack.c.l.b16 %v1647
    %v1799 = vunpack.c.h.b16 %v1647
    %v1800 = vunpack.c.l.b16 %v1648
    %v1801 = vunpack.c.h.b16 %v1648
    %v1802 = vunpack.c.l.b16 %v1649
    %v1803 = vunpack.c.h.b16 %v1649
    %v1804 = vunpack.c.l.b16 %v1650
    %v1805 = vunpack.c.h.b16 %v1650
    %v1806 = vunpack.c.l.b16 %v1651
    %v1807 = vunpack.c.h.b16 %v1651
    %v1808 = vunpack.c.l.b16 %v1652
    %v1809 = vunpack.c.h.b16 %v1652
    %v1810 = vunpack.c.l.b16 %v1653
    %v1811 = vunpack.c.h.b16 %v1653
    %v1812 = vunpack.c.l.b16 %v1654
    %v1813 = vunpack.c.h.b16 %v1654
    %v1814 = vunpack.c.l.b16 %v1655
    %v1815 = vunpack.c.h.b16 %v1655
    %v1816 = vunpack.c.l.b16 %v1656
    %v1817 = vunpack.c.h.b16 %v1656
    %v1818 = vunpack.c.l.b16 %v1657
    %v1819 = vunpack.c.h.b16 %v1657
    %v1820 = vunpack.c.l.b16 %v1658
    %v1821 = vunpack.c.h.b16 %v1658
    %v1822 = vunpack.c.l.b16 %v1659
    %v1823 = vunpack.c.h.b16 %v1659
    %v1824 = vunpack.c.l.b16 %v1660
    %v1825 = vunpack.c.h.b16 %v1660
    %v1826 = vunpack.c.l.b16 %v1661
    %v1827 = vunpack.c.h.b16 %v1661
    %v1828 = vunpack.c.l.b16 %v1662
    %v1829 = vunpack.c.h.b16 %v1662
    %v1830 = vunpack.c.l.b16 %v1663
    %v1831 = vunpack.c.h.b16 %v1663
    %v1832 = vunpack.c.l.b16 %v1664
    %v1833 = vunpack.c.h.b16 %v1664
    %v1834 = vunpack.c.l.b16 %v1665
    %v1835 = vunpack.c.h.b16 %v1665
    %v1836 = vunpack.c.l.b16 %v1666
    %v1837 = vunpack.c.h.b16 %v1666
    %v1838 = vunpack.c.l.b16 %v1667
    %v1839 = vunpack.c.h.b16 %v1667
    %v1840 = vunpack.c.l.b16 %v1668
    %v1841 = vunpack.c.h.b16 %v1668
    %v1842 = vunpack.c.l.b16 %v1669
    %v1843 = vunpack.c.h.b16 %v1669
    %v1844 = vunpack.c.l.b16 %v1670
    %v1845 = vunpack.c.h.b16 %v1670
    %v1846 = vunpack.c.l.b16 %v1671
    %v1847 = vunpack.c.h.b16 %v1671
    %v1848 = vunpack.c.l.b16 %v1672
    %v1849 = vunpack.c.h.b16 %v1672
    %v1850 = vunpack.c.l.b16 %v1673
    %v1851 = vunpack.c.h.b16 %v1673
    %v1852 = vunpack.c.l.b16 %v1674
    %v1853 = vunpack.c.h.b16 %v1674
    %v1854 = vunpack.c.l.b16 %v1675
    %v1855 = vunpack.c.h.b16 %v1675
    %v1856 = vunpack.c.l.b16 %v1676
    %v1857 = vunpack.c.h.b16 %v1676
    %v1858 = vunpack.c.l.b16 %v1677
    %v1859 = vunpack.c.h.b16 %v1677
    %v1860 = vunpack.c.l.b16 %v1678
    %v1861 = vunpack.c.h.b16 %v1678
    %v1862 = vunpack.c.l.b16 %v1679
    %v1863 = vunpack.c.h.b16 %v1679
    %v1864 = vunpack.c.l.b16 %v1680
    %v1865 = vunpack.c.h.b16 %v1680
    %v1866 = vunpack.c.l.b16 %v1681
    %v1867 = vunpack.c.h.b16 %v1681
    %v1868 = vunpack.c.l.b16 %v1682
    %v1869 = vunpack.c.h.b16 %v1682
    %v1870 = vunpack.c.l.b16 %v1683
    %v1871 = vunpack.c.h.b16 %v1683
    %v1872 = vunpack.c.l.b16 %v1684
    %v1873 = vunpack.c.h.b16 %v1684
    %v1874 = vunpack.c.l.b16 %v1685
    %v1875 = vunpack.c.h.b16 %v1685
    %v1876 = vunpack.c.l.b16 %v1686
    %v1877 = vunpack.c.h.b16 %v1686
    %v1878 = vunpack.c.l.b16 %v1687
    %v1879 = vunpack.c.h.b16 %v1687
    %v1880 = vunpack.c.l.b16 %v1688
    %v1881 = vunpack.c.h.b16 %v1688
    %v1882 = vunpack.c.l.b16 %v1689
    %v1883 = vunpack.c.h.b16 %v1689
    %v1884 = vunpack.c.l.b16 %v1690
    %v1885 = vunpack.c.h.b16 %v1690
    %v1886 = vunpack.c.l.b16 %v1691
    %v1887 = vunpack.c.h.b16 %v1691
    %v1888 = vunpack.c.l.b16 %v1692
    %v1889 = vunpack.c.h.b16 %v1692
    %v1890 = vunpack.c.l.b16 %v1693
    %v1891 = vunpack.c.h.b16 %v1693
    %v1892 = vpack.c.b16 %v1766, %v1764
    %v1893 = vpack.c.b16 %v1767, %v1765
    %v1894 = vpack.c.b16 %v1770, %v1768
    %v1895 = vpack.c.b16 %v1771, %v1769
    %v1896 = vpack.c.b16 %v1774, %v1772
    %v1897 = vpack.c.b16 %v1775, %v1773
    %v1898 = vpack.c.b16 %v1778, %v1776
    %v1899 = vpack.c.b16 %v1779, %v1777
    %v1900 = vpack.c.b16 %v1782, %v1780
    %v1901 = vpack.c.b16 %v1783, %v1781
    %v1902 = vpack.c.b16 %v1786, %v1784
    %v1903 = vpack.c.b16 %v1787, %v1785
    %v1904 = vpack.c.b16 %v1790, %v1788
    %v1905 = vpack.c.b16 %v1791, %v1789
    %v1906 = vpack.c.b16 %v1794, %v1792
    %v1907 = vpack.c.b16 %v1795, %v1793
    %v1908 = vpack.c.b16 %v1798, %v1796
    %v1909 = vpack.c.b16 %v1799, %v1797
    %v1910 = vpack.c.b16 %v1802, %v1800
    %v1911 = vpack.c.b16 %v1803, %v1801
    %v1912 = vpack.c.b16 %v1806, %v1804
    %v1913 = vpack.c.b16 %v1807, %v1805
    %v1914 = vpack.c.b16 %v1810, %v1808
    %v1915 = vpack.c.b16 %v1811, %v1809
    %v1916 = vpack.c.b16 %v1814, %v1812
    %v1917 = vpack.c.b16 %v1815, %v1813
    %v1918 = vpack.c.b16 %v1818, %v1816
    %v1919 = vpack.c.b16 %v1819, %v1817
    %v1920 = vpack.c.b16 %v1822, %v1820
    %v1921 = vpack.c.b16 %v1823, %v1821
    %v1922 = vpack.c.b16 %v1826, %v1824
    %v1923 = vpack.c.b16 %v1827, %v1825
    %v1924 = vpack.c.b16 %v1830, %v1828
    %v1925 = vpack.c.b16 %v1831, %v1829
    %v1926 = vpack.c.b16 %v1834, %v1832
    %v1927 = vpack.c.b16 %v1835, %v1833
    %v1928 = vpack.c.b16 %v1838, %v1836
    %v1929 = vpack.c.b16 %v1839, %v1837
    %v1930 = vpack.c.b16 %v1842, %v1840
    %v1931 = vpack.c.b16 %v1843, %v1841
    %v1932 = vpack.c.b16 %v1846, %v1844
    %v1933 = vpack.c.b16 %v1847, %v1845
    %v1934 = vpack.c.b16 %v1850, %v1848
    %v1935 = vpack.c.b16 %v1851, %v1849
    %v1936 = vpack.c.b16 %v1854, %v1852
    %v1937 = vpack.c.b16 %v1855, %v1853
    %v1938 = vpack.c.b16 %v1858, %v1856
    %v1939 = vpack.c.b16 %v1859, %v1857
    %v1940 = vpack.c.b16 %v1862, %v1860
    %v1941 = vpack.c.b16 %v1863, %v1861
    %v1942 = vpack.c.b16 %v1866, %v1864
    %v1943 = vpack.c.b16 %v1867, %v1865
    %v1944 = vpack.c.b16 %v1870, %v1868
    %v1945 = vpack.c.b16 %v1871, %v1869
    %v1946 = vpack.c.b16 %v1874, %v1872
    %v1947 = vpack.c.b16 %v1875, %v1873
    %v1948 = vpack.c.b16 %v1878, %v1876
    %v1949 = vpack.c.b16 %v1879, %v1877
    %v1950 = vpack.c.b16 %v1882, %v1880
    %v1951 = vpack.c.b16 %v1883, %v1881
    %v1952 = vpack.c.b16 %v1886, %v1884
    %v1953 = vpack.c.b16 %v1887, %v1885
    %v1954 = vpack.c.b16 %v1890, %v1888
    %v1955 = vpack.c.b16 %v1891, %v1889
    %2020 = vmatpush.bf16.msra.mxu0 %v1906
    %2021 = vmatpush.bf16.msra.mxu0 %v1904
    %2022 = vmatpush.bf16.msra.mxu0 %v1902
    %2023 = vmatpush.bf16.msra.mxu0 %v1900
    %2024 = vmatpush.bf16.msra.mxu0 %v1898
    %2025 = vmatpush.bf16.msra.mxu0 %v1896
    %2026 = vmatpush.bf16.msra.mxu0 %v1894
    %2027 = vmatpush.bf16.msra.mxu0 %v1892
    %2028 = vmatmul.bf16.gmra.mxu0 %v1626
    %v2029 = vpop.f32.mrf.mxu0
    %v2030 = vadd.f32 %v1696, %v2029
    %v2031 = vpop.f32.mrf.mxu0
    %2032 = vdwg.mxu0
    %2033 = vmatpush.bf16.msra.mxu0 %v1922
    %2034 = vmatpush.bf16.msra.mxu0 %v1920
    %2035 = vmatpush.bf16.msra.mxu0 %v1918
    %2036 = vmatpush.bf16.msra.mxu0 %v1916
    %2037 = vmatpush.bf16.msra.mxu0 %v1914
    %2038 = vmatpush.bf16.msra.mxu0 %v1912
    %2039 = vmatpush.bf16.msra.mxu0 %v1910
    %2040 = vmatpush.bf16.msra.mxu0 %v1908
    %2041 = vmatmul.bf16.gmra.mxu0 %v1627
    %v2042 = vpop.f32.mrf.mxu0
    %v2043 = vadd.f32 %v2030, %v2042
    %v2044 = vpop.f32.mrf.mxu0
    %2045 = vdwg.mxu0
    %2046 = vmatpush.bf16.msra.mxu0 %v1938
    %2047 = vmatpush.bf16.msra.mxu0 %v1936
    %2048 = vmatpush.bf16.msra.mxu0 %v1934
    %2049 = vmatpush.bf16.msra.mxu0 %v1932
    %2050 = vmatpush.bf16.msra.mxu0 %v1930
    %2051 = vmatpush.bf16.msra.mxu0 %v1928
    %2052 = vmatpush.bf16.msra.mxu0 %v1926
    %2053 = vmatpush.bf16.msra.mxu0 %v1924
    %2054 = vmatmul.bf16.gmra.mxu0 %v1628
    %v2055 = vpop.f32.mrf.mxu0
    %v2056 = vadd.f32 %v2043, %v2055
    %v2057 = vpop.f32.mrf.mxu0
    %2058 = vdwg.mxu0
    %2059 = vmatpush.bf16.msra.mxu0 %v1954
    %2060 = vmatpush.bf16.msra.mxu0 %v1952
    %2061 = vmatpush.bf16.msra.mxu0 %v1950
    %2062 = vmatpush.bf16.msra.mxu0 %v1948
    %2063 = vmatpush.bf16.msra.mxu0 %v1946
    %2064 = vmatpush.bf16.msra.mxu0 %v1944
    %2065 = vmatpush.bf16.msra.mxu0 %v1942
    %2066 = vmatpush.bf16.msra.mxu0 %v1940
    %2067 = vmatmul.bf16.gmra.mxu0 %v1629
    %v2068 = vpop.f32.mrf.mxu0
    %v2069 = vadd.f32 %v2056, %v2068
    %v2070 = vpop.f32.mrf.mxu0
    %2071 = vdwg.mxu0
    %2072 = vmatpush.bf16.msra.mxu0 %v1907
    %2073 = vmatpush.bf16.msra.mxu0 %v1905
    %2074 = vmatpush.bf16.msra.mxu0 %v1903
    %2075 = vmatpush.bf16.msra.mxu0 %v1901
    %2076 = vmatpush.bf16.msra.mxu0 %v1899
    %2077 = vmatpush.bf16.msra.mxu0 %v1897
    %2078 = vmatpush.bf16.msra.mxu0 %v1895
    %2079 = vmatpush.bf16.msra.mxu0 %v1893
    %2080 = vmatmul.bf16.gmra.mxu0 %v1626
    %v2081 = vpop.f32.mrf.mxu0
    %v2082 = vadd.f32 %v1697, %v2081
    %v2083 = vpop.f32.mrf.mxu0
    %2084 = vdwg.mxu0
    %2085 = vmatpush.bf16.msra.mxu0 %v1923
    %2086 = vmatpush.bf16.msra.mxu0 %v1921
    %2087 = vmatpush.bf16.msra.mxu0 %v1919
    %2088 = vmatpush.bf16.msra.mxu0 %v1917
    %2089 = vmatpush.bf16.msra.mxu0 %v1915
    %2090 = vmatpush.bf16.msra.mxu0 %v1913
    %2091 = vmatpush.bf16.msra.mxu0 %v1911
    %2092 = vmatpush.bf16.msra.mxu0 %v1909
    %2093 = vmatmul.bf16.gmra.mxu0 %v1627
    %v2094 = vpop.f32.mrf.mxu0
    %v2095 = vadd.f32 %v2082, %v2094
    %v2096 = vpop.f32.mrf.mxu0
    %2097 = vdwg.mxu0
    %2098 = vmatpush.bf16.msra.mxu0 %v1939
    %2099 = vmatpush.bf16.msra.mxu0 %v1937
    %2100 = vmatpush.bf16.msra.mxu0 %v1935
    %2101 = vmatpush.bf16.msra.mxu0 %v1933
    %2102 = vmatpush.bf16.msra.mxu0 %v1931
    %2103 = vmatpush.bf16.msra.mxu0 %v1929
    %2104 = vmatpush.bf16.msra.mxu0 %v1927
    %2105 = vmatpush.bf16.msra.mxu0 %v1925
    %2106 = vmatmul.bf16.gmra.mxu0 %v1628
    %v2107 = vpop.f32.mrf.mxu0
    %v2108 = vadd.f32 %v2095, %v2107
    %v2109 = vpop.f32.mrf.mxu0
    %2110 = vdwg.mxu0
    %2111 = vmatpush.bf16.msra.mxu0 %v1955
    %2112 = vmatpush.bf16.msra.mxu0 %v1953
    %2113 = vmatpush.bf16.msra.mxu0 %v1951
    %2114 = vmatpush.bf16.msra.mxu0 %v1949
    %2115 = vmatpush.bf16.msra.mxu0 %v1947
    %2116 = vmatpush.bf16.msra.mxu0 %v1945
    %2117 = vmatpush.bf16.msra.mxu0 %v1943
    %2118 = vmatpush.bf16.msra.mxu0 %v1941
    %2119 = vmatmul.bf16.gmra.mxu0 %v1629
    %v2120 = vpop.f32.mrf.mxu0
    %v2121 = vadd.f32 %v2108, %v2120
    %v2122 = vpop.f32.mrf.mxu0
    %2123 = vdwg.mxu0
    %v2124 = vmax.f32 %v2069, 0.0
    %v2125 = vmax.f32 %v2121, 0.0
    %v2126 = vpack.c.bf16 %v2124, %v2124
    %v2127 = vpack.c.bf16 %v2125, %v2125
    %v2128 = vld [vmem:[%s5] sm:$0xf]
    %v2129 = vld [vmem:[%s5 + $0x4] sm:$0xf]
    %v2130 = vld [vmem:[%s5 + $0x8] sm:$0xf]
    %v2131 = vld [vmem:[%s5 + $0xc] sm:$0xf]
    %v2132 = vld [vmem:[%s5 + $0x10] sm:$0xf]
    %v2133 = vld [vmem:[%s5 + $0x14] sm:$0xf]
    %v2134 = vld [vmem:[%s5 + $0x18] sm:$0xf]
    %v2135 = vld [vmem:[%s5 + $0x1c] sm:$0xf]
    %v2136 = vld [vmem:[%s5 + $0x20] sm:$0xf]
    %v2137 = vld [vmem:[%s5 + $0x24] sm:$0xf]
    %v2138 = vld [vmem:[%s5 + $0x28] sm:$0xf]
    %v2139 = vld [vmem:[%s5 + $0x2c] sm:$0xf]
    %v2140 = vld [vmem:[%s5 + $0x30] sm:$0xf]
    %v2141 = vld [vmem:[%s5 + $0x34] sm:$0xf]
    %v2142 = vld [vmem:[%s5 + $0x38] sm:$0xf]
    %v2143 = vld [vmem:[%s5 + $0x3c] sm:$0xf]
    %v2144 = vld [vmem:[%s5 + $0x40] sm:$0xf]
    %v2145 = vld [vmem:[%s5 + $0x44] sm:$0xf]
    %v2146 = vld [vmem:[%s5 + $0x48] sm:$0xf]
    %v2147 = vld [vmem:[%s5 + $0x4c] sm:$0xf]
    %v2148 = vld [vmem:[%s5 + $0x50] sm:$0xf]
    %v2149 = vld [vmem:[%s5 + $0x54] sm:$0xf]
    %v2150 = vld [vmem:[%s5 + $0x58] sm:$0xf]
    %v2151 = vld [vmem:[%s5 + $0x5c] sm:$0xf]
    %v2152 = vld [vmem:[%s5 + $0x60] sm:$0xf]
    %v2153 = vld [vmem:[%s5 + $0x64] sm:$0xf]
    %v2154 = vld [vmem:[%s5 + $0x68] sm:$0xf]
    %v2155 = vld [vmem:[%s5 + $0x6c] sm:$0xf]
    %v2156 = vld [vmem:[%s5 + $0x70] sm:$0xf]
    %v2157 = vld [vmem:[%s5 + $0x74] sm:$0xf]
    %v2158 = vld [vmem:[%s5 + $0x78] sm:$0xf]
    %v2159 = vld [vmem:[%s5 + $0x7c] sm:$0xf]
    %v2160 = vld [vmem:[%s6] sm:$0x1]
    %v2162 = vperm.slane %v2160, 0
    %v2196 = vunpack.c.l.b16 %v2128
    %v2197 = vunpack.c.l.b16 %v2129
    %v2198 = vunpack.c.l.b16 %v2130
    %v2199 = vunpack.c.l.b16 %v2131
    %v2200 = vunpack.c.l.b16 %v2132
    %v2201 = vunpack.c.l.b16 %v2133
    %v2202 = vunpack.c.l.b16 %v2134
    %v2203 = vunpack.c.l.b16 %v2135
    %v2204 = vunpack.c.l.b16 %v2136
    %v2205 = vunpack.c.l.b16 %v2137
    %v2206 = vunpack.c.l.b16 %v2138
    %v2207 = vunpack.c.l.b16 %v2139
    %v2208 = vunpack.c.l.b16 %v2140
    %v2209 = vunpack.c.l.b16 %v2141
    %v2210 = vunpack.c.l.b16 %v2142
    %v2211 = vunpack.c.l.b16 %v2143
    %v2212 = vunpack.c.l.b16 %v2144
    %v2213 = vunpack.c.l.b16 %v2145
    %v2214 = vunpack.c.l.b16 %v2146
    %v2215 = vunpack.c.l.b16 %v2147
    %v2216 = vunpack.c.l.b16 %v2148
    %v2217 = vunpack.c.l.b16 %v2149
    %v2218 = vunpack.c.l.b16 %v2150
    %v2219 = vunpack.c.l.b16 %v2151
    %v2220 = vunpack.c.l.b16 %v2152
    %v2221 = vunpack.c.l.b16 %v2153
    %v2222 = vunpack.c.l.b16 %v2154
    %v2223 = vunpack.c.l.b16 %v2155
    %v2224 = vunpack.c.l.b16 %v2156
    %v2225 = vunpack.c.l.b16 %v2157
    %v2226 = vunpack.c.l.b16 %v2158
    %v2227 = vunpack.c.l.b16 %v2159
    %v2228 = vpack.c.b16 %v2197, %v2196
    %v2229 = vpack.c.b16 %v2199, %v2198
    %v2230 = vpack.c.b16 %v2201, %v2200
    %v2231 = vpack.c.b16 %v2203, %v2202
    %v2232 = vpack.c.b16 %v2205, %v2204
    %v2233 = vpack.c.b16 %v2207, %v2206
    %v2234 = vpack.c.b16 %v2209, %v2208
    %v2235 = vpack.c.b16 %v2211, %v2210
    %v2236 = vpack.c.b16 %v2213, %v2212
    %v2237 = vpack.c.b16 %v2215, %v2214
    %v2238 = vpack.c.b16 %v2217, %v2216
    %v2239 = vpack.c.b16 %v2219, %v2218
    %v2240 = vpack.c.b16 %v2221, %v2220
    %v2241 = vpack.c.b16 %v2223, %v2222
    %v2242 = vpack.c.b16 %v2225, %v2224
    %v2243 = vpack.c.b16 %v2227, %v2226
    %2260 = vmatpush.bf16.msra.mxu0 %v2235
    %2261 = vmatpush.bf16.msra.mxu0 %v2234
    %2262 = vmatpush.bf16.msra.mxu0 %v2233
    %2263 = vmatpush.bf16.msra.mxu0 %v2232
    %2264 = vmatpush.bf16.msra.mxu0 %v2231
    %2265 = vmatpush.bf16.msra.mxu0 %v2230
    %2266 = vmatpush.bf16.msra.mxu0 %v2229
    %2267 = vmatpush.bf16.msra.mxu0 %v2228
    %2268 = vmatmul.bf16.gmra.mxu0 %v2126
    %v2269 = vpop.f32.mrf.mxu0
    %v2270 = vadd.f32 %v2162, %v2269
    %v2271 = vpop.f32.mrf.mxu0
    %2272 = vdwg.mxu0
    %2273 = vmatpush.bf16.msra.mxu0 %v2243
    %2274 = vmatpush.bf16.msra.mxu0 %v2242
    %2275 = vmatpush.bf16.msra.mxu0 %v2241
    %2276 = vmatpush.bf16.msra.mxu0 %v2240
    %2277 = vmatpush.bf16.msra.mxu0 %v2239
    %2278 = vmatpush.bf16.msra.mxu0 %v2238
    %2279 = vmatpush.bf16.msra.mxu0 %v2237
    %2280 = vmatpush.bf16.msra.mxu0 %v2236
    %2281 = vmatmul.bf16.gmra.mxu0 %v2127
    %v2282 = vpop.f32.mrf.mxu0
    %v2283 = vadd.f32 %v2270, %v2282
    %v2284 = vpop.f32.mrf.mxu0
    %2285 = vdwg.mxu0
    %v2286 = vlaneseq
    %v2287 = vand.u32 %v2286, 127
    %vm2288 = vcmp.ge.s32.totalorder %v2287, 0
    %vm2289 = vcmp.lt.s32.totalorder %v2287, 10
    %vm2290 = vmand %vm2288, %vm2289
    %vm2291 = vcmp.ge.s32.totalorder %v2287, 10
    %vm2292 = vcmp.lt.s32.totalorder %v2287, 20
    %vm2293 = vmand %vm2291, %vm2292
    %vm2294 = vcmp.ge.s32.totalorder %v2287, 20
    %vm2295 = vcmp.lt.s32.totalorder %v2287, 30
    %vm2296 = vmand %vm2294, %vm2295
    %vm2297 = vcmp.ge.s32.totalorder %v2287, 30
    %vm2298 = vcmp.lt.s32.totalorder %v2287, 40
    %vm2299 = vmand %vm2297, %vm2298
    %vm2300 = vcmp.ge.s32.totalorder %v2287, 40
    %vm2301 = vcmp.lt.s32.totalorder %v2287, 50
    %vm2302 = vmand %vm2300, %vm2301
    %vm2303 = vcmp.ge.s32.totalorder %v2287, 50
    %vm2304 = vcmp.lt.s32.totalorder %v2287, 60
    %vm2305 = vmand %vm2303, %vm2304
    %vm2306 = vcmp.ge.s32.totalorder %v2287, 60
    %vm2307 = vcmp.lt.s32.totalorder %v2287, 70
    %vm2308 = vmand %vm2306, %vm2307
    %vm2309 = vcmp.ge.s32.totalorder %v2287, 70
    %vm2310 = vcmp.lt.s32.totalorder %v2287, 80
    %vm2311 = vmand %vm2309, %vm2310
    %v2312 = vsel %vm2290, %v2283, -1e+30
    %vm2313 = vcmask 648192
    %v2314 = vsel %vm2313, %v2312, -inf
    %2315 = vmax.xlane.f32.xlu0 %v2314
    %v2316 = vpop.xlane.xlu0 %2315
    %v2317 = vsel %vm2290, %v2316, -1e+30
    %v2318 = vsel %vm2293, %v2283, -1e+30
    %v2319 = vsel %vm2313, %v2318, -inf
    %2320 = vmax.xlane.f32.xlu0 %v2319
    %v2321 = vpop.xlane.xlu0 %2320
    %v2322 = vsel %vm2293, %v2321, %v2317
    %v2323 = vsel %vm2296, %v2283, -1e+30
    %v2324 = vsel %vm2313, %v2323, -inf
    %2325 = vmax.xlane.f32.xlu0 %v2324
    %v2326 = vpop.xlane.xlu0 %2325
    %v2327 = vsel %vm2296, %v2326, %v2322
    %v2328 = vsel %vm2299, %v2283, -1e+30
    %v2329 = vsel %vm2313, %v2328, -inf
    %2330 = vmax.xlane.f32.xlu0 %v2329
    %v2331 = vpop.xlane.xlu0 %2330
    %v2332 = vsel %vm2299, %v2331, %v2327
    %v2333 = vsel %vm2302, %v2283, -1e+30
    %v2334 = vsel %vm2313, %v2333, -inf
    %2335 = vmax.xlane.f32.xlu0 %v2334
    %v2336 = vpop.xlane.xlu0 %2335
    %v2337 = vsel %vm2302, %v2336, %v2332
    %v2338 = vsel %vm2305, %v2283, -1e+30
    %v2339 = vsel %vm2313, %v2338, -inf
    %2340 = vmax.xlane.f32.xlu0 %v2339
    %v2341 = vpop.xlane.xlu0 %2340
    %v2342 = vsel %vm2305, %v2341, %v2337
    %v2343 = vsel %vm2308, %v2283, -1e+30
    %v2344 = vsel %vm2313, %v2343, -inf
    %2345 = vmax.xlane.f32.xlu0 %v2344
    %v2346 = vpop.xlane.xlu0 %2345
    %v2347 = vsel %vm2308, %v2346, %v2342
    %v2348 = vsel %vm2311, %v2283, -1e+30
    %v2349 = vsel %vm2313, %v2348, -inf
    %2350 = vmax.xlane.f32.xlu0 %v2349
    %v2351 = vpop.xlane.xlu0 %2350
    %v2352 = vsel %vm2311, %v2351, %v2347
    %v2353 = vsub.f32 %v2283, %v2352
    %v2354 = vmul.f32 %v2353, 1.442695
    %v2355 = vpow.pop %v2354
    %v2356 = vsel %vm2290, %v2355, 0.0
    %v2357 = vsel %vm2313, %v2356, 0.0
    %2358 = vadd.xlane.f32.xlu0 %v2357
    %v2359 = vpop.xlane.xlu0 %2358
    %v2360 = vsel %vm2290, %v2359, 0.0
    %v2361 = vsel %vm2293, %v2355, 0.0
    %v2362 = vsel %vm2313, %v2361, 0.0
    %2363 = vadd.xlane.f32.xlu0 %v2362
    %v2364 = vpop.xlane.xlu0 %2363
    %v2365 = vsel %vm2293, %v2364, %v2360
    %v2366 = vsel %vm2296, %v2355, 0.0
    %v2367 = vsel %vm2313, %v2366, 0.0
    %2368 = vadd.xlane.f32.xlu0 %v2367
    %v2369 = vpop.xlane.xlu0 %2368
    %v2370 = vsel %vm2296, %v2369, %v2365
    %v2371 = vsel %vm2299, %v2355, 0.0
    %v2372 = vsel %vm2313, %v2371, 0.0
    %2373 = vadd.xlane.f32.xlu0 %v2372
    %v2374 = vpop.xlane.xlu0 %2373
    %v2375 = vsel %vm2299, %v2374, %v2370
    %v2376 = vsel %vm2302, %v2355, 0.0
    %v2377 = vsel %vm2313, %v2376, 0.0
    %2378 = vadd.xlane.f32.xlu0 %v2377
    %v2379 = vpop.xlane.xlu0 %2378
    %v2380 = vsel %vm2302, %v2379, %v2375
    %v2381 = vsel %vm2305, %v2355, 0.0
    %v2382 = vsel %vm2313, %v2381, 0.0
    %2383 = vadd.xlane.f32.xlu0 %v2382
    %v2384 = vpop.xlane.xlu0 %2383
    %v2385 = vsel %vm2305, %v2384, %v2380
    %v2386 = vsel %vm2308, %v2355, 0.0
    %v2387 = vsel %vm2313, %v2386, 0.0
    %2388 = vadd.xlane.f32.xlu0 %v2387
    %v2389 = vpop.xlane.xlu0 %2388
    %v2390 = vsel %vm2308, %v2389, %v2385
    %v2391 = vsel %vm2311, %v2355, 0.0
    %v2392 = vsel %vm2313, %v2391, 0.0
    %2393 = vadd.xlane.f32.xlu0 %v2392
    %v2394 = vpop.xlane.xlu0 %2393
    %v2395 = vsel %vm2311, %v2394, %v2390
    %v2396 = vrcp.pop %v2395
    %v2397 = vmul.f32 %v2395, %v2396
    %v2398 = vsub.f32 1.0, %v2397
    %v2399 = vmul.f32 %v2396, %v2398
    %v2400 = vadd.f32 %v2396, %v2399
    %vm2401 = vweird.f32 %v2395
    %vm2402 = vweird.f32 %v2396
    %vm2403 = vmor %vm2401, %vm2402
    %v2404 = vsel %vm2403, %v2396, %v2400
    %v2405 = vand.u32 2147483647, %v2395
    %vm2406 = vcmp.eq.f32.partialorder %v2405, 8.507059e+37
    %v2407 = vand.u32 %v2395, 2147483648
    %v2408 = vor.u32 1.1754944e-38, %v2407
    %v2409 = vsel %vm2406, %v2408, %v2404
    %v2410 = vmul.f32 %v2355, %v2409
    %2411 = vst.msk [vmem:[#allocation2] sm:$0x3] %vm2313, %v2410
    %v2412 = vld [vmem:[%s13] sm:$0x1]
    %v2414 = vperm.slane %v2412, 0
    %v2416 = vadd.f32 %v2283, %v2414
    %v2417 = vsel %vm2290, %v2416, -1e+30
    %v2418 = vsel %vm2313, %v2417, -inf
    %2419 = vmax.xlane.f32.xlu0 %v2418
    %v2420 = vpop.xlane.xlu0 %2419
    %v2421 = vsel %vm2290, %v2420, -1e+30
    %v2422 = vsel %vm2293, %v2416, -1e+30
    %v2423 = vsel %vm2313, %v2422, -inf
    %2424 = vmax.xlane.f32.xlu0 %v2423
    %v2425 = vpop.xlane.xlu0 %2424
    %v2426 = vsel %vm2293, %v2425, %v2421
    %v2427 = vsel %vm2296, %v2416, -1e+30
    %v2428 = vsel %vm2313, %v2427, -inf
    %2429 = vmax.xlane.f32.xlu0 %v2428
    %v2430 = vpop.xlane.xlu0 %2429
    %v2431 = vsel %vm2296, %v2430, %v2426
    %v2432 = vsel %vm2299, %v2416, -1e+30
    %v2433 = vsel %vm2313, %v2432, -inf
    %2434 = vmax.xlane.f32.xlu0 %v2433
    %v2435 = vpop.xlane.xlu0 %2434
    %v2436 = vsel %vm2299, %v2435, %v2431
    %v2437 = vsel %vm2302, %v2416, -1e+30
    %v2438 = vsel %vm2313, %v2437, -inf
    %2439 = vmax.xlane.f32.xlu0 %v2438
    %v2440 = vpop.xlane.xlu0 %2439
    %v2441 = vsel %vm2302, %v2440, %v2436
    %v2442 = vsel %vm2305, %v2416, -1e+30
    %v2443 = vsel %vm2313, %v2442, -inf
    %2444 = vmax.xlane.f32.xlu0 %v2443
    %v2445 = vpop.xlane.xlu0 %2444
    %v2446 = vsel %vm2305, %v2445, %v2441
    %v2447 = vsel %vm2308, %v2416, -1e+30
    %v2448 = vsel %vm2313, %v2447, -inf
    %2449 = vmax.xlane.f32.xlu0 %v2448
    %v2450 = vpop.xlane.xlu0 %2449
    %v2451 = vsel %vm2308, %v2450, %v2446
    %v2452 = vsel %vm2311, %v2416, -1e+30
    %v2453 = vsel %vm2313, %v2452, -inf
    %2454 = vmax.xlane.f32.xlu0 %v2453
    %v2455 = vpop.xlane.xlu0 %2454
    %v2456 = vsel %vm2311, %v2455, %v2451
    %v2457 = vsub.f32 %v2416, %v2456
    %v2458 = vmul.f32 %v2457, 1.442695
    %v2459 = vpow.pop %v2458
    %v2460 = vsel %vm2290, %v2459, 0.0
    %v2461 = vsel %vm2313, %v2460, 0.0
    %2462 = vadd.xlane.f32.xlu0 %v2461
    %v2463 = vpop.xlane.xlu0 %2462
    %v2464 = vsel %vm2290, %v2463, 0.0
    %v2465 = vsel %vm2293, %v2459, 0.0
    %v2466 = vsel %vm2313, %v2465, 0.0
    %2467 = vadd.xlane.f32.xlu0 %v2466
    %v2468 = vpop.xlane.xlu0 %2467
    %v2469 = vsel %vm2293, %v2468, %v2464
    %v2470 = vsel %vm2296, %v2459, 0.0
    %v2471 = vsel %vm2313, %v2470, 0.0
    %2472 = vadd.xlane.f32.xlu0 %v2471
    %v2473 = vpop.xlane.xlu0 %2472
    %v2474 = vsel %vm2296, %v2473, %v2469
    %v2475 = vsel %vm2299, %v2459, 0.0
    %v2476 = vsel %vm2313, %v2475, 0.0
    %2477 = vadd.xlane.f32.xlu0 %v2476
    %v2478 = vpop.xlane.xlu0 %2477
    %v2479 = vsel %vm2299, %v2478, %v2474
    %v2480 = vsel %vm2302, %v2459, 0.0
    %v2481 = vsel %vm2313, %v2480, 0.0
    %2482 = vadd.xlane.f32.xlu0 %v2481
    %v2483 = vpop.xlane.xlu0 %2482
    %v2484 = vsel %vm2302, %v2483, %v2479
    %v2485 = vsel %vm2305, %v2459, 0.0
    %v2486 = vsel %vm2313, %v2485, 0.0
    %2487 = vadd.xlane.f32.xlu0 %v2486
    %v2488 = vpop.xlane.xlu0 %2487
    %v2489 = vsel %vm2305, %v2488, %v2484
    %v2490 = vsel %vm2308, %v2459, 0.0
    %v2491 = vsel %vm2313, %v2490, 0.0
    %2492 = vadd.xlane.f32.xlu0 %v2491
    %v2493 = vpop.xlane.xlu0 %2492
    %v2494 = vsel %vm2308, %v2493, %v2489
    %v2495 = vsel %vm2311, %v2459, 0.0
    %v2496 = vsel %vm2313, %v2495, 0.0
    %2497 = vadd.xlane.f32.xlu0 %v2496
    %v2498 = vpop.xlane.xlu0 %2497
    %v2499 = vsel %vm2311, %v2498, %v2494
    %v2500 = vrcp.pop %v2499
    %v2501 = vmul.f32 %v2499, %v2500
    %v2502 = vsub.f32 1.0, %v2501
    %v2503 = vmul.f32 %v2500, %v2502
    %v2504 = vadd.f32 %v2500, %v2503
    %vm2505 = vweird.f32 %v2499
    %vm2506 = vweird.f32 %v2500
    %vm2507 = vmor %vm2505, %vm2506
    %v2508 = vsel %vm2507, %v2500, %v2504
    %v2509 = vand.u32 2147483647, %v2499
    %vm2510 = vcmp.eq.f32.partialorder %v2509, 8.507059e+37
    %v2511 = vand.u32 %v2499, 2147483648
    %v2512 = vor.u32 1.1754944e-38, %v2511
    %v2513 = vsel %vm2510, %v2512, %v2508
    %v2514 = vmul.f32 %v2459, %v2513
    %v2515 = vpack.c.bf16 %v2514, %v2514
    %v2516 = vld [vmem:[%s7] sm:$0xff]
    %v2517 = vld [vmem:[%s7 + $0x8] sm:$0xff]
    %v2518 = vld [vmem:[%s7 + $0x10] sm:$0xff]
    %v2519 = vld [vmem:[%s7 + $0x18] sm:$0xff]
    %v2520 = vld [vmem:[%s7 + $0x20] sm:$0xff]
    %v2521 = vld [vmem:[%s7 + $0x28] sm:$0xff]
    %v2522 = vld [vmem:[%s7 + $0x30] sm:$0xff]
    %v2523 = vld [vmem:[%s7 + $0x38] sm:$0xff]
    %v2524 = vld [vmem:[%s7 + $0x40] sm:$0xff]
    %v2525 = vld [vmem:[%s7 + $0x48] sm:$0xff]
    %v2526 = vld [vmem:[%s8] sm:$0x3]
    %v2528 = vperm.slane %v2526, 0
    %v2529 = vperm.slane %v2526, 1
    %v2542 = vunpack.c.l.b16 %v2516
    %v2543 = vunpack.c.h.b16 %v2516
    %v2544 = vunpack.c.l.b16 %v2517
    %v2545 = vunpack.c.h.b16 %v2517
    %v2546 = vunpack.c.l.b16 %v2518
    %v2547 = vunpack.c.h.b16 %v2518
    %v2548 = vunpack.c.l.b16 %v2519
    %v2549 = vunpack.c.h.b16 %v2519
    %v2550 = vunpack.c.l.b16 %v2520
    %v2551 = vunpack.c.h.b16 %v2520
    %v2552 = vunpack.c.l.b16 %v2521
    %v2553 = vunpack.c.h.b16 %v2521
    %v2554 = vunpack.c.l.b16 %v2522
    %v2555 = vunpack.c.h.b16 %v2522
    %v2556 = vunpack.c.l.b16 %v2523
    %v2557 = vunpack.c.h.b16 %v2523
    %v2558 = vunpack.c.l.b16 %v2524
    %v2559 = vunpack.c.h.b16 %v2524
    %v2560 = vunpack.c.l.b16 %v2525
    %v2561 = vunpack.c.h.b16 %v2525
    %v2562 = vpack.c.b16 %v2544, %v2542
    %v2563 = vpack.c.b16 %v2545, %v2543
    %v2564 = vpack.c.b16 %v2548, %v2546
    %v2565 = vpack.c.b16 %v2549, %v2547
    %v2566 = vpack.c.b16 %v2552, %v2550
    %v2567 = vpack.c.b16 %v2553, %v2551
    %v2568 = vpack.c.b16 %v2556, %v2554
    %v2569 = vpack.c.b16 %v2557, %v2555
    %v2570 = vpack.c.b16 %v2560, %v2558
    %v2571 = vpack.c.b16 %v2561, %v2559
    %vm2582 = vcmask 654336
    %v2584 = vsel %vm2582, %v2515, 0
    %2586 = vmatpush.bf16.msra.mxu0 0
    %2587 = vmatpush.bf16.msra.mxu0 0
    %2588 = vmatpush.bf16.msra.mxu0 0
    %2589 = vmatpush.bf16.msra.mxu0 %v2570
    %2590 = vmatpush.bf16.msra.mxu0 %v2568
    %2591 = vmatpush.bf16.msra.mxu0 %v2566
    %2592 = vmatpush.bf16.msra.mxu0 %v2564
    %2593 = vmatpush.bf16.msra.mxu0 %v2562
    %2594 = vmatmul.bf16.gmra.mxu0 %v2584
    %v2595 = vpop.f32.mrf.mxu0
    %v2596 = vadd.f32 %v2528, %v2595
    %v2597 = vpop.f32.mrf.mxu0
    %2598 = vdwg.mxu0
    %2599 = vmatpush.bf16.msra.mxu0 0
    %2600 = vmatpush.bf16.msra.mxu0 0
    %2601 = vmatpush.bf16.msra.mxu0 0
    %2602 = vmatpush.bf16.msra.mxu0 %v2571
    %2603 = vmatpush.bf16.msra.mxu0 %v2569
    %2604 = vmatpush.bf16.msra.mxu0 %v2567
    %2605 = vmatpush.bf16.msra.mxu0 %v2565
    %2606 = vmatpush.bf16.msra.mxu0 %v2563
    %2607 = vmatmul.bf16.gmra.mxu0 %v2584
    %v2608 = vpop.f32.mrf.mxu0
    %v2609 = vadd.f32 %v2529, %v2608
    %v2610 = vpop.f32.mrf.mxu0
    %2611 = vdwg.mxu0
    %v2612 = vmax.f32 %v2596, 0.0
    %v2613 = vmax.f32 %v2609, 0.0
    %v2614 = vpack.c.bf16 %v2612, %v2612
    %v2615 = vpack.c.bf16 %v2613, %v2613
    %v2616 = vld [vmem:[%s9] sm:$0xff]
    %v2617 = vld [vmem:[%s9 + $0x8] sm:$0xff]
    %v2618 = vld [vmem:[%s9 + $0x10] sm:$0xff]
    %v2619 = vld [vmem:[%s9 + $0x18] sm:$0xff]
    %v2620 = vld [vmem:[%s9 + $0x20] sm:$0xff]
    %v2621 = vld [vmem:[%s9 + $0x28] sm:$0xff]
    %v2622 = vld [vmem:[%s9 + $0x30] sm:$0xff]
    %v2623 = vld [vmem:[%s9 + $0x38] sm:$0xff]
    %v2624 = vld [vmem:[%s9 + $0x40] sm:$0xff]
    %v2625 = vld [vmem:[%s9 + $0x48] sm:$0xff]
    %v2626 = vld [vmem:[%s9 + $0x50] sm:$0xff]
    %v2627 = vld [vmem:[%s9 + $0x58] sm:$0xff]
    %v2628 = vld [vmem:[%s9 + $0x60] sm:$0xff]
    %v2629 = vld [vmem:[%s9 + $0x68] sm:$0xff]
    %v2630 = vld [vmem:[%s9 + $0x70] sm:$0xff]
    %v2631 = vld [vmem:[%s9 + $0x78] sm:$0xff]
    %v2632 = vld [vmem:[%s9 + $0x80] sm:$0xff]
    %v2633 = vld [vmem:[%s9 + $0x88] sm:$0xff]
    %v2634 = vld [vmem:[%s9 + $0x90] sm:$0xff]
    %v2635 = vld [vmem:[%s9 + $0x98] sm:$0xff]
    %v2636 = vld [vmem:[%s9 + $0xa0] sm:$0xff]
    %v2637 = vld [vmem:[%s9 + $0xa8] sm:$0xff]
    %v2638 = vld [vmem:[%s9 + $0xb0] sm:$0xff]
    %v2639 = vld [vmem:[%s9 + $0xb8] sm:$0xff]
    %v2640 = vld [vmem:[%s9 + $0xc0] sm:$0xff]
    %v2641 = vld [vmem:[%s9 + $0xc8] sm:$0xff]
    %v2642 = vld [vmem:[%s9 + $0xd0] sm:$0xff]
    %v2643 = vld [vmem:[%s9 + $0xd8] sm:$0xff]
    %v2644 = vld [vmem:[%s9 + $0xe0] sm:$0xff]
    %v2645 = vld [vmem:[%s9 + $0xe8] sm:$0xff]
    %v2646 = vld [vmem:[%s9 + $0xf0] sm:$0xff]
    %v2647 = vld [vmem:[%s9 + $0xf8] sm:$0xff]
    %v2648 = vld [vmem:[%s9 + $0x100] sm:$0xff]
    %v2649 = vld [vmem:[%s9 + $0x108] sm:$0xff]
    %v2650 = vld [vmem:[%s9 + $0x110] sm:$0xff]
    %v2651 = vld [vmem:[%s9 + $0x118] sm:$0xff]
    %v2652 = vld [vmem:[%s9 + $0x120] sm:$0xff]
    %v2653 = vld [vmem:[%s9 + $0x128] sm:$0xff]
    %v2654 = vld [vmem:[%s9 + $0x130] sm:$0xff]
    %v2655 = vld [vmem:[%s9 + $0x138] sm:$0xff]
    %v2656 = vld [vmem:[%s9 + $0x140] sm:$0xff]
    %v2657 = vld [vmem:[%s9 + $0x148] sm:$0xff]
    %v2658 = vld [vmem:[%s9 + $0x150] sm:$0xff]
    %v2659 = vld [vmem:[%s9 + $0x158] sm:$0xff]
    %v2660 = vld [vmem:[%s9 + $0x160] sm:$0xff]
    %v2661 = vld [vmem:[%s9 + $0x168] sm:$0xff]
    %v2662 = vld [vmem:[%s9 + $0x170] sm:$0xff]
    %v2663 = vld [vmem:[%s9 + $0x178] sm:$0xff]
    %v2664 = vld [vmem:[%s9 + $0x180] sm:$0xff]
    %v2665 = vld [vmem:[%s9 + $0x188] sm:$0xff]
    %v2666 = vld [vmem:[%s9 + $0x190] sm:$0xff]
    %v2667 = vld [vmem:[%s9 + $0x198] sm:$0xff]
    %v2668 = vld [vmem:[%s9 + $0x1a0] sm:$0xff]
    %v2669 = vld [vmem:[%s9 + $0x1a8] sm:$0xff]
    %v2670 = vld [vmem:[%s9 + $0x1b0] sm:$0xff]
    %v2671 = vld [vmem:[%s9 + $0x1b8] sm:$0xff]
    %v2672 = vld [vmem:[%s9 + $0x1c0] sm:$0xff]
    %v2673 = vld [vmem:[%s9 + $0x1c8] sm:$0xff]
    %v2674 = vld [vmem:[%s9 + $0x1d0] sm:$0xff]
    %v2675 = vld [vmem:[%s9 + $0x1d8] sm:$0xff]
    %v2676 = vld [vmem:[%s9 + $0x1e0] sm:$0xff]
    %v2677 = vld [vmem:[%s9 + $0x1e8] sm:$0xff]
    %v2678 = vld [vmem:[%s9 + $0x1f0] sm:$0xff]
    %v2679 = vld [vmem:[%s9 + $0x1f8] sm:$0xff]
    %v2680 = vld [vmem:[%s10] sm:$0xf]
    %v2682 = vperm.slane %v2680, 0
    %v2683 = vperm.slane %v2680, 1
    %v2684 = vperm.slane %v2680, 2
    %v2685 = vperm.slane %v2680, 3
    %v2754 = vunpack.c.l.b16 %v2616
    %v2755 = vunpack.c.h.b16 %v2616
    %v2756 = vunpack.c.l.b16 %v2617
    %v2757 = vunpack.c.h.b16 %v2617
    %v2758 = vunpack.c.l.b16 %v2618
    %v2759 = vunpack.c.h.b16 %v2618
    %v2760 = vunpack.c.l.b16 %v2619
    %v2761 = vunpack.c.h.b16 %v2619
    %v2762 = vunpack.c.l.b16 %v2620
    %v2763 = vunpack.c.h.b16 %v2620
    %v2764 = vunpack.c.l.b16 %v2621
    %v2765 = vunpack.c.h.b16 %v2621
    %v2766 = vunpack.c.l.b16 %v2622
    %v2767 = vunpack.c.h.b16 %v2622
    %v2768 = vunpack.c.l.b16 %v2623
    %v2769 = vunpack.c.h.b16 %v2623
    %v2770 = vunpack.c.l.b16 %v2624
    %v2771 = vunpack.c.h.b16 %v2624
    %v2772 = vunpack.c.l.b16 %v2625
    %v2773 = vunpack.c.h.b16 %v2625
    %v2774 = vunpack.c.l.b16 %v2626
    %v2775 = vunpack.c.h.b16 %v2626
    %v2776 = vunpack.c.l.b16 %v2627
    %v2777 = vunpack.c.h.b16 %v2627
    %v2778 = vunpack.c.l.b16 %v2628
    %v2779 = vunpack.c.h.b16 %v2628
    %v2780 = vunpack.c.l.b16 %v2629
    %v2781 = vunpack.c.h.b16 %v2629
    %v2782 = vunpack.c.l.b16 %v2630
    %v2783 = vunpack.c.h.b16 %v2630
    %v2784 = vunpack.c.l.b16 %v2631
    %v2785 = vunpack.c.h.b16 %v2631
    %v2786 = vunpack.c.l.b16 %v2632
    %v2787 = vunpack.c.h.b16 %v2632
    %v2788 = vunpack.c.l.b16 %v2633
    %v2789 = vunpack.c.h.b16 %v2633
    %v2790 = vunpack.c.l.b16 %v2634
    %v2791 = vunpack.c.h.b16 %v2634
    %v2792 = vunpack.c.l.b16 %v2635
    %v2793 = vunpack.c.h.b16 %v2635
    %v2794 = vunpack.c.l.b16 %v2636
    %v2795 = vunpack.c.h.b16 %v2636
    %v2796 = vunpack.c.l.b16 %v2637
    %v2797 = vunpack.c.h.b16 %v2637
    %v2798 = vunpack.c.l.b16 %v2638
    %v2799 = vunpack.c.h.b16 %v2638
    %v2800 = vunpack.c.l.b16 %v2639
    %v2801 = vunpack.c.h.b16 %v2639
    %v2802 = vunpack.c.l.b16 %v2640
    %v2803 = vunpack.c.h.b16 %v2640
    %v2804 = vunpack.c.l.b16 %v2641
    %v2805 = vunpack.c.h.b16 %v2641
    %v2806 = vunpack.c.l.b16 %v2642
    %v2807 = vunpack.c.h.b16 %v2642
    %v2808 = vunpack.c.l.b16 %v2643
    %v2809 = vunpack.c.h.b16 %v2643
    %v2810 = vunpack.c.l.b16 %v2644
    %v2811 = vunpack.c.h.b16 %v2644
    %v2812 = vunpack.c.l.b16 %v2645
    %v2813 = vunpack.c.h.b16 %v2645
    %v2814 = vunpack.c.l.b16 %v2646
    %v2815 = vunpack.c.h.b16 %v2646
    %v2816 = vunpack.c.l.b16 %v2647
    %v2817 = vunpack.c.h.b16 %v2647
    %v2818 = vunpack.c.l.b16 %v2648
    %v2819 = vunpack.c.h.b16 %v2648
    %v2820 = vunpack.c.l.b16 %v2649
    %v2821 = vunpack.c.h.b16 %v2649
    %v2822 = vunpack.c.l.b16 %v2650
    %v2823 = vunpack.c.h.b16 %v2650
    %v2824 = vunpack.c.l.b16 %v2651
    %v2825 = vunpack.c.h.b16 %v2651
    %v2826 = vunpack.c.l.b16 %v2652
    %v2827 = vunpack.c.h.b16 %v2652
    %v2828 = vunpack.c.l.b16 %v2653
    %v2829 = vunpack.c.h.b16 %v2653
    %v2830 = vunpack.c.l.b16 %v2654
    %v2831 = vunpack.c.h.b16 %v2654
    %v2832 = vunpack.c.l.b16 %v2655
    %v2833 = vunpack.c.h.b16 %v2655
    %v2834 = vunpack.c.l.b16 %v2656
    %v2835 = vunpack.c.h.b16 %v2656
    %v2836 = vunpack.c.l.b16 %v2657
    %v2837 = vunpack.c.h.b16 %v2657
    %v2838 = vunpack.c.l.b16 %v2658
    %v2839 = vunpack.c.h.b16 %v2658
    %v2840 = vunpack.c.l.b16 %v2659
    %v2841 = vunpack.c.h.b16 %v2659
    %v2842 = vunpack.c.l.b16 %v2660
    %v2843 = vunpack.c.h.b16 %v2660
    %v2844 = vunpack.c.l.b16 %v2661
    %v2845 = vunpack.c.h.b16 %v2661
    %v2846 = vunpack.c.l.b16 %v2662
    %v2847 = vunpack.c.h.b16 %v2662
    %v2848 = vunpack.c.l.b16 %v2663
    %v2849 = vunpack.c.h.b16 %v2663
    %v2850 = vunpack.c.l.b16 %v2664
    %v2851 = vunpack.c.h.b16 %v2664
    %v2852 = vunpack.c.l.b16 %v2665
    %v2853 = vunpack.c.h.b16 %v2665
    %v2854 = vunpack.c.l.b16 %v2666
    %v2855 = vunpack.c.h.b16 %v2666
    %v2856 = vunpack.c.l.b16 %v2667
    %v2857 = vunpack.c.h.b16 %v2667
    %v2858 = vunpack.c.l.b16 %v2668
    %v2859 = vunpack.c.h.b16 %v2668
    %v2860 = vunpack.c.l.b16 %v2669
    %v2861 = vunpack.c.h.b16 %v2669
    %v2862 = vunpack.c.l.b16 %v2670
    %v2863 = vunpack.c.h.b16 %v2670
    %v2864 = vunpack.c.l.b16 %v2671
    %v2865 = vunpack.c.h.b16 %v2671
    %v2866 = vunpack.c.l.b16 %v2672
    %v2867 = vunpack.c.h.b16 %v2672
    %v2868 = vunpack.c.l.b16 %v2673
    %v2869 = vunpack.c.h.b16 %v2673
    %v2870 = vunpack.c.l.b16 %v2674
    %v2871 = vunpack.c.h.b16 %v2674
    %v2872 = vunpack.c.l.b16 %v2675
    %v2873 = vunpack.c.h.b16 %v2675
    %v2874 = vunpack.c.l.b16 %v2676
    %v2875 = vunpack.c.h.b16 %v2676
    %v2876 = vunpack.c.l.b16 %v2677
    %v2877 = vunpack.c.h.b16 %v2677
    %v2878 = vunpack.c.l.b16 %v2678
    %v2879 = vunpack.c.h.b16 %v2678
    %v2880 = vunpack.c.l.b16 %v2679
    %v2881 = vunpack.c.h.b16 %v2679
    %v2882 = vpack.c.b16 %v2758, %v2754
    %v2883 = vpack.c.b16 %v2759, %v2755
    %v2884 = vpack.c.b16 %v2760, %v2756
    %v2885 = vpack.c.b16 %v2761, %v2757
    %v2886 = vpack.c.b16 %v2766, %v2762
    %v2887 = vpack.c.b16 %v2767, %v2763
    %v2888 = vpack.c.b16 %v2768, %v2764
    %v2889 = vpack.c.b16 %v2769, %v2765
    %v2890 = vpack.c.b16 %v2774, %v2770
    %v2891 = vpack.c.b16 %v2775, %v2771
    %v2892 = vpack.c.b16 %v2776, %v2772
    %v2893 = vpack.c.b16 %v2777, %v2773
    %v2894 = vpack.c.b16 %v2782, %v2778
    %v2895 = vpack.c.b16 %v2783, %v2779
    %v2896 = vpack.c.b16 %v2784, %v2780
    %v2897 = vpack.c.b16 %v2785, %v2781
    %v2898 = vpack.c.b16 %v2790, %v2786
    %v2899 = vpack.c.b16 %v2791, %v2787
    %v2900 = vpack.c.b16 %v2792, %v2788
    %v2901 = vpack.c.b16 %v2793, %v2789
    %v2902 = vpack.c.b16 %v2798, %v2794
    %v2903 = vpack.c.b16 %v2799, %v2795
    %v2904 = vpack.c.b16 %v2800, %v2796
    %v2905 = vpack.c.b16 %v2801, %v2797
    %v2906 = vpack.c.b16 %v2806, %v2802
    %v2907 = vpack.c.b16 %v2807, %v2803
    %v2908 = vpack.c.b16 %v2808, %v2804
    %v2909 = vpack.c.b16 %v2809, %v2805
    %v2910 = vpack.c.b16 %v2814, %v2810
    %v2911 = vpack.c.b16 %v2815, %v2811
    %v2912 = vpack.c.b16 %v2816, %v2812
    %v2913 = vpack.c.b16 %v2817, %v2813
    %v2914 = vpack.c.b16 %v2822, %v2818
    %v2915 = vpack.c.b16 %v2823, %v2819
    %v2916 = vpack.c.b16 %v2824, %v2820
    %v2917 = vpack.c.b16 %v2825, %v2821
    %v2918 = vpack.c.b16 %v2830, %v2826
    %v2919 = vpack.c.b16 %v2831, %v2827
    %v2920 = vpack.c.b16 %v2832, %v2828
    %v2921 = vpack.c.b16 %v2833, %v2829
    %v2922 = vpack.c.b16 %v2838, %v2834
    %v2923 = vpack.c.b16 %v2839, %v2835
    %v2924 = vpack.c.b16 %v2840, %v2836
    %v2925 = vpack.c.b16 %v2841, %v2837
    %v2926 = vpack.c.b16 %v2846, %v2842
    %v2927 = vpack.c.b16 %v2847, %v2843
    %v2928 = vpack.c.b16 %v2848, %v2844
    %v2929 = vpack.c.b16 %v2849, %v2845
    %v2930 = vpack.c.b16 %v2854, %v2850
    %v2931 = vpack.c.b16 %v2855, %v2851
    %v2932 = vpack.c.b16 %v2856, %v2852
    %v2933 = vpack.c.b16 %v2857, %v2853
    %v2934 = vpack.c.b16 %v2862, %v2858
    %v2935 = vpack.c.b16 %v2863, %v2859
    %v2936 = vpack.c.b16 %v2864, %v2860
    %v2937 = vpack.c.b16 %v2865, %v2861
    %v2938 = vpack.c.b16 %v2870, %v2866
    %v2939 = vpack.c.b16 %v2871, %v2867
    %v2940 = vpack.c.b16 %v2872, %v2868
    %v2941 = vpack.c.b16 %v2873, %v2869
    %v2942 = vpack.c.b16 %v2878, %v2874
    %v2943 = vpack.c.b16 %v2879, %v2875
    %v2944 = vpack.c.b16 %v2880, %v2876
    %v2945 = vpack.c.b16 %v2881, %v2877
    %3010 = vmatpush.bf16.msra.mxu0 %v2910
    %3011 = vmatpush.bf16.msra.mxu0 %v2906
    %3012 = vmatpush.bf16.msra.mxu0 %v2902
    %3013 = vmatpush.bf16.msra.mxu0 %v2898
    %3014 = vmatpush.bf16.msra.mxu0 %v2894
    %3015 = vmatpush.bf16.msra.mxu0 %v2890
    %3016 = vmatpush.bf16.msra.mxu0 %v2886
    %3017 = vmatpush.bf16.msra.mxu0 %v2882
    %3018 = vmatmul.bf16.gmra.mxu0 %v2614
    %v3019 = vpop.f32.mrf.mxu0
    %v3020 = vadd.f32 %v2682, %v3019
    %v3021 = vpop.f32.mrf.mxu0
    %3022 = vdwg.mxu0
    %3023 = vmatpush.bf16.msra.mxu0 %v2942
    %3024 = vmatpush.bf16.msra.mxu0 %v2938
    %3025 = vmatpush.bf16.msra.mxu0 %v2934
    %3026 = vmatpush.bf16.msra.mxu0 %v2930
    %3027 = vmatpush.bf16.msra.mxu0 %v2926
    %3028 = vmatpush.bf16.msra.mxu0 %v2922
    %3029 = vmatpush.bf16.msra.mxu0 %v2918
    %3030 = vmatpush.bf16.msra.mxu0 %v2914
    %3031 = vmatmul.bf16.gmra.mxu0 %v2615
    %v3032 = vpop.f32.mrf.mxu0
    %v3033 = vadd.f32 %v3020, %v3032
    %v3034 = vpop.f32.mrf.mxu0
    %3035 = vdwg.mxu0
    %3036 = vmatpush.bf16.msra.mxu0 %v2911
    %3037 = vmatpush.bf16.msra.mxu0 %v2907
    %3038 = vmatpush.bf16.msra.mxu0 %v2903
    %3039 = vmatpush.bf16.msra.mxu0 %v2899
    %3040 = vmatpush.bf16.msra.mxu0 %v2895
    %3041 = vmatpush.bf16.msra.mxu0 %v2891
    %3042 = vmatpush.bf16.msra.mxu0 %v2887
    %3043 = vmatpush.bf16.msra.mxu0 %v2883
    %3044 = vmatmul.bf16.gmra.mxu0 %v2614
    %v3045 = vpop.f32.mrf.mxu0
    %v3046 = vadd.f32 %v2683, %v3045
    %v3047 = vpop.f32.mrf.mxu0
    %3048 = vdwg.mxu0
    %3049 = vmatpush.bf16.msra.mxu0 %v2943
    %3050 = vmatpush.bf16.msra.mxu0 %v2939
    %3051 = vmatpush.bf16.msra.mxu0 %v2935
    %3052 = vmatpush.bf16.msra.mxu0 %v2931
    %3053 = vmatpush.bf16.msra.mxu0 %v2927
    %3054 = vmatpush.bf16.msra.mxu0 %v2923
    %3055 = vmatpush.bf16.msra.mxu0 %v2919
    %3056 = vmatpush.bf16.msra.mxu0 %v2915
    %3057 = vmatmul.bf16.gmra.mxu0 %v2615
    %v3058 = vpop.f32.mrf.mxu0
    %v3059 = vadd.f32 %v3046, %v3058
    %v3060 = vpop.f32.mrf.mxu0
    %3061 = vdwg.mxu0
    %3062 = vmatpush.bf16.msra.mxu0 %v2912
    %3063 = vmatpush.bf16.msra.mxu0 %v2908
    %3064 = vmatpush.bf16.msra.mxu0 %v2904
    %3065 = vmatpush.bf16.msra.mxu0 %v2900
    %3066 = vmatpush.bf16.msra.mxu0 %v2896
    %3067 = vmatpush.bf16.msra.mxu0 %v2892
    %3068 = vmatpush.bf16.msra.mxu0 %v2888
    %3069 = vmatpush.bf16.msra.mxu0 %v2884
    %3070 = vmatmul.bf16.gmra.mxu0 %v2614
    %v3071 = vpop.f32.mrf.mxu0
    %v3072 = vadd.f32 %v2684, %v3071
    %v3073 = vpop.f32.mrf.mxu0
    %3074 = vdwg.mxu0
    %3075 = vmatpush.bf16.msra.mxu0 %v2944
    %3076 = vmatpush.bf16.msra.mxu0 %v2940
    %3077 = vmatpush.bf16.msra.mxu0 %v2936
    %3078 = vmatpush.bf16.msra.mxu0 %v2932
    %3079 = vmatpush.bf16.msra.mxu0 %v2928
    %3080 = vmatpush.bf16.msra.mxu0 %v2924
    %3081 = vmatpush.bf16.msra.mxu0 %v2920
    %3082 = vmatpush.bf16.msra.mxu0 %v2916
    %3083 = vmatmul.bf16.gmra.mxu0 %v2615
    %v3084 = vpop.f32.mrf.mxu0
    %v3085 = vadd.f32 %v3072, %v3084
    %v3086 = vpop.f32.mrf.mxu0
    %3087 = vdwg.mxu0
    %3088 = vmatpush.bf16.msra.mxu0 %v2913
    %3089 = vmatpush.bf16.msra.mxu0 %v2909
    %3090 = vmatpush.bf16.msra.mxu0 %v2905
    %3091 = vmatpush.bf16.msra.mxu0 %v2901
    %3092 = vmatpush.bf16.msra.mxu0 %v2897
    %3093 = vmatpush.bf16.msra.mxu0 %v2893
    %3094 = vmatpush.bf16.msra.mxu0 %v2889
    %3095 = vmatpush.bf16.msra.mxu0 %v2885
    %3096 = vmatmul.bf16.gmra.mxu0 %v2614
    %v3097 = vpop.f32.mrf.mxu0
    %v3098 = vadd.f32 %v2685, %v3097
    %v3099 = vpop.f32.mrf.mxu0
    %3100 = vdwg.mxu0
    %3101 = vmatpush.bf16.msra.mxu0 %v2945
    %3102 = vmatpush.bf16.msra.mxu0 %v2941
    %3103 = vmatpush.bf16.msra.mxu0 %v2937
    %3104 = vmatpush.bf16.msra.mxu0 %v2933
    %3105 = vmatpush.bf16.msra.mxu0 %v2929
    %3106 = vmatpush.bf16.msra.mxu0 %v2925
    %3107 = vmatpush.bf16.msra.mxu0 %v2921
    %3108 = vmatpush.bf16.msra.mxu0 %v2917
    %3109 = vmatmul.bf16.gmra.mxu0 %v2615
    %v3110 = vpop.f32.mrf.mxu0
    %v3111 = vadd.f32 %v3098, %v3110
    %v3112 = vpop.f32.mrf.mxu0
    %3113 = vdwg.mxu0
    %v3114 = vmax.f32 %v3033, 0.0
    %v3115 = vmax.f32 %v3059, 0.0
    %v3116 = vmax.f32 %v3085, 0.0
    %v3117 = vmax.f32 %v3111, 0.0
    %v3118 = vpack.c.bf16 %v3114, %v3114
    %v3119 = vpack.c.bf16 %v3115, %v3115
    %v3120 = vpack.c.bf16 %v3116, %v3116
    %v3121 = vpack.c.bf16 %v3117, %v3117
    %v3122 = vld [vmem:[%s11] sm:$0xff]
    %v3123 = vld [vmem:[%s11 + $0x8] sm:$0xff]
    %v3124 = vld [vmem:[%s11 + $0x10] sm:$0xff]
    %v3125 = vld [vmem:[%s11 + $0x18] sm:$0xf]
    %v3126 = vld [vmem:[%s11 + $0x1c] sm:$0xff]
    %v3127 = vld [vmem:[%s11 + $0x24] sm:$0xff]
    %v3128 = vld [vmem:[%s11 + $0x2c] sm:$0xff]
    %v3129 = vld [vmem:[%s11 + $0x34] sm:$0xf]
    %v3130 = vld [vmem:[%s11 + $0x38] sm:$0xff]
    %v3131 = vld [vmem:[%s11 + $0x40] sm:$0xff]
    %v3132 = vld [vmem:[%s11 + $0x48] sm:$0xff]
    %v3133 = vld [vmem:[%s11 + $0x50] sm:$0xf]
    %v3134 = vld [vmem:[%s11 + $0x54] sm:$0xff]
    %v3135 = vld [vmem:[%s11 + $0x5c] sm:$0xff]
    %v3136 = vld [vmem:[%s11 + $0x64] sm:$0xff]
    %v3137 = vld [vmem:[%s11 + $0x6c] sm:$0xf]
    %v3138 = vld [vmem:[%s11 + $0x70] sm:$0xff]
    %v3139 = vld [vmem:[%s11 + $0x78] sm:$0xff]
    %v3140 = vld [vmem:[%s11 + $0x80] sm:$0xff]
    %v3141 = vld [vmem:[%s11 + $0x88] sm:$0xf]
    %v3142 = vld [vmem:[%s11 + $0x8c] sm:$0xff]
    %v3143 = vld [vmem:[%s11 + $0x94] sm:$0xff]
    %v3144 = vld [vmem:[%s11 + $0x9c] sm:$0xff]
    %v3145 = vld [vmem:[%s11 + $0xa4] sm:$0xf]
    %v3146 = vld [vmem:[%s11 + $0xa8] sm:$0xff]
    %v3147 = vld [vmem:[%s11 + $0xb0] sm:$0xff]
    %v3148 = vld [vmem:[%s11 + $0xb8] sm:$0xff]
    %v3149 = vld [vmem:[%s11 + $0xc0] sm:$0xf]
    %v3150 = vld [vmem:[%s11 + $0xc4] sm:$0xff]
    %v3151 = vld [vmem:[%s11 + $0xcc] sm:$0xff]
    %v3152 = vld [vmem:[%s11 + $0xd4] sm:$0xff]
    %v3153 = vld [vmem:[%s11 + $0xdc] sm:$0xf]
    %v3154 = vld [vmem:[%s11 + $0xe0] sm:$0xff]
    %v3155 = vld [vmem:[%s11 + $0xe8] sm:$0xff]
    %v3156 = vld [vmem:[%s11 + $0xf0] sm:$0xff]
    %v3157 = vld [vmem:[%s11 + $0xf8] sm:$0xf]
    %v3158 = vld [vmem:[%s11 + $0xfc] sm:$0xff]
    %v3159 = vld [vmem:[%s11 + $0x104] sm:$0xff]
    %v3160 = vld [vmem:[%s11 + $0x10c] sm:$0xff]
    %v3161 = vld [vmem:[%s11 + $0x114] sm:$0xf]
    %v3162 = vld [vmem:[%s11 + $0x118] sm:$0xff]
    %v3163 = vld [vmem:[%s11 + $0x120] sm:$0xff]
    %v3164 = vld [vmem:[%s11 + $0x128] sm:$0xff]
    %v3165 = vld [vmem:[%s11 + $0x130] sm:$0xf]
    %v3166 = vld [vmem:[%s11 + $0x134] sm:$0xff]
    %v3167 = vld [vmem:[%s11 + $0x13c] sm:$0xff]
    %v3168 = vld [vmem:[%s11 + $0x144] sm:$0xff]
    %v3169 = vld [vmem:[%s11 + $0x14c] sm:$0xf]
    %v3170 = vld [vmem:[%s11 + $0x150] sm:$0xff]
    %v3171 = vld [vmem:[%s11 + $0x158] sm:$0xff]
    %v3172 = vld [vmem:[%s11 + $0x160] sm:$0xff]
    %v3173 = vld [vmem:[%s11 + $0x168] sm:$0xf]
    %v3174 = vld [vmem:[%s11 + $0x16c] sm:$0xff]
    %v3175 = vld [vmem:[%s11 + $0x174] sm:$0xff]
    %v3176 = vld [vmem:[%s11 + $0x17c] sm:$0xff]
    %v3177 = vld [vmem:[%s11 + $0x184] sm:$0xf]
    %v3178 = vld [vmem:[%s11 + $0x188] sm:$0xff]
    %v3179 = vld [vmem:[%s11 + $0x190] sm:$0xff]
    %v3180 = vld [vmem:[%s11 + $0x198] sm:$0xff]
    %v3181 = vld [vmem:[%s11 + $0x1a0] sm:$0xf]
    %v3182 = vld [vmem:[%s11 + $0x1a4] sm:$0xff]
    %v3183 = vld [vmem:[%s11 + $0x1ac] sm:$0xff]
    %v3184 = vld [vmem:[%s11 + $0x1b4] sm:$0xff]
    %v3185 = vld [vmem:[%s11 + $0x1bc] sm:$0xf]
    %v3186 = vld [vmem:[%s11 + $0x1c0] sm:$0xff]
    %v3187 = vld [vmem:[%s11 + $0x1c8] sm:$0xff]
    %v3188 = vld [vmem:[%s11 + $0x1d0] sm:$0xff]
    %v3189 = vld [vmem:[%s11 + $0x1d8] sm:$0xf]
    %v3190 = vld [vmem:[%s11 + $0x1dc] sm:$0xff]
    %v3191 = vld [vmem:[%s11 + $0x1e4] sm:$0xff]
    %v3192 = vld [vmem:[%s11 + $0x1ec] sm:$0xff]
    %v3193 = vld [vmem:[%s11 + $0x1f4] sm:$0xf]
    %v3194 = vld [vmem:[%s11 + $0x1f8] sm:$0xff]
    %v3195 = vld [vmem:[%s11 + $0x200] sm:$0xff]
    %v3196 = vld [vmem:[%s11 + $0x208] sm:$0xff]
    %v3197 = vld [vmem:[%s11 + $0x210] sm:$0xf]
    %v3198 = vld [vmem:[%s11 + $0x214] sm:$0xff]
    %v3199 = vld [vmem:[%s11 + $0x21c] sm:$0xff]
    %v3200 = vld [vmem:[%s11 + $0x224] sm:$0xff]
    %v3201 = vld [vmem:[%s11 + $0x22c] sm:$0xf]
    %v3202 = vld [vmem:[%s11 + $0x230] sm:$0xff]
    %v3203 = vld [vmem:[%s11 + $0x238] sm:$0xff]
    %v3204 = vld [vmem:[%s11 + $0x240] sm:$0xff]
    %v3205 = vld [vmem:[%s11 + $0x248] sm:$0xf]
    %v3206 = vld [vmem:[%s11 + $0x24c] sm:$0xff]
    %v3207 = vld [vmem:[%s11 + $0x254] sm:$0xff]
    %v3208 = vld [vmem:[%s11 + $0x25c] sm:$0xff]
    %v3209 = vld [vmem:[%s11 + $0x264] sm:$0xf]
    %v3210 = vld [vmem:[%s11 + $0x268] sm:$0xff]
    %v3211 = vld [vmem:[%s11 + $0x270] sm:$0xff]
    %v3212 = vld [vmem:[%s11 + $0x278] sm:$0xff]
    %v3213 = vld [vmem:[%s11 + $0x280] sm:$0xf]
    %v3214 = vld [vmem:[%s11 + $0x284] sm:$0xff]
    %v3215 = vld [vmem:[%s11 + $0x28c] sm:$0xff]
    %v3216 = vld [vmem:[%s11 + $0x294] sm:$0xff]
    %v3217 = vld [vmem:[%s11 + $0x29c] sm:$0xf]
    %v3218 = vld [vmem:[%s11 + $0x2a0] sm:$0xff]
    %v3219 = vld [vmem:[%s11 + $0x2a8] sm:$0xff]
    %v3220 = vld [vmem:[%s11 + $0x2b0] sm:$0xff]
    %v3221 = vld [vmem:[%s11 + $0x2b8] sm:$0xf]
    %v3222 = vld [vmem:[%s11 + $0x2bc] sm:$0xff]
    %v3223 = vld [vmem:[%s11 + $0x2c4] sm:$0xff]
    %v3224 = vld [vmem:[%s11 + $0x2cc] sm:$0xff]
    %v3225 = vld [vmem:[%s11 + $0x2d4] sm:$0xf]
    %v3226 = vld [vmem:[%s11 + $0x2d8] sm:$0xff]
    %v3227 = vld [vmem:[%s11 + $0x2e0] sm:$0xff]
    %v3228 = vld [vmem:[%s11 + $0x2e8] sm:$0xff]
    %v3229 = vld [vmem:[%s11 + $0x2f0] sm:$0xf]
    %v3230 = vld [vmem:[%s11 + $0x2f4] sm:$0xff]
    %v3231 = vld [vmem:[%s11 + $0x2fc] sm:$0xff]
    %v3232 = vld [vmem:[%s11 + $0x304] sm:$0xff]
    %v3233 = vld [vmem:[%s11 + $0x30c] sm:$0xf]
    %v3234 = vld [vmem:[%s11 + $0x310] sm:$0xff]
    %v3235 = vld [vmem:[%s11 + $0x318] sm:$0xff]
    %v3236 = vld [vmem:[%s11 + $0x320] sm:$0xff]
    %v3237 = vld [vmem:[%s11 + $0x328] sm:$0xf]
    %v3238 = vld [vmem:[%s11 + $0x32c] sm:$0xff]
    %v3239 = vld [vmem:[%s11 + $0x334] sm:$0xff]
    %v3240 = vld [vmem:[%s11 + $0x33c] sm:$0xff]
    %v3241 = vld [vmem:[%s11 + $0x344] sm:$0xf]
    %v3242 = vld [vmem:[%s11 + $0x348] sm:$0xff]
    %v3243 = vld [vmem:[%s11 + $0x350] sm:$0xff]
    %v3244 = vld [vmem:[%s11 + $0x358] sm:$0xff]
    %v3245 = vld [vmem:[%s11 + $0x360] sm:$0xf]
    %v3246 = vld [vmem:[%s11 + $0x364] sm:$0xff]
    %v3247 = vld [vmem:[%s11 + $0x36c] sm:$0xff]
    %v3248 = vld [vmem:[%s11 + $0x374] sm:$0xff]
    %v3249 = vld [vmem:[%s11 + $0x37c] sm:$0xf]
    %v3250 = vld [vmem:[%s11 + $0x380] sm:$0xff]
    %v3251 = vld [vmem:[%s11 + $0x388] sm:$0xff]
    %v3252 = vld [vmem:[%s11 + $0x390] sm:$0xff]
    %v3253 = vld [vmem:[%s11 + $0x398] sm:$0xf]
    %v3254 = vld [vmem:[%s11 + $0x39c] sm:$0xff]
    %v3255 = vld [vmem:[%s11 + $0x3a4] sm:$0xff]
    %v3256 = vld [vmem:[%s11 + $0x3ac] sm:$0xff]
    %v3257 = vld [vmem:[%s11 + $0x3b4] sm:$0xf]
    %v3258 = vld [vmem:[%s11 + $0x3b8] sm:$0xff]
    %v3259 = vld [vmem:[%s11 + $0x3c0] sm:$0xff]
    %v3260 = vld [vmem:[%s11 + $0x3c8] sm:$0xff]
    %v3261 = vld [vmem:[%s11 + $0x3d0] sm:$0xf]
    %v3262 = vld [vmem:[%s11 + $0x3d4] sm:$0xff]
    %v3263 = vld [vmem:[%s11 + $0x3dc] sm:$0xff]
    %v3264 = vld [vmem:[%s11 + $0x3e4] sm:$0xff]
    %v3265 = vld [vmem:[%s11 + $0x3ec] sm:$0xf]
    %v3266 = vld [vmem:[%s11 + $0x3f0] sm:$0xff]
    %v3267 = vld [vmem:[%s11 + $0x3f8] sm:$0xff]
    %v3268 = vld [vmem:[%s11 + $0x400] sm:$0xff]
    %v3269 = vld [vmem:[%s11 + $0x408] sm:$0xf]
    %v3270 = vld [vmem:[%s11 + $0x40c] sm:$0xff]
    %v3271 = vld [vmem:[%s11 + $0x414] sm:$0xff]
    %v3272 = vld [vmem:[%s11 + $0x41c] sm:$0xff]
    %v3273 = vld [vmem:[%s11 + $0x424] sm:$0xf]
    %v3274 = vld [vmem:[%s11 + $0x428] sm:$0xff]
    %v3275 = vld [vmem:[%s11 + $0x430] sm:$0xff]
    %v3276 = vld [vmem:[%s11 + $0x438] sm:$0xff]
    %v3277 = vld [vmem:[%s11 + $0x440] sm:$0xf]
    %v3278 = vld [vmem:[%s11 + $0x444] sm:$0xff]
    %v3279 = vld [vmem:[%s11 + $0x44c] sm:$0xff]
    %v3280 = vld [vmem:[%s11 + $0x454] sm:$0xff]
    %v3281 = vld [vmem:[%s11 + $0x45c] sm:$0xf]
    %v3282 = vld [vmem:[%s11 + $0x460] sm:$0xff]
    %v3283 = vld [vmem:[%s11 + $0x468] sm:$0xff]
    %v3284 = vld [vmem:[%s11 + $0x470] sm:$0xff]
    %v3285 = vld [vmem:[%s11 + $0x478] sm:$0xf]
    %v3286 = vld [vmem:[%s11 + $0x47c] sm:$0xff]
    %v3287 = vld [vmem:[%s11 + $0x484] sm:$0xff]
    %v3288 = vld [vmem:[%s11 + $0x48c] sm:$0xff]
    %v3289 = vld [vmem:[%s11 + $0x494] sm:$0xf]
    %v3290 = vld [vmem:[%s11 + $0x498] sm:$0xff]
    %v3291 = vld [vmem:[%s11 + $0x4a0] sm:$0xff]
    %v3292 = vld [vmem:[%s11 + $0x4a8] sm:$0xff]
    %v3293 = vld [vmem:[%s11 + $0x4b0] sm:$0xf]
    %v3294 = vld [vmem:[%s11 + $0x4b4] sm:$0xff]
    %v3295 = vld [vmem:[%s11 + $0x4bc] sm:$0xff]
    %v3296 = vld [vmem:[%s11 + $0x4c4] sm:$0xff]
    %v3297 = vld [vmem:[%s11 + $0x4cc] sm:$0xf]
    %v3298 = vld [vmem:[%s11 + $0x4d0] sm:$0xff]
    %v3299 = vld [vmem:[%s11 + $0x4d8] sm:$0xff]
    %v3300 = vld [vmem:[%s11 + $0x4e0] sm:$0xff]
    %v3301 = vld [vmem:[%s11 + $0x4e8] sm:$0xf]
    %v3302 = vld [vmem:[%s11 + $0x4ec] sm:$0xff]
    %v3303 = vld [vmem:[%s11 + $0x4f4] sm:$0xff]
    %v3304 = vld [vmem:[%s11 + $0x4fc] sm:$0xff]
    %v3305 = vld [vmem:[%s11 + $0x504] sm:$0xf]
    %v3306 = vld [vmem:[%s11 + $0x508] sm:$0xff]
    %v3307 = vld [vmem:[%s11 + $0x510] sm:$0xff]
    %v3308 = vld [vmem:[%s11 + $0x518] sm:$0xff]
    %v3309 = vld [vmem:[%s11 + $0x520] sm:$0xf]
    %v3310 = vld [vmem:[%s11 + $0x524] sm:$0xff]
    %v3311 = vld [vmem:[%s11 + $0x52c] sm:$0xff]
    %v3312 = vld [vmem:[%s11 + $0x534] sm:$0xff]
    %v3313 = vld [vmem:[%s11 + $0x53c] sm:$0xf]
    %v3314 = vld [vmem:[%s11 + $0x540] sm:$0xff]
    %v3315 = vld [vmem:[%s11 + $0x548] sm:$0xff]
    %v3316 = vld [vmem:[%s11 + $0x550] sm:$0xff]
    %v3317 = vld [vmem:[%s11 + $0x558] sm:$0xf]
    %v3318 = vld [vmem:[%s11 + $0x55c] sm:$0xff]
    %v3319 = vld [vmem:[%s11 + $0x564] sm:$0xff]
    %v3320 = vld [vmem:[%s11 + $0x56c] sm:$0xff]
    %v3321 = vld [vmem:[%s11 + $0x574] sm:$0xf]
    %v3322 = vld [vmem:[%s11 + $0x578] sm:$0xff]
    %v3323 = vld [vmem:[%s11 + $0x580] sm:$0xff]
    %v3324 = vld [vmem:[%s11 + $0x588] sm:$0xff]
    %v3325 = vld [vmem:[%s11 + $0x590] sm:$0xf]
    %v3326 = vld [vmem:[%s11 + $0x594] sm:$0xff]
    %v3327 = vld [vmem:[%s11 + $0x59c] sm:$0xff]
    %v3328 = vld [vmem:[%s11 + $0x5a4] sm:$0xff]
    %v3329 = vld [vmem:[%s11 + $0x5ac] sm:$0xf]
    %v3330 = vld [vmem:[%s11 + $0x5b0] sm:$0xff]
    %v3331 = vld [vmem:[%s11 + $0x5b8] sm:$0xff]
    %v3332 = vld [vmem:[%s11 + $0x5c0] sm:$0xff]
    %v3333 = vld [vmem:[%s11 + $0x5c8] sm:$0xf]
    %v3334 = vld [vmem:[%s11 + $0x5cc] sm:$0xff]
    %v3335 = vld [vmem:[%s11 + $0x5d4] sm:$0xff]
    %v3336 = vld [vmem:[%s11 + $0x5dc] sm:$0xff]
    %v3337 = vld [vmem:[%s11 + $0x5e4] sm:$0xf]
    %v3338 = vld [vmem:[%s11 + $0x5e8] sm:$0xff]
    %v3339 = vld [vmem:[%s11 + $0x5f0] sm:$0xff]
    %v3340 = vld [vmem:[%s11 + $0x5f8] sm:$0xff]
    %v3341 = vld [vmem:[%s11 + $0x600] sm:$0xf]
    %v3342 = vld [vmem:[%s11 + $0x604] sm:$0xff]
    %v3343 = vld [vmem:[%s11 + $0x60c] sm:$0xff]
    %v3344 = vld [vmem:[%s11 + $0x614] sm:$0xff]
    %v3345 = vld [vmem:[%s11 + $0x61c] sm:$0xf]
    %v3346 = vld [vmem:[%s11 + $0x620] sm:$0xff]
    %v3347 = vld [vmem:[%s11 + $0x628] sm:$0xff]
    %v3348 = vld [vmem:[%s11 + $0x630] sm:$0xff]
    %v3349 = vld [vmem:[%s11 + $0x638] sm:$0xf]
    %v3350 = vld [vmem:[%s11 + $0x63c] sm:$0xff]
    %v3351 = vld [vmem:[%s11 + $0x644] sm:$0xff]
    %v3352 = vld [vmem:[%s11 + $0x64c] sm:$0xff]
    %v3353 = vld [vmem:[%s11 + $0x654] sm:$0xf]
    %v3354 = vld [vmem:[%s11 + $0x658] sm:$0xff]
    %v3355 = vld [vmem:[%s11 + $0x660] sm:$0xff]
    %v3356 = vld [vmem:[%s11 + $0x668] sm:$0xff]
    %v3357 = vld [vmem:[%s11 + $0x670] sm:$0xf]
    %v3358 = vld [vmem:[%s11 + $0x674] sm:$0xff]
    %v3359 = vld [vmem:[%s11 + $0x67c] sm:$0xff]
    %v3360 = vld [vmem:[%s11 + $0x684] sm:$0xff]
    %v3361 = vld [vmem:[%s11 + $0x68c] sm:$0xf]
    %v3362 = vld [vmem:[%s11 + $0x690] sm:$0xff]
    %v3363 = vld [vmem:[%s11 + $0x698] sm:$0xff]
    %v3364 = vld [vmem:[%s11 + $0x6a0] sm:$0xff]
    %v3365 = vld [vmem:[%s11 + $0x6a8] sm:$0xf]
    %v3366 = vld [vmem:[%s11 + $0x6ac] sm:$0xff]
    %v3367 = vld [vmem:[%s11 + $0x6b4] sm:$0xff]
    %v3368 = vld [vmem:[%s11 + $0x6bc] sm:$0xff]
    %v3369 = vld [vmem:[%s11 + $0x6c4] sm:$0xf]
    %v3370 = vld [vmem:[%s11 + $0x6c8] sm:$0xff]
    %v3371 = vld [vmem:[%s11 + $0x6d0] sm:$0xff]
    %v3372 = vld [vmem:[%s11 + $0x6d8] sm:$0xff]
    %v3373 = vld [vmem:[%s11 + $0x6e0] sm:$0xf]
    %v3374 = vld [vmem:[%s11 + $0x6e4] sm:$0xff]
    %v3375 = vld [vmem:[%s11 + $0x6ec] sm:$0xff]
    %v3376 = vld [vmem:[%s11 + $0x6f4] sm:$0xff]
    %v3377 = vld [vmem:[%s11 + $0x6fc] sm:$0xf]
    %v3378 = vld [vmem:[%s12] sm:$0x7f]
    %v3380 = vperm.slane %v3378, 0
    %v3381 = vperm.slane %v3378, 1
    %v3382 = vperm.slane %v3378, 2
    %v3383 = vperm.slane %v3378, 3
    %v3384 = vperm.slane %v3378, 4
    %v3385 = vperm.slane %v3378, 5
    %v3386 = vperm.slane %v3378, 6
    %v3650 = vunpack.c.l.b16 %v3122
    %v3651 = vunpack.c.h.b16 %v3122
    %v3652 = vunpack.c.l.b16 %v3123
    %v3653 = vunpack.c.h.b16 %v3123
    %v3654 = vunpack.c.l.b16 %v3124
    %v3655 = vunpack.c.h.b16 %v3124
    %v3656 = vunpack.c.l.b16 %v3125
    %v3657 = vunpack.c.l.b16 %v3126
    %v3658 = vunpack.c.h.b16 %v3126
    %v3659 = vunpack.c.l.b16 %v3127
    %v3660 = vunpack.c.h.b16 %v3127
    %v3661 = vunpack.c.l.b16 %v3128
    %v3662 = vunpack.c.h.b16 %v3128
    %v3663 = vunpack.c.l.b16 %v3129
    %v3664 = vunpack.c.l.b16 %v3130
    %v3665 = vunpack.c.h.b16 %v3130
    %v3666 = vunpack.c.l.b16 %v3131
    %v3667 = vunpack.c.h.b16 %v3131
    %v3668 = vunpack.c.l.b16 %v3132
    %v3669 = vunpack.c.h.b16 %v3132
    %v3670 = vunpack.c.l.b16 %v3133
    %v3671 = vunpack.c.l.b16 %v3134
    %v3672 = vunpack.c.h.b16 %v3134
    %v3673 = vunpack.c.l.b16 %v3135
    %v3674 = vunpack.c.h.b16 %v3135
    %v3675 = vunpack.c.l.b16 %v3136
    %v3676 = vunpack.c.h.b16 %v3136
    %v3677 = vunpack.c.l.b16 %v3137
    %v3678 = vunpack.c.l.b16 %v3138
    %v3679 = vunpack.c.h.b16 %v3138
    %v3680 = vunpack.c.l.b16 %v3139
    %v3681 = vunpack.c.h.b16 %v3139
    %v3682 = vunpack.c.l.b16 %v3140
    %v3683 = vunpack.c.h.b16 %v3140
    %v3684 = vunpack.c.l.b16 %v3141
    %v3685 = vunpack.c.l.b16 %v3142
    %v3686 = vunpack.c.h.b16 %v3142
    %v3687 = vunpack.c.l.b16 %v3143
    %v3688 = vunpack.c.h.b16 %v3143
    %v3689 = vunpack.c.l.b16 %v3144
    %v3690 = vunpack.c.h.b16 %v3144
    %v3691 = vunpack.c.l.b16 %v3145
    %v3692 = vunpack.c.l.b16 %v3146
    %v3693 = vunpack.c.h.b16 %v3146
    %v3694 = vunpack.c.l.b16 %v3147
    %v3695 = vunpack.c.h.b16 %v3147
    %v3696 = vunpack.c.l.b16 %v3148
    %v3697 = vunpack.c.h.b16 %v3148
    %v3698 = vunpack.c.l.b16 %v3149
    %v3699 = vunpack.c.l.b16 %v3150
    %v3700 = vunpack.c.h.b16 %v3150
    %v3701 = vunpack.c.l.b16 %v3151
    %v3702 = vunpack.c.h.b16 %v3151
    %v3703 = vunpack.c.l.b16 %v3152
    %v3704 = vunpack.c.h.b16 %v3152
    %v3705 = vunpack.c.l.b16 %v3153
    %v3706 = vunpack.c.l.b16 %v3154
    %v3707 = vunpack.c.h.b16 %v3154
    %v3708 = vunpack.c.l.b16 %v3155
    %v3709 = vunpack.c.h.b16 %v3155
    %v3710 = vunpack.c.l.b16 %v3156
    %v3711 = vunpack.c.h.b16 %v3156
    %v3712 = vunpack.c.l.b16 %v3157
    %v3713 = vunpack.c.l.b16 %v3158
    %v3714 = vunpack.c.h.b16 %v3158
    %v3715 = vunpack.c.l.b16 %v3159
    %v3716 = vunpack.c.h.b16 %v3159
    %v3717 = vunpack.c.l.b16 %v3160
    %v3718 = vunpack.c.h.b16 %v3160
    %v3719 = vunpack.c.l.b16 %v3161
    %v3720 = vunpack.c.l.b16 %v3162
    %v3721 = vunpack.c.h.b16 %v3162
    %v3722 = vunpack.c.l.b16 %v3163
    %v3723 = vunpack.c.h.b16 %v3163
    %v3724 = vunpack.c.l.b16 %v3164
    %v3725 = vunpack.c.h.b16 %v3164
    %v3726 = vunpack.c.l.b16 %v3165
    %v3727 = vunpack.c.l.b16 %v3166
    %v3728 = vunpack.c.h.b16 %v3166
    %v3729 = vunpack.c.l.b16 %v3167
    %v3730 = vunpack.c.h.b16 %v3167
    %v3731 = vunpack.c.l.b16 %v3168
    %v3732 = vunpack.c.h.b16 %v3168
    %v3733 = vunpack.c.l.b16 %v3169
    %v3734 = vunpack.c.l.b16 %v3170
    %v3735 = vunpack.c.h.b16 %v3170
    %v3736 = vunpack.c.l.b16 %v3171
    %v3737 = vunpack.c.h.b16 %v3171
    %v3738 = vunpack.c.l.b16 %v3172
    %v3739 = vunpack.c.h.b16 %v3172
    %v3740 = vunpack.c.l.b16 %v3173
    %v3741 = vunpack.c.l.b16 %v3174
    %v3742 = vunpack.c.h.b16 %v3174
    %v3743 = vunpack.c.l.b16 %v3175
    %v3744 = vunpack.c.h.b16 %v3175
    %v3745 = vunpack.c.l.b16 %v3176
    %v3746 = vunpack.c.h.b16 %v3176
    %v3747 = vunpack.c.l.b16 %v3177
    %v3748 = vunpack.c.l.b16 %v3178
    %v3749 = vunpack.c.h.b16 %v3178
    %v3750 = vunpack.c.l.b16 %v3179
    %v3751 = vunpack.c.h.b16 %v3179
    %v3752 = vunpack.c.l.b16 %v3180
    %v3753 = vunpack.c.h.b16 %v3180
    %v3754 = vunpack.c.l.b16 %v3181
    %v3755 = vunpack.c.l.b16 %v3182
    %v3756 = vunpack.c.h.b16 %v3182
    %v3757 = vunpack.c.l.b16 %v3183
    %v3758 = vunpack.c.h.b16 %v3183
    %v3759 = vunpack.c.l.b16 %v3184
    %v3760 = vunpack.c.h.b16 %v3184
    %v3761 = vunpack.c.l.b16 %v3185
    %v3762 = vunpack.c.l.b16 %v3186
    %v3763 = vunpack.c.h.b16 %v3186
    %v3764 = vunpack.c.l.b16 %v3187
    %v3765 = vunpack.c.h.b16 %v3187
    %v3766 = vunpack.c.l.b16 %v3188
    %v3767 = vunpack.c.h.b16 %v3188
    %v3768 = vunpack.c.l.b16 %v3189
    %v3769 = vunpack.c.l.b16 %v3190
    %v3770 = vunpack.c.h.b16 %v3190
    %v3771 = vunpack.c.l.b16 %v3191
    %v3772 = vunpack.c.h.b16 %v3191
    %v3773 = vunpack.c.l.b16 %v3192
    %v3774 = vunpack.c.h.b16 %v3192
    %v3775 = vunpack.c.l.b16 %v3193
    %v3776 = vunpack.c.l.b16 %v3194
    %v3777 = vunpack.c.h.b16 %v3194
    %v3778 = vunpack.c.l.b16 %v3195
    %v3779 = vunpack.c.h.b16 %v3195
    %v3780 = vunpack.c.l.b16 %v3196
    %v3781 = vunpack.c.h.b16 %v3196
    %v3782 = vunpack.c.l.b16 %v3197
    %v3783 = vunpack.c.l.b16 %v3198
    %v3784 = vunpack.c.h.b16 %v3198
    %v3785 = vunpack.c.l.b16 %v3199
    %v3786 = vunpack.c.h.b16 %v3199
    %v3787 = vunpack.c.l.b16 %v3200
    %v3788 = vunpack.c.h.b16 %v3200
    %v3789 = vunpack.c.l.b16 %v3201
    %v3790 = vunpack.c.l.b16 %v3202
    %v3791 = vunpack.c.h.b16 %v3202
    %v3792 = vunpack.c.l.b16 %v3203
    %v3793 = vunpack.c.h.b16 %v3203
    %v3794 = vunpack.c.l.b16 %v3204
    %v3795 = vunpack.c.h.b16 %v3204
    %v3796 = vunpack.c.l.b16 %v3205
    %v3797 = vunpack.c.l.b16 %v3206
    %v3798 = vunpack.c.h.b16 %v3206
    %v3799 = vunpack.c.l.b16 %v3207
    %v3800 = vunpack.c.h.b16 %v3207
    %v3801 = vunpack.c.l.b16 %v3208
    %v3802 = vunpack.c.h.b16 %v3208
    %v3803 = vunpack.c.l.b16 %v3209
    %v3804 = vunpack.c.l.b16 %v3210
    %v3805 = vunpack.c.h.b16 %v3210
    %v3806 = vunpack.c.l.b16 %v3211
    %v3807 = vunpack.c.h.b16 %v3211
    %v3808 = vunpack.c.l.b16 %v3212
    %v3809 = vunpack.c.h.b16 %v3212
    %v3810 = vunpack.c.l.b16 %v3213
    %v3811 = vunpack.c.l.b16 %v3214
    %v3812 = vunpack.c.h.b16 %v3214
    %v3813 = vunpack.c.l.b16 %v3215
    %v3814 = vunpack.c.h.b16 %v3215
    %v3815 = vunpack.c.l.b16 %v3216
    %v3816 = vunpack.c.h.b16 %v3216
    %v3817 = vunpack.c.l.b16 %v3217
    %v3818 = vunpack.c.l.b16 %v3218
    %v3819 = vunpack.c.h.b16 %v3218
    %v3820 = vunpack.c.l.b16 %v3219
    %v3821 = vunpack.c.h.b16 %v3219
    %v3822 = vunpack.c.l.b16 %v3220
    %v3823 = vunpack.c.h.b16 %v3220
    %v3824 = vunpack.c.l.b16 %v3221
    %v3825 = vunpack.c.l.b16 %v3222
    %v3826 = vunpack.c.h.b16 %v3222
    %v3827 = vunpack.c.l.b16 %v3223
    %v3828 = vunpack.c.h.b16 %v3223
    %v3829 = vunpack.c.l.b16 %v3224
    %v3830 = vunpack.c.h.b16 %v3224
    %v3831 = vunpack.c.l.b16 %v3225
    %v3832 = vunpack.c.l.b16 %v3226
    %v3833 = vunpack.c.h.b16 %v3226
    %v3834 = vunpack.c.l.b16 %v3227
    %v3835 = vunpack.c.h.b16 %v3227
    %v3836 = vunpack.c.l.b16 %v3228
    %v3837 = vunpack.c.h.b16 %v3228
    %v3838 = vunpack.c.l.b16 %v3229
    %v3839 = vunpack.c.l.b16 %v3230
    %v3840 = vunpack.c.h.b16 %v3230
    %v3841 = vunpack.c.l.b16 %v3231
    %v3842 = vunpack.c.h.b16 %v3231
    %v3843 = vunpack.c.l.b16 %v3232
    %v3844 = vunpack.c.h.b16 %v3232
    %v3845 = vunpack.c.l.b16 %v3233
    %v3846 = vunpack.c.l.b16 %v3234
    %v3847 = vunpack.c.h.b16 %v3234
    %v3848 = vunpack.c.l.b16 %v3235
    %v3849 = vunpack.c.h.b16 %v3235
    %v3850 = vunpack.c.l.b16 %v3236
    %v3851 = vunpack.c.h.b16 %v3236
    %v3852 = vunpack.c.l.b16 %v3237
    %v3853 = vunpack.c.l.b16 %v3238
    %v3854 = vunpack.c.h.b16 %v3238
    %v3855 = vunpack.c.l.b16 %v3239
    %v3856 = vunpack.c.h.b16 %v3239
    %v3857 = vunpack.c.l.b16 %v3240
    %v3858 = vunpack.c.h.b16 %v3240
    %v3859 = vunpack.c.l.b16 %v3241
    %v3860 = vunpack.c.l.b16 %v3242
    %v3861 = vunpack.c.h.b16 %v3242
    %v3862 = vunpack.c.l.b16 %v3243
    %v3863 = vunpack.c.h.b16 %v3243
    %v3864 = vunpack.c.l.b16 %v3244
    %v3865 = vunpack.c.h.b16 %v3244
    %v3866 = vunpack.c.l.b16 %v3245
    %v3867 = vunpack.c.l.b16 %v3246
    %v3868 = vunpack.c.h.b16 %v3246
    %v3869 = vunpack.c.l.b16 %v3247
    %v3870 = vunpack.c.h.b16 %v3247
    %v3871 = vunpack.c.l.b16 %v3248
    %v3872 = vunpack.c.h.b16 %v3248
    %v3873 = vunpack.c.l.b16 %v3249
    %v3874 = vunpack.c.l.b16 %v3250
    %v3875 = vunpack.c.h.b16 %v3250
    %v3876 = vunpack.c.l.b16 %v3251
    %v3877 = vunpack.c.h.b16 %v3251
    %v3878 = vunpack.c.l.b16 %v3252
    %v3879 = vunpack.c.h.b16 %v3252
    %v3880 = vunpack.c.l.b16 %v3253
    %v3881 = vunpack.c.l.b16 %v3254
    %v3882 = vunpack.c.h.b16 %v3254
    %v3883 = vunpack.c.l.b16 %v3255
    %v3884 = vunpack.c.h.b16 %v3255
    %v3885 = vunpack.c.l.b16 %v3256
    %v3886 = vunpack.c.h.b16 %v3256
    %v3887 = vunpack.c.l.b16 %v3257
    %v3888 = vunpack.c.l.b16 %v3258
    %v3889 = vunpack.c.h.b16 %v3258
    %v3890 = vunpack.c.l.b16 %v3259
    %v3891 = vunpack.c.h.b16 %v3259
    %v3892 = vunpack.c.l.b16 %v3260
    %v3893 = vunpack.c.h.b16 %v3260
    %v3894 = vunpack.c.l.b16 %v3261
    %v3895 = vunpack.c.l.b16 %v3262
    %v3896 = vunpack.c.h.b16 %v3262
    %v3897 = vunpack.c.l.b16 %v3263
    %v3898 = vunpack.c.h.b16 %v3263
    %v3899 = vunpack.c.l.b16 %v3264
    %v3900 = vunpack.c.h.b16 %v3264
    %v3901 = vunpack.c.l.b16 %v3265
    %v3902 = vunpack.c.l.b16 %v3266
    %v3903 = vunpack.c.h.b16 %v3266
    %v3904 = vunpack.c.l.b16 %v3267
    %v3905 = vunpack.c.h.b16 %v3267
    %v3906 = vunpack.c.l.b16 %v3268
    %v3907 = vunpack.c.h.b16 %v3268
    %v3908 = vunpack.c.l.b16 %v3269
    %v3909 = vunpack.c.l.b16 %v3270
    %v3910 = vunpack.c.h.b16 %v3270
    %v3911 = vunpack.c.l.b16 %v3271
    %v3912 = vunpack.c.h.b16 %v3271
    %v3913 = vunpack.c.l.b16 %v3272
    %v3914 = vunpack.c.h.b16 %v3272
    %v3915 = vunpack.c.l.b16 %v3273
    %v3916 = vunpack.c.l.b16 %v3274
    %v3917 = vunpack.c.h.b16 %v3274
    %v3918 = vunpack.c.l.b16 %v3275
    %v3919 = vunpack.c.h.b16 %v3275
    %v3920 = vunpack.c.l.b16 %v3276
    %v3921 = vunpack.c.h.b16 %v3276
    %v3922 = vunpack.c.l.b16 %v3277
    %v3923 = vunpack.c.l.b16 %v3278
    %v3924 = vunpack.c.h.b16 %v3278
    %v3925 = vunpack.c.l.b16 %v3279
    %v3926 = vunpack.c.h.b16 %v3279
    %v3927 = vunpack.c.l.b16 %v3280
    %v3928 = vunpack.c.h.b16 %v3280
    %v3929 = vunpack.c.l.b16 %v3281
    %v3930 = vunpack.c.l.b16 %v3282
    %v3931 = vunpack.c.h.b16 %v3282
    %v3932 = vunpack.c.l.b16 %v3283
    %v3933 = vunpack.c.h.b16 %v3283
    %v3934 = vunpack.c.l.b16 %v3284
    %v3935 = vunpack.c.h.b16 %v3284
    %v3936 = vunpack.c.l.b16 %v3285
    %v3937 = vunpack.c.l.b16 %v3286
    %v3938 = vunpack.c.h.b16 %v3286
    %v3939 = vunpack.c.l.b16 %v3287
    %v3940 = vunpack.c.h.b16 %v3287
    %v3941 = vunpack.c.l.b16 %v3288
    %v3942 = vunpack.c.h.b16 %v3288
    %v3943 = vunpack.c.l.b16 %v3289
    %v3944 = vunpack.c.l.b16 %v3290
    %v3945 = vunpack.c.h.b16 %v3290
    %v3946 = vunpack.c.l.b16 %v3291
    %v3947 = vunpack.c.h.b16 %v3291
    %v3948 = vunpack.c.l.b16 %v3292
    %v3949 = vunpack.c.h.b16 %v3292
    %v3950 = vunpack.c.l.b16 %v3293
    %v3951 = vunpack.c.l.b16 %v3294
    %v3952 = vunpack.c.h.b16 %v3294
    %v3953 = vunpack.c.l.b16 %v3295
    %v3954 = vunpack.c.h.b16 %v3295
    %v3955 = vunpack.c.l.b16 %v3296
    %v3956 = vunpack.c.h.b16 %v3296
    %v3957 = vunpack.c.l.b16 %v3297
    %v3958 = vunpack.c.l.b16 %v3298
    %v3959 = vunpack.c.h.b16 %v3298
    %v3960 = vunpack.c.l.b16 %v3299
    %v3961 = vunpack.c.h.b16 %v3299
    %v3962 = vunpack.c.l.b16 %v3300
    %v3963 = vunpack.c.h.b16 %v3300
    %v3964 = vunpack.c.l.b16 %v3301
    %v3965 = vunpack.c.l.b16 %v3302
    %v3966 = vunpack.c.h.b16 %v3302
    %v3967 = vunpack.c.l.b16 %v3303
    %v3968 = vunpack.c.h.b16 %v3303
    %v3969 = vunpack.c.l.b16 %v3304
    %v3970 = vunpack.c.h.b16 %v3304
    %v3971 = vunpack.c.l.b16 %v3305
    %v3972 = vunpack.c.l.b16 %v3306
    %v3973 = vunpack.c.h.b16 %v3306
    %v3974 = vunpack.c.l.b16 %v3307
    %v3975 = vunpack.c.h.b16 %v3307
    %v3976 = vunpack.c.l.b16 %v3308
    %v3977 = vunpack.c.h.b16 %v3308
    %v3978 = vunpack.c.l.b16 %v3309
    %v3979 = vunpack.c.l.b16 %v3310
    %v3980 = vunpack.c.h.b16 %v3310
    %v3981 = vunpack.c.l.b16 %v3311
    %v3982 = vunpack.c.h.b16 %v3311
    %v3983 = vunpack.c.l.b16 %v3312
    %v3984 = vunpack.c.h.b16 %v3312
    %v3985 = vunpack.c.l.b16 %v3313
    %v3986 = vunpack.c.l.b16 %v3314
    %v3987 = vunpack.c.h.b16 %v3314
    %v3988 = vunpack.c.l.b16 %v3315
    %v3989 = vunpack.c.h.b16 %v3315
    %v3990 = vunpack.c.l.b16 %v3316
    %v3991 = vunpack.c.h.b16 %v3316
    %v3992 = vunpack.c.l.b16 %v3317
    %v3993 = vunpack.c.l.b16 %v3318
    %v3994 = vunpack.c.h.b16 %v3318
    %v3995 = vunpack.c.l.b16 %v3319
    %v3996 = vunpack.c.h.b16 %v3319
    %v3997 = vunpack.c.l.b16 %v3320
    %v3998 = vunpack.c.h.b16 %v3320
    %v3999 = vunpack.c.l.b16 %v3321
    %v4000 = vunpack.c.l.b16 %v3322
    %v4001 = vunpack.c.h.b16 %v3322
    %v4002 = vunpack.c.l.b16 %v3323
    %v4003 = vunpack.c.h.b16 %v3323
    %v4004 = vunpack.c.l.b16 %v3324
    %v4005 = vunpack.c.h.b16 %v3324
    %v4006 = vunpack.c.l.b16 %v3325
    %v4007 = vunpack.c.l.b16 %v3326
    %v4008 = vunpack.c.h.b16 %v3326
    %v4009 = vunpack.c.l.b16 %v3327
    %v4010 = vunpack.c.h.b16 %v3327
    %v4011 = vunpack.c.l.b16 %v3328
    %v4012 = vunpack.c.h.b16 %v3328
    %v4013 = vunpack.c.l.b16 %v3329
    %v4014 = vunpack.c.l.b16 %v3330
    %v4015 = vunpack.c.h.b16 %v3330
    %v4016 = vunpack.c.l.b16 %v3331
    %v4017 = vunpack.c.h.b16 %v3331
    %v4018 = vunpack.c.l.b16 %v3332
    %v4019 = vunpack.c.h.b16 %v3332
    %v4020 = vunpack.c.l.b16 %v3333
    %v4021 = vunpack.c.l.b16 %v3334
    %v4022 = vunpack.c.h.b16 %v3334
    %v4023 = vunpack.c.l.b16 %v3335
    %v4024 = vunpack.c.h.b16 %v3335
    %v4025 = vunpack.c.l.b16 %v3336
    %v4026 = vunpack.c.h.b16 %v3336
    %v4027 = vunpack.c.l.b16 %v3337
    %v4028 = vunpack.c.l.b16 %v3338
    %v4029 = vunpack.c.h.b16 %v3338
    %v4030 = vunpack.c.l.b16 %v3339
    %v4031 = vunpack.c.h.b16 %v3339
    %v4032 = vunpack.c.l.b16 %v3340
    %v4033 = vunpack.c.h.b16 %v3340
    %v4034 = vunpack.c.l.b16 %v3341
    %v4035 = vunpack.c.l.b16 %v3342
    %v4036 = vunpack.c.h.b16 %v3342
    %v4037 = vunpack.c.l.b16 %v3343
    %v4038 = vunpack.c.h.b16 %v3343
    %v4039 = vunpack.c.l.b16 %v3344
    %v4040 = vunpack.c.h.b16 %v3344
    %v4041 = vunpack.c.l.b16 %v3345
    %v4042 = vunpack.c.l.b16 %v3346
    %v4043 = vunpack.c.h.b16 %v3346
    %v4044 = vunpack.c.l.b16 %v3347
    %v4045 = vunpack.c.h.b16 %v3347
    %v4046 = vunpack.c.l.b16 %v3348
    %v4047 = vunpack.c.h.b16 %v3348
    %v4048 = vunpack.c.l.b16 %v3349
    %v4049 = vunpack.c.l.b16 %v3350
    %v4050 = vunpack.c.h.b16 %v3350
    %v4051 = vunpack.c.l.b16 %v3351
    %v4052 = vunpack.c.h.b16 %v3351
    %v4053 = vunpack.c.l.b16 %v3352
    %v4054 = vunpack.c.h.b16 %v3352
    %v4055 = vunpack.c.l.b16 %v3353
    %v4056 = vunpack.c.l.b16 %v3354
    %v4057 = vunpack.c.h.b16 %v3354
    %v4058 = vunpack.c.l.b16 %v3355
    %v4059 = vunpack.c.h.b16 %v3355
    %v4060 = vunpack.c.l.b16 %v3356
    %v4061 = vunpack.c.h.b16 %v3356
    %v4062 = vunpack.c.l.b16 %v3357
    %v4063 = vunpack.c.l.b16 %v3358
    %v4064 = vunpack.c.h.b16 %v3358
    %v4065 = vunpack.c.l.b16 %v3359
    %v4066 = vunpack.c.h.b16 %v3359
    %v4067 = vunpack.c.l.b16 %v3360
    %v4068 = vunpack.c.h.b16 %v3360
    %v4069 = vunpack.c.l.b16 %v3361
    %v4070 = vunpack.c.l.b16 %v3362
    %v4071 = vunpack.c.h.b16 %v3362
    %v4072 = vunpack.c.l.b16 %v3363
    %v4073 = vunpack.c.h.b16 %v3363
    %v4074 = vunpack.c.l.b16 %v3364
    %v4075 = vunpack.c.h.b16 %v3364
    %v4076 = vunpack.c.l.b16 %v3365
    %v4077 = vunpack.c.l.b16 %v3366
    %v4078 = vunpack.c.h.b16 %v3366
    %v4079 = vunpack.c.l.b16 %v3367
    %v4080 = vunpack.c.h.b16 %v3367
    %v4081 = vunpack.c.l.b16 %v3368
    %v4082 = vunpack.c.h.b16 %v3368
    %v4083 = vunpack.c.l.b16 %v3369
    %v4084 = vunpack.c.l.b16 %v3370
    %v4085 = vunpack.c.h.b16 %v3370
    %v4086 = vunpack.c.l.b16 %v3371
    %v4087 = vunpack.c.h.b16 %v3371
    %v4088 = vunpack.c.l.b16 %v3372
    %v4089 = vunpack.c.h.b16 %v3372
    %v4090 = vunpack.c.l.b16 %v3373
    %v4091 = vunpack.c.l.b16 %v3374
    %v4092 = vunpack.c.h.b16 %v3374
    %v4093 = vunpack.c.l.b16 %v3375
    %v4094 = vunpack.c.h.b16 %v3375
    %v4095 = vunpack.c.l.b16 %v3376
    %v4096 = vunpack.c.h.b16 %v3376
    %v4097 = vunpack.c.l.b16 %v3377
    %v4098 = vpack.c.b16 %v3657, %v3650
    %v4099 = vpack.c.b16 %v3658, %v3651
    %v4100 = vpack.c.b16 %v3659, %v3652
    %v4101 = vpack.c.b16 %v3660, %v3653
    %v4102 = vpack.c.b16 %v3661, %v3654
    %v4103 = vpack.c.b16 %v3662, %v3655
    %v4104 = vpack.c.b16 %v3663, %v3656
    %v4105 = vpack.c.b16 %v3671, %v3664
    %v4106 = vpack.c.b16 %v3672, %v3665
    %v4107 = vpack.c.b16 %v3673, %v3666
    %v4108 = vpack.c.b16 %v3674, %v3667
    %v4109 = vpack.c.b16 %v3675, %v3668
    %v4110 = vpack.c.b16 %v3676, %v3669
    %v4111 = vpack.c.b16 %v3677, %v3670
    %v4112 = vpack.c.b16 %v3685, %v3678
    %v4113 = vpack.c.b16 %v3686, %v3679
    %v4114 = vpack.c.b16 %v3687, %v3680
    %v4115 = vpack.c.b16 %v3688, %v3681
    %v4116 = vpack.c.b16 %v3689, %v3682
    %v4117 = vpack.c.b16 %v3690, %v3683
    %v4118 = vpack.c.b16 %v3691, %v3684
    %v4119 = vpack.c.b16 %v3699, %v3692
    %v4120 = vpack.c.b16 %v3700, %v3693
    %v4121 = vpack.c.b16 %v3701, %v3694
    %v4122 = vpack.c.b16 %v3702, %v3695
    %v4123 = vpack.c.b16 %v3703, %v3696
    %v4124 = vpack.c.b16 %v3704, %v3697
    %v4125 = vpack.c.b16 %v3705, %v3698
    %v4126 = vpack.c.b16 %v3713, %v3706
    %v4127 = vpack.c.b16 %v3714, %v3707
    %v4128 = vpack.c.b16 %v3715, %v3708
    %v4129 = vpack.c.b16 %v3716, %v3709
    %v4130 = vpack.c.b16 %v3717, %v3710
    %v4131 = vpack.c.b16 %v3718, %v3711
    %v4132 = vpack.c.b16 %v3719, %v3712
    %v4133 = vpack.c.b16 %v3727, %v3720
    %v4134 = vpack.c.b16 %v3728, %v3721
    %v4135 = vpack.c.b16 %v3729, %v3722
    %v4136 = vpack.c.b16 %v3730, %v3723
    %v4137 = vpack.c.b16 %v3731, %v3724
    %v4138 = vpack.c.b16 %v3732, %v3725
    %v4139 = vpack.c.b16 %v3733, %v3726
    %v4140 = vpack.c.b16 %v3741, %v3734
    %v4141 = vpack.c.b16 %v3742, %v3735
    %v4142 = vpack.c.b16 %v3743, %v3736
    %v4143 = vpack.c.b16 %v3744, %v3737
    %v4144 = vpack.c.b16 %v3745, %v3738
    %v4145 = vpack.c.b16 %v3746, %v3739
    %v4146 = vpack.c.b16 %v3747, %v3740
    %v4147 = vpack.c.b16 %v3755, %v3748
    %v4148 = vpack.c.b16 %v3756, %v3749
    %v4149 = vpack.c.b16 %v3757, %v3750
    %v4150 = vpack.c.b16 %v3758, %v3751
    %v4151 = vpack.c.b16 %v3759, %v3752
    %v4152 = vpack.c.b16 %v3760, %v3753
    %v4153 = vpack.c.b16 %v3761, %v3754
    %v4154 = vpack.c.b16 %v3769, %v3762
    %v4155 = vpack.c.b16 %v3770, %v3763
    %v4156 = vpack.c.b16 %v3771, %v3764
    %v4157 = vpack.c.b16 %v3772, %v3765
    %v4158 = vpack.c.b16 %v3773, %v3766
    %v4159 = vpack.c.b16 %v3774, %v3767
    %v4160 = vpack.c.b16 %v3775, %v3768
    %v4161 = vpack.c.b16 %v3783, %v3776
    %v4162 = vpack.c.b16 %v3784, %v3777
    %v4163 = vpack.c.b16 %v3785, %v3778
    %v4164 = vpack.c.b16 %v3786, %v3779
    %v4165 = vpack.c.b16 %v3787, %v3780
    %v4166 = vpack.c.b16 %v3788, %v3781
    %v4167 = vpack.c.b16 %v3789, %v3782
    %v4168 = vpack.c.b16 %v3797, %v3790
    %v4169 = vpack.c.b16 %v3798, %v3791
    %v4170 = vpack.c.b16 %v3799, %v3792
    %v4171 = vpack.c.b16 %v3800, %v3793
    %v4172 = vpack.c.b16 %v3801, %v3794
    %v4173 = vpack.c.b16 %v3802, %v3795
    %v4174 = vpack.c.b16 %v3803, %v3796
    %v4175 = vpack.c.b16 %v3811, %v3804
    %v4176 = vpack.c.b16 %v3812, %v3805
    %v4177 = vpack.c.b16 %v3813, %v3806
    %v4178 = vpack.c.b16 %v3814, %v3807
    %v4179 = vpack.c.b16 %v3815, %v3808
    %v4180 = vpack.c.b16 %v3816, %v3809
    %v4181 = vpack.c.b16 %v3817, %v3810
    %v4182 = vpack.c.b16 %v3825, %v3818
    %v4183 = vpack.c.b16 %v3826, %v3819
    %v4184 = vpack.c.b16 %v3827, %v3820
    %v4185 = vpack.c.b16 %v3828, %v3821
    %v4186 = vpack.c.b16 %v3829, %v3822
    %v4187 = vpack.c.b16 %v3830, %v3823
    %v4188 = vpack.c.b16 %v3831, %v3824
    %v4189 = vpack.c.b16 %v3839, %v3832
    %v4190 = vpack.c.b16 %v3840, %v3833
    %v4191 = vpack.c.b16 %v3841, %v3834
    %v4192 = vpack.c.b16 %v3842, %v3835
    %v4193 = vpack.c.b16 %v3843, %v3836
    %v4194 = vpack.c.b16 %v3844, %v3837
    %v4195 = vpack.c.b16 %v3845, %v3838
    %v4196 = vpack.c.b16 %v3853, %v3846
    %v4197 = vpack.c.b16 %v3854, %v3847
    %v4198 = vpack.c.b16 %v3855, %v3848
    %v4199 = vpack.c.b16 %v3856, %v3849
    %v4200 = vpack.c.b16 %v3857, %v3850
    %v4201 = vpack.c.b16 %v3858, %v3851
    %v4202 = vpack.c.b16 %v3859, %v3852
    %v4203 = vpack.c.b16 %v3867, %v3860
    %v4204 = vpack.c.b16 %v3868, %v3861
    %v4205 = vpack.c.b16 %v3869, %v3862
    %v4206 = vpack.c.b16 %v3870, %v3863
    %v4207 = vpack.c.b16 %v3871, %v3864
    %v4208 = vpack.c.b16 %v3872, %v3865
    %v4209 = vpack.c.b16 %v3873, %v3866
    %v4210 = vpack.c.b16 %v3881, %v3874
    %v4211 = vpack.c.b16 %v3882, %v3875
    %v4212 = vpack.c.b16 %v3883, %v3876
    %v4213 = vpack.c.b16 %v3884, %v3877
    %v4214 = vpack.c.b16 %v3885, %v3878
    %v4215 = vpack.c.b16 %v3886, %v3879
    %v4216 = vpack.c.b16 %v3887, %v3880
    %v4217 = vpack.c.b16 %v3895, %v3888
    %v4218 = vpack.c.b16 %v3896, %v3889
    %v4219 = vpack.c.b16 %v3897, %v3890
    %v4220 = vpack.c.b16 %v3898, %v3891
    %v4221 = vpack.c.b16 %v3899, %v3892
    %v4222 = vpack.c.b16 %v3900, %v3893
    %v4223 = vpack.c.b16 %v3901, %v3894
    %v4224 = vpack.c.b16 %v3909, %v3902
    %v4225 = vpack.c.b16 %v3910, %v3903
    %v4226 = vpack.c.b16 %v3911, %v3904
    %v4227 = vpack.c.b16 %v3912, %v3905
    %v4228 = vpack.c.b16 %v3913, %v3906
    %v4229 = vpack.c.b16 %v3914, %v3907
    %v4230 = vpack.c.b16 %v3915, %v3908
    %v4231 = vpack.c.b16 %v3923, %v3916
    %v4232 = vpack.c.b16 %v3924, %v3917
    %v4233 = vpack.c.b16 %v3925, %v3918
    %v4234 = vpack.c.b16 %v3926, %v3919
    %v4235 = vpack.c.b16 %v3927, %v3920
    %v4236 = vpack.c.b16 %v3928, %v3921
    %v4237 = vpack.c.b16 %v3929, %v3922
    %v4238 = vpack.c.b16 %v3937, %v3930
    %v4239 = vpack.c.b16 %v3938, %v3931
    %v4240 = vpack.c.b16 %v3939, %v3932
    %v4241 = vpack.c.b16 %v3940, %v3933
    %v4242 = vpack.c.b16 %v3941, %v3934
    %v4243 = vpack.c.b16 %v3942, %v3935
    %v4244 = vpack.c.b16 %v3943, %v3936
    %v4245 = vpack.c.b16 %v3951, %v3944
    %v4246 = vpack.c.b16 %v3952, %v3945
    %v4247 = vpack.c.b16 %v3953, %v3946
    %v4248 = vpack.c.b16 %v3954, %v3947
    %v4249 = vpack.c.b16 %v3955, %v3948
    %v4250 = vpack.c.b16 %v3956, %v3949
    %v4251 = vpack.c.b16 %v3957, %v3950
    %v4252 = vpack.c.b16 %v3965, %v3958
    %v4253 = vpack.c.b16 %v3966, %v3959
    %v4254 = vpack.c.b16 %v3967, %v3960
    %v4255 = vpack.c.b16 %v3968, %v3961
    %v4256 = vpack.c.b16 %v3969, %v3962
    %v4257 = vpack.c.b16 %v3970, %v3963
    %v4258 = vpack.c.b16 %v3971, %v3964
    %v4259 = vpack.c.b16 %v3979, %v3972
    %v4260 = vpack.c.b16 %v3980, %v3973
    %v4261 = vpack.c.b16 %v3981, %v3974
    %v4262 = vpack.c.b16 %v3982, %v3975
    %v4263 = vpack.c.b16 %v3983, %v3976
    %v4264 = vpack.c.b16 %v3984, %v3977
    %v4265 = vpack.c.b16 %v3985, %v3978
    %v4266 = vpack.c.b16 %v3993, %v3986
    %v4267 = vpack.c.b16 %v3994, %v3987
    %v4268 = vpack.c.b16 %v3995, %v3988
    %v4269 = vpack.c.b16 %v3996, %v3989
    %v4270 = vpack.c.b16 %v3997, %v3990
    %v4271 = vpack.c.b16 %v3998, %v3991
    %v4272 = vpack.c.b16 %v3999, %v3992
    %v4273 = vpack.c.b16 %v4007, %v4000
    %v4274 = vpack.c.b16 %v4008, %v4001
    %v4275 = vpack.c.b16 %v4009, %v4002
    %v4276 = vpack.c.b16 %v4010, %v4003
    %v4277 = vpack.c.b16 %v4011, %v4004
    %v4278 = vpack.c.b16 %v4012, %v4005
    %v4279 = vpack.c.b16 %v4013, %v4006
    %v4280 = vpack.c.b16 %v4021, %v4014
    %v4281 = vpack.c.b16 %v4022, %v4015
    %v4282 = vpack.c.b16 %v4023, %v4016
    %v4283 = vpack.c.b16 %v4024, %v4017
    %v4284 = vpack.c.b16 %v4025, %v4018
    %v4285 = vpack.c.b16 %v4026, %v4019
    %v4286 = vpack.c.b16 %v4027, %v4020
    %v4287 = vpack.c.b16 %v4035, %v4028
    %v4288 = vpack.c.b16 %v4036, %v4029
    %v4289 = vpack.c.b16 %v4037, %v4030
    %v4290 = vpack.c.b16 %v4038, %v4031
    %v4291 = vpack.c.b16 %v4039, %v4032
    %v4292 = vpack.c.b16 %v4040, %v4033
    %v4293 = vpack.c.b16 %v4041, %v4034
    %v4294 = vpack.c.b16 %v4049, %v4042
    %v4295 = vpack.c.b16 %v4050, %v4043
    %v4296 = vpack.c.b16 %v4051, %v4044
    %v4297 = vpack.c.b16 %v4052, %v4045
    %v4298 = vpack.c.b16 %v4053, %v4046
    %v4299 = vpack.c.b16 %v4054, %v4047
    %v4300 = vpack.c.b16 %v4055, %v4048
    %v4301 = vpack.c.b16 %v4063, %v4056
    %v4302 = vpack.c.b16 %v4064, %v4057
    %v4303 = vpack.c.b16 %v4065, %v4058
    %v4304 = vpack.c.b16 %v4066, %v4059
    %v4305 = vpack.c.b16 %v4067, %v4060
    %v4306 = vpack.c.b16 %v4068, %v4061
    %v4307 = vpack.c.b16 %v4069, %v4062
    %v4308 = vpack.c.b16 %v4077, %v4070
    %v4309 = vpack.c.b16 %v4078, %v4071
    %v4310 = vpack.c.b16 %v4079, %v4072
    %v4311 = vpack.c.b16 %v4080, %v4073
    %v4312 = vpack.c.b16 %v4081, %v4074
    %v4313 = vpack.c.b16 %v4082, %v4075
    %v4314 = vpack.c.b16 %v4083, %v4076
    %v4315 = vpack.c.b16 %v4091, %v4084
    %v4316 = vpack.c.b16 %v4092, %v4085
    %v4317 = vpack.c.b16 %v4093, %v4086
    %v4318 = vpack.c.b16 %v4094, %v4087
    %v4319 = vpack.c.b16 %v4095, %v4088
    %v4320 = vpack.c.b16 %v4096, %v4089
    %v4321 = vpack.c.b16 %v4097, %v4090
    %4546 = vmatpush.bf16.msra.mxu0 %v4147
    %4547 = vmatpush.bf16.msra.mxu0 %v4140
    %4548 = vmatpush.bf16.msra.mxu0 %v4133
    %4549 = vmatpush.bf16.msra.mxu0 %v4126
    %4550 = vmatpush.bf16.msra.mxu0 %v4119
    %4551 = vmatpush.bf16.msra.mxu0 %v4112
    %4552 = vmatpush.bf16.msra.mxu0 %v4105
    %4553 = vmatpush.bf16.msra.mxu0 %v4098
    %4554 = vmatmul.bf16.gmra.mxu0 %v3118
    %v4555 = vpop.f32.mrf.mxu0
    %v4556 = vadd.f32 %v3380, %v4555
    %v4557 = vpop.f32.mrf.mxu0
    %4558 = vdwg.mxu0
    %4559 = vmatpush.bf16.msra.mxu0 %v4203
    %4560 = vmatpush.bf16.msra.mxu0 %v4196
    %4561 = vmatpush.bf16.msra.mxu0 %v4189
    %4562 = vmatpush.bf16.msra.mxu0 %v4182
    %4563 = vmatpush.bf16.msra.mxu0 %v4175
    %4564 = vmatpush.bf16.msra.mxu0 %v4168
    %4565 = vmatpush.bf16.msra.mxu0 %v4161
    %4566 = vmatpush.bf16.msra.mxu0 %v4154
    %4567 = vmatmul.bf16.gmra.mxu0 %v3119
    %v4568 = vpop.f32.mrf.mxu0
    %v4569 = vadd.f32 %v4556, %v4568
    %v4570 = vpop.f32.mrf.mxu0
    %4571 = vdwg.mxu0
    %4572 = vmatpush.bf16.msra.mxu0 %v4259
    %4573 = vmatpush.bf16.msra.mxu0 %v4252
    %4574 = vmatpush.bf16.msra.mxu0 %v4245
    %4575 = vmatpush.bf16.msra.mxu0 %v4238
    %4576 = vmatpush.bf16.msra.mxu0 %v4231
    %4577 = vmatpush.bf16.msra.mxu0 %v4224
    %4578 = vmatpush.bf16.msra.mxu0 %v4217
    %4579 = vmatpush.bf16.msra.mxu0 %v4210
    %4580 = vmatmul.bf16.gmra.mxu0 %v3120
    %v4581 = vpop.f32.mrf.mxu0
    %v4582 = vadd.f32 %v4569, %v4581
    %v4583 = vpop.f32.mrf.mxu0
    %4584 = vdwg.mxu0
    %4585 = vmatpush.bf16.msra.mxu0 %v4315
    %4586 = vmatpush.bf16.msra.mxu0 %v4308
    %4587 = vmatpush.bf16.msra.mxu0 %v4301
    %4588 = vmatpush.bf16.msra.mxu0 %v4294
    %4589 = vmatpush.bf16.msra.mxu0 %v4287
    %4590 = vmatpush.bf16.msra.mxu0 %v4280
    %4591 = vmatpush.bf16.msra.mxu0 %v4273
    %4592 = vmatpush.bf16.msra.mxu0 %v4266
    %4593 = vmatmul.bf16.gmra.mxu0 %v3121
    %v4594 = vpop.f32.mrf.mxu0
    %v4595 = vadd.f32 %v4582, %v4594
    %v4596 = vpop.f32.mrf.mxu0
    %4597 = vdwg.mxu0
    %4598 = vmatpush.bf16.msra.mxu0 %v4148
    %4599 = vmatpush.bf16.msra.mxu0 %v4141
    %4600 = vmatpush.bf16.msra.mxu0 %v4134
    %4601 = vmatpush.bf16.msra.mxu0 %v4127
    %4602 = vmatpush.bf16.msra.mxu0 %v4120
    %4603 = vmatpush.bf16.msra.mxu0 %v4113
    %4604 = vmatpush.bf16.msra.mxu0 %v4106
    %4605 = vmatpush.bf16.msra.mxu0 %v4099
    %4606 = vmatmul.bf16.gmra.mxu0 %v3118
    %v4607 = vpop.f32.mrf.mxu0
    %v4608 = vadd.f32 %v3381, %v4607
    %v4609 = vpop.f32.mrf.mxu0
    %4610 = vdwg.mxu0
    %4611 = vmatpush.bf16.msra.mxu0 %v4204
    %4612 = vmatpush.bf16.msra.mxu0 %v4197
    %4613 = vmatpush.bf16.msra.mxu0 %v4190
    %4614 = vmatpush.bf16.msra.mxu0 %v4183
    %4615 = vmatpush.bf16.msra.mxu0 %v4176
    %4616 = vmatpush.bf16.msra.mxu0 %v4169
    %4617 = vmatpush.bf16.msra.mxu0 %v4162
    %4618 = vmatpush.bf16.msra.mxu0 %v4155
    %4619 = vmatmul.bf16.gmra.mxu0 %v3119
    %v4620 = vpop.f32.mrf.mxu0
    %v4621 = vadd.f32 %v4608, %v4620
    %v4622 = vpop.f32.mrf.mxu0
    %4623 = vdwg.mxu0
    %4624 = vmatpush.bf16.msra.mxu0 %v4260
    %4625 = vmatpush.bf16.msra.mxu0 %v4253
    %4626 = vmatpush.bf16.msra.mxu0 %v4246
    %4627 = vmatpush.bf16.msra.mxu0 %v4239
    %4628 = vmatpush.bf16.msra.mxu0 %v4232
    %4629 = vmatpush.bf16.msra.mxu0 %v4225
    %4630 = vmatpush.bf16.msra.mxu0 %v4218
    %4631 = vmatpush.bf16.msra.mxu0 %v4211
    %4632 = vmatmul.bf16.gmra.mxu0 %v3120
    %v4633 = vpop.f32.mrf.mxu0
    %v4634 = vadd.f32 %v4621, %v4633
    %v4635 = vpop.f32.mrf.mxu0
    %4636 = vdwg.mxu0
    %4637 = vmatpush.bf16.msra.mxu0 %v4316
    %4638 = vmatpush.bf16.msra.mxu0 %v4309
    %4639 = vmatpush.bf16.msra.mxu0 %v4302
    %4640 = vmatpush.bf16.msra.mxu0 %v4295
    %4641 = vmatpush.bf16.msra.mxu0 %v4288
    %4642 = vmatpush.bf16.msra.mxu0 %v4281
    %4643 = vmatpush.bf16.msra.mxu0 %v4274
    %4644 = vmatpush.bf16.msra.mxu0 %v4267
    %4645 = vmatmul.bf16.gmra.mxu0 %v3121
    %v4646 = vpop.f32.mrf.mxu0
    %v4647 = vadd.f32 %v4634, %v4646
    %v4648 = vpop.f32.mrf.mxu0
    %4649 = vdwg.mxu0
    %4650 = vmatpush.bf16.msra.mxu0 %v4149
    %4651 = vmatpush.bf16.msra.mxu0 %v4142
    %4652 = vmatpush.bf16.msra.mxu0 %v4135
    %4653 = vmatpush.bf16.msra.mxu0 %v4128
    %4654 = vmatpush.bf16.msra.mxu0 %v4121
    %4655 = vmatpush.bf16.msra.mxu0 %v4114
    %4656 = vmatpush.bf16.msra.mxu0 %v4107
    %4657 = vmatpush.bf16.msra.mxu0 %v4100
    %4658 = vmatmul.bf16.gmra.mxu0 %v3118
    %v4659 = vpop.f32.mrf.mxu0
    %v4660 = vadd.f32 %v3382, %v4659
    %v4661 = vpop.f32.mrf.mxu0
    %4662 = vdwg.mxu0
    %4663 = vmatpush.bf16.msra.mxu0 %v4205
    %4664 = vmatpush.bf16.msra.mxu0 %v4198
    %4665 = vmatpush.bf16.msra.mxu0 %v4191
    %4666 = vmatpush.bf16.msra.mxu0 %v4184
    %4667 = vmatpush.bf16.msra.mxu0 %v4177
    %4668 = vmatpush.bf16.msra.mxu0 %v4170
    %4669 = vmatpush.bf16.msra.mxu0 %v4163
    %4670 = vmatpush.bf16.msra.mxu0 %v4156
    %4671 = vmatmul.bf16.gmra.mxu0 %v3119
    %v4672 = vpop.f32.mrf.mxu0
    %v4673 = vadd.f32 %v4660, %v4672
    %v4674 = vpop.f32.mrf.mxu0
    %4675 = vdwg.mxu0
    %4676 = vmatpush.bf16.msra.mxu0 %v4261
    %4677 = vmatpush.bf16.msra.mxu0 %v4254
    %4678 = vmatpush.bf16.msra.mxu0 %v4247
    %4679 = vmatpush.bf16.msra.mxu0 %v4240
    %4680 = vmatpush.bf16.msra.mxu0 %v4233
    %4681 = vmatpush.bf16.msra.mxu0 %v4226
    %4682 = vmatpush.bf16.msra.mxu0 %v4219
    %4683 = vmatpush.bf16.msra.mxu0 %v4212
    %4684 = vmatmul.bf16.gmra.mxu0 %v3120
    %v4685 = vpop.f32.mrf.mxu0
    %v4686 = vadd.f32 %v4673, %v4685
    %v4687 = vpop.f32.mrf.mxu0
    %4688 = vdwg.mxu0
    %4689 = vmatpush.bf16.msra.mxu0 %v4317
    %4690 = vmatpush.bf16.msra.mxu0 %v4310
    %4691 = vmatpush.bf16.msra.mxu0 %v4303
    %4692 = vmatpush.bf16.msra.mxu0 %v4296
    %4693 = vmatpush.bf16.msra.mxu0 %v4289
    %4694 = vmatpush.bf16.msra.mxu0 %v4282
    %4695 = vmatpush.bf16.msra.mxu0 %v4275
    %4696 = vmatpush.bf16.msra.mxu0 %v4268
    %4697 = vmatmul.bf16.gmra.mxu0 %v3121
    %v4698 = vpop.f32.mrf.mxu0
    %v4699 = vadd.f32 %v4686, %v4698
    %v4700 = vpop.f32.mrf.mxu0
    %4701 = vdwg.mxu0
    %4702 = vmatpush.bf16.msra.mxu0 %v4150
    %4703 = vmatpush.bf16.msra.mxu0 %v4143
    %4704 = vmatpush.bf16.msra.mxu0 %v4136
    %4705 = vmatpush.bf16.msra.mxu0 %v4129
    %4706 = vmatpush.bf16.msra.mxu0 %v4122
    %4707 = vmatpush.bf16.msra.mxu0 %v4115
    %4708 = vmatpush.bf16.msra.mxu0 %v4108
    %4709 = vmatpush.bf16.msra.mxu0 %v4101
    %4710 = vmatmul.bf16.gmra.mxu0 %v3118
    %v4711 = vpop.f32.mrf.mxu0
    %v4712 = vadd.f32 %v3383, %v4711
    %v4713 = vpop.f32.mrf.mxu0
    %4714 = vdwg.mxu0
    %4715 = vmatpush.bf16.msra.mxu0 %v4206
    %4716 = vmatpush.bf16.msra.mxu0 %v4199
    %4717 = vmatpush.bf16.msra.mxu0 %v4192
    %4718 = vmatpush.bf16.msra.mxu0 %v4185
    %4719 = vmatpush.bf16.msra.mxu0 %v4178
    %4720 = vmatpush.bf16.msra.mxu0 %v4171
    %4721 = vmatpush.bf16.msra.mxu0 %v4164
    %4722 = vmatpush.bf16.msra.mxu0 %v4157
    %4723 = vmatmul.bf16.gmra.mxu0 %v3119
    %v4724 = vpop.f32.mrf.mxu0
    %v4725 = vadd.f32 %v4712, %v4724
    %v4726 = vpop.f32.mrf.mxu0
    %4727 = vdwg.mxu0
    %4728 = vmatpush.bf16.msra.mxu0 %v4262
    %4729 = vmatpush.bf16.msra.mxu0 %v4255
    %4730 = vmatpush.bf16.msra.mxu0 %v4248
    %4731 = vmatpush.bf16.msra.mxu0 %v4241
    %4732 = vmatpush.bf16.msra.mxu0 %v4234
    %4733 = vmatpush.bf16.msra.mxu0 %v4227
    %4734 = vmatpush.bf16.msra.mxu0 %v4220
    %4735 = vmatpush.bf16.msra.mxu0 %v4213
    %4736 = vmatmul.bf16.gmra.mxu0 %v3120
    %v4737 = vpop.f32.mrf.mxu0
    %v4738 = vadd.f32 %v4725, %v4737
    %v4739 = vpop.f32.mrf.mxu0
    %4740 = vdwg.mxu0
    %4741 = vmatpush.bf16.msra.mxu0 %v4318
    %4742 = vmatpush.bf16.msra.mxu0 %v4311
    %4743 = vmatpush.bf16.msra.mxu0 %v4304
    %4744 = vmatpush.bf16.msra.mxu0 %v4297
    %4745 = vmatpush.bf16.msra.mxu0 %v4290
    %4746 = vmatpush.bf16.msra.mxu0 %v4283
    %4747 = vmatpush.bf16.msra.mxu0 %v4276
    %4748 = vmatpush.bf16.msra.mxu0 %v4269
    %4749 = vmatmul.bf16.gmra.mxu0 %v3121
    %v4750 = vpop.f32.mrf.mxu0
    %v4751 = vadd.f32 %v4738, %v4750
    %v4752 = vpop.f32.mrf.mxu0
    %4753 = vdwg.mxu0
    %4754 = vmatpush.bf16.msra.mxu0 %v4151
    %4755 = vmatpush.bf16.msra.mxu0 %v4144
    %4756 = vmatpush.bf16.msra.mxu0 %v4137
    %4757 = vmatpush.bf16.msra.mxu0 %v4130
    %4758 = vmatpush.bf16.msra.mxu0 %v4123
    %4759 = vmatpush.bf16.msra.mxu0 %v4116
    %4760 = vmatpush.bf16.msra.mxu0 %v4109
    %4761 = vmatpush.bf16.msra.mxu0 %v4102
    %4762 = vmatmul.bf16.gmra.mxu0 %v3118
    %v4763 = vpop.f32.mrf.mxu0
    %v4764 = vadd.f32 %v3384, %v4763
    %v4765 = vpop.f32.mrf.mxu0
    %4766 = vdwg.mxu0
    %4767 = vmatpush.bf16.msra.mxu0 %v4207
    %4768 = vmatpush.bf16.msra.mxu0 %v4200
    %4769 = vmatpush.bf16.msra.mxu0 %v4193
    %4770 = vmatpush.bf16.msra.mxu0 %v4186
    %4771 = vmatpush.bf16.msra.mxu0 %v4179
    %4772 = vmatpush.bf16.msra.mxu0 %v4172
    %4773 = vmatpush.bf16.msra.mxu0 %v4165
    %4774 = vmatpush.bf16.msra.mxu0 %v4158
    %4775 = vmatmul.bf16.gmra.mxu0 %v3119
    %v4776 = vpop.f32.mrf.mxu0
    %v4777 = vadd.f32 %v4764, %v4776
    %v4778 = vpop.f32.mrf.mxu0
    %4779 = vdwg.mxu0
    %4780 = vmatpush.bf16.msra.mxu0 %v4263
    %4781 = vmatpush.bf16.msra.mxu0 %v4256
    %4782 = vmatpush.bf16.msra.mxu0 %v4249
    %4783 = vmatpush.bf16.msra.mxu0 %v4242
    %4784 = vmatpush.bf16.msra.mxu0 %v4235
    %4785 = vmatpush.bf16.msra.mxu0 %v4228
    %4786 = vmatpush.bf16.msra.mxu0 %v4221
    %4787 = vmatpush.bf16.msra.mxu0 %v4214
    %4788 = vmatmul.bf16.gmra.mxu0 %v3120
    %v4789 = vpop.f32.mrf.mxu0
    %v4790 = vadd.f32 %v4777, %v4789
    %v4791 = vpop.f32.mrf.mxu0
    %4792 = vdwg.mxu0
    %4793 = vmatpush.bf16.msra.mxu0 %v4319
    %4794 = vmatpush.bf16.msra.mxu0 %v4312
    %4795 = vmatpush.bf16.msra.mxu0 %v4305
    %4796 = vmatpush.bf16.msra.mxu0 %v4298
    %4797 = vmatpush.bf16.msra.mxu0 %v4291
    %4798 = vmatpush.bf16.msra.mxu0 %v4284
    %4799 = vmatpush.bf16.msra.mxu0 %v4277
    %4800 = vmatpush.bf16.msra.mxu0 %v4270
    %4801 = vmatmul.bf16.gmra.mxu0 %v3121
    %v4802 = vpop.f32.mrf.mxu0
    %v4803 = vadd.f32 %v4790, %v4802
    %v4804 = vpop.f32.mrf.mxu0
    %4805 = vdwg.mxu0
    %4806 = vmatpush.bf16.msra.mxu0 %v4152
    %4807 = vmatpush.bf16.msra.mxu0 %v4145
    %4808 = vmatpush.bf16.msra.mxu0 %v4138
    %4809 = vmatpush.bf16.msra.mxu0 %v4131
    %4810 = vmatpush.bf16.msra.mxu0 %v4124
    %4811 = vmatpush.bf16.msra.mxu0 %v4117
    %4812 = vmatpush.bf16.msra.mxu0 %v4110
    %4813 = vmatpush.bf16.msra.mxu0 %v4103
    %4814 = vmatmul.bf16.gmra.mxu0 %v3118
    %v4815 = vpop.f32.mrf.mxu0
    %v4816 = vadd.f32 %v3385, %v4815
    %v4817 = vpop.f32.mrf.mxu0
    %4818 = vdwg.mxu0
    %4819 = vmatpush.bf16.msra.mxu0 %v4208
    %4820 = vmatpush.bf16.msra.mxu0 %v4201
    %4821 = vmatpush.bf16.msra.mxu0 %v4194
    %4822 = vmatpush.bf16.msra.mxu0 %v4187
    %4823 = vmatpush.bf16.msra.mxu0 %v4180
    %4824 = vmatpush.bf16.msra.mxu0 %v4173
    %4825 = vmatpush.bf16.msra.mxu0 %v4166
    %4826 = vmatpush.bf16.msra.mxu0 %v4159
    %4827 = vmatmul.bf16.gmra.mxu0 %v3119
    %v4828 = vpop.f32.mrf.mxu0
    %v4829 = vadd.f32 %v4816, %v4828
    %v4830 = vpop.f32.mrf.mxu0
    %4831 = vdwg.mxu0
    %4832 = vmatpush.bf16.msra.mxu0 %v4264
    %4833 = vmatpush.bf16.msra.mxu0 %v4257
    %4834 = vmatpush.bf16.msra.mxu0 %v4250
    %4835 = vmatpush.bf16.msra.mxu0 %v4243
    %4836 = vmatpush.bf16.msra.mxu0 %v4236
    %4837 = vmatpush.bf16.msra.mxu0 %v4229
    %4838 = vmatpush.bf16.msra.mxu0 %v4222
    %4839 = vmatpush.bf16.msra.mxu0 %v4215
    %4840 = vmatmul.bf16.gmra.mxu0 %v3120
    %v4841 = vpop.f32.mrf.mxu0
    %v4842 = vadd.f32 %v4829, %v4841
    %v4843 = vpop.f32.mrf.mxu0
    %4844 = vdwg.mxu0
    %4845 = vmatpush.bf16.msra.mxu0 %v4320
    %4846 = vmatpush.bf16.msra.mxu0 %v4313
    %4847 = vmatpush.bf16.msra.mxu0 %v4306
    %4848 = vmatpush.bf16.msra.mxu0 %v4299
    %4849 = vmatpush.bf16.msra.mxu0 %v4292
    %4850 = vmatpush.bf16.msra.mxu0 %v4285
    %4851 = vmatpush.bf16.msra.mxu0 %v4278
    %4852 = vmatpush.bf16.msra.mxu0 %v4271
    %4853 = vmatmul.bf16.gmra.mxu0 %v3121
    %v4854 = vpop.f32.mrf.mxu0
    %v4855 = vadd.f32 %v4842, %v4854
    %v4856 = vpop.f32.mrf.mxu0
    %4857 = vdwg.mxu0
    %4858 = vmatpush.bf16.msra.mxu0 %v4153
    %4859 = vmatpush.bf16.msra.mxu0 %v4146
    %4860 = vmatpush.bf16.msra.mxu0 %v4139
    %4861 = vmatpush.bf16.msra.mxu0 %v4132
    %4862 = vmatpush.bf16.msra.mxu0 %v4125
    %4863 = vmatpush.bf16.msra.mxu0 %v4118
    %4864 = vmatpush.bf16.msra.mxu0 %v4111
    %4865 = vmatpush.bf16.msra.mxu0 %v4104
    %4866 = vmatmul.bf16.gmra.mxu0 %v3118
    %v4867 = vpop.f32.mrf.mxu0
    %v4868 = vadd.f32 %v3386, %v4867
    %v4869 = vpop.f32.mrf.mxu0
    %4870 = vdwg.mxu0
    %4871 = vmatpush.bf16.msra.mxu0 %v4209
    %4872 = vmatpush.bf16.msra.mxu0 %v4202
    %4873 = vmatpush.bf16.msra.mxu0 %v4195
    %4874 = vmatpush.bf16.msra.mxu0 %v4188
    %4875 = vmatpush.bf16.msra.mxu0 %v4181
    %4876 = vmatpush.bf16.msra.mxu0 %v4174
    %4877 = vmatpush.bf16.msra.mxu0 %v4167
    %4878 = vmatpush.bf16.msra.mxu0 %v4160
    %4879 = vmatmul.bf16.gmra.mxu0 %v3119
    %v4880 = vpop.f32.mrf.mxu0
    %v4881 = vadd.f32 %v4868, %v4880
    %v4882 = vpop.f32.mrf.mxu0
    %4883 = vdwg.mxu0
    %4884 = vmatpush.bf16.msra.mxu0 %v4265
    %4885 = vmatpush.bf16.msra.mxu0 %v4258
    %4886 = vmatpush.bf16.msra.mxu0 %v4251
    %4887 = vmatpush.bf16.msra.mxu0 %v4244
    %4888 = vmatpush.bf16.msra.mxu0 %v4237
    %4889 = vmatpush.bf16.msra.mxu0 %v4230
    %4890 = vmatpush.bf16.msra.mxu0 %v4223
    %4891 = vmatpush.bf16.msra.mxu0 %v4216
    %4892 = vmatmul.bf16.gmra.mxu0 %v3120
    %v4893 = vpop.f32.mrf.mxu0
    %v4894 = vadd.f32 %v4881, %v4893
    %v4895 = vpop.f32.mrf.mxu0
    %4896 = vdwg.mxu0
    %4897 = vmatpush.bf16.msra.mxu0 %v4321
    %4898 = vmatpush.bf16.msra.mxu0 %v4314
    %4899 = vmatpush.bf16.msra.mxu0 %v4307
    %4900 = vmatpush.bf16.msra.mxu0 %v4300
    %4901 = vmatpush.bf16.msra.mxu0 %v4293
    %4902 = vmatpush.bf16.msra.mxu0 %v4286
    %4903 = vmatpush.bf16.msra.mxu0 %v4279
    %4904 = vmatpush.bf16.msra.mxu0 %v4272
    %4905 = vmatmul.bf16.gmra.mxu0 %v3121
    %v4906 = vpop.f32.mrf.mxu0
    %v4907 = vadd.f32 %v4894, %v4906
    %v4908 = vpop.f32.mrf.mxu0
    %4909 = vdwg.mxu0
    %v4917 = vrot.slane %v4647, 6
    %v4918 = vrot.slane %v4699, 4
    %v4919 = vrot.slane %v4751, 2
    %v4920 = vrot.slane %v4855, 6
    %v4921 = vrot.slane %v4907, 4
    %vm4922 = vcmask 1041408
    %v4923 = vsel %vm4922, %v4595, %v4917
    %vm4924 = vcmask 1045508
    %v4925 = vsel %vm4924, %v4918, %v4919
    %vm4926 = vcmask 1043456
    %v4927 = vsel %vm4926, %v4923, %v4925
    %v4928 = vsel %vm4922, %v4803, %v4920
    %v4929 = vsel %vm4926, %v4928, %v4921
    %4932 = vst [vmem:[#allocation6] sm:$0xff] %v4927
    %vm4933 = vcmask 1043458
    %vm4934 = vmor %vm4933, %vm4922
    %vm4935 = vcmask 128004
    %vm4936 = vmor %vm4935, %vm4934
    %4937 = vst.msk [vmem:[#allocation6 + $0x8] sm:$0x3f] %vm4936, %v4929
    %v4938 = vxor.u32 %v4595, 2147483648
    %v4939 = vxor.u32 %v4647, 2147483648
    %v4940 = vxor.u32 %v4699, 2147483648
    %v4941 = vxor.u32 %v4751, 2147483648
    %v4942 = vxor.u32 %v4803, 2147483648
    %v4943 = vxor.u32 %v4855, 2147483648
    %v4944 = vxor.u32 %v4907, 2147483648
    %v4945 = vmul.f32 %v4938, 1.442695
    %v4946 = vpow.pop %v4945
    %v4947 = vmul.f32 %v4939, 1.442695
    %v4948 = vpow.pop %v4947
    %v4949 = vmul.f32 %v4940, 1.442695
    %v4950 = vpow.pop %v4949
    %v4951 = vmul.f32 %v4941, 1.442695
    %v4952 = vpow.pop %v4951
    %v4953 = vmul.f32 %v4942, 1.442695
    %v4954 = vpow.pop %v4953
    %v4955 = vmul.f32 %v4943, 1.442695
    %v4956 = vpow.pop %v4955
    %v4957 = vmul.f32 %v4944, 1.442695
    %v4958 = vpow.pop %v4957
    %v4959 = vadd.f32 %v4946, 1.0
    %v4960 = vadd.f32 %v4948, 1.0
    %v4961 = vadd.f32 %v4950, 1.0
    %v4962 = vadd.f32 %v4952, 1.0
    %v4963 = vadd.f32 %v4954, 1.0
    %v4964 = vadd.f32 %v4956, 1.0
    %v4965 = vadd.f32 %v4958, 1.0
    %v4966 = vrcp.pop %v4959
    %v4967 = vmul.f32 %v4959, %v4966
    %v4968 = vsub.f32 1.0, %v4967
    %v4969 = vmul.f32 %v4966, %v4968
    %v4970 = vadd.f32 %v4966, %v4969
    %vm4971 = vweird.f32 %v4959
    %vm4972 = vweird.f32 %v4966
    %vm4973 = vmor %vm4971, %vm4972
    %v4974 = vsel %vm4973, %v4966, %v4970
    %v4975 = vand.u32 2147483647, %v4959
    %vm4976 = vcmp.eq.f32.partialorder %v4975, 8.507059e+37
    %v4977 = vand.u32 %v4959, 2147483648
    %v4978 = vor.u32 1.1754944e-38, %v4977
    %v4979 = vsel %vm4976, %v4978, %v4974
    %v4980 = vmul.f32 1.0, %v4979
    %v4981 = vrcp.pop %v4960
    %v4982 = vmul.f32 %v4960, %v4981
    %v4983 = vsub.f32 1.0, %v4982
    %v4984 = vmul.f32 %v4981, %v4983
    %v4985 = vadd.f32 %v4981, %v4984
    %vm4986 = vweird.f32 %v4960
    %vm4987 = vweird.f32 %v4981
    %vm4988 = vmor %vm4986, %vm4987
    %v4989 = vsel %vm4988, %v4981, %v4985
    %v4990 = vand.u32 2147483647, %v4960
    %vm4991 = vcmp.eq.f32.partialorder %v4990, 8.507059e+37
    %v4992 = vand.u32 %v4960, 2147483648
    %v4993 = vor.u32 1.1754944e-38, %v4992
    %v4994 = vsel %vm4991, %v4993, %v4989
    %v4995 = vmul.f32 1.0, %v4994
    %v4996 = vrcp.pop %v4961
    %v4997 = vmul.f32 %v4961, %v4996
    %v4998 = vsub.f32 1.0, %v4997
    %v4999 = vmul.f32 %v4996, %v4998
    %v5000 = vadd.f32 %v4996, %v4999
    %vm5001 = vweird.f32 %v4961
    %vm5002 = vweird.f32 %v4996
    %vm5003 = vmor %vm5001, %vm5002
    %v5004 = vsel %vm5003, %v4996, %v5000
    %v5005 = vand.u32 2147483647, %v4961
    %vm5006 = vcmp.eq.f32.partialorder %v5005, 8.507059e+37
    %v5007 = vand.u32 %v4961, 2147483648
    %v5008 = vor.u32 1.1754944e-38, %v5007
    %v5009 = vsel %vm5006, %v5008, %v5004
    %v5010 = vmul.f32 1.0, %v5009
    %v5011 = vrcp.pop %v4962
    %v5012 = vmul.f32 %v4962, %v5011
    %v5013 = vsub.f32 1.0, %v5012
    %v5014 = vmul.f32 %v5011, %v5013
    %v5015 = vadd.f32 %v5011, %v5014
    %vm5016 = vweird.f32 %v4962
    %vm5017 = vweird.f32 %v5011
    %vm5018 = vmor %vm5016, %vm5017
    %v5019 = vsel %vm5018, %v5011, %v5015
    %v5020 = vand.u32 2147483647, %v4962
    %vm5021 = vcmp.eq.f32.partialorder %v5020, 8.507059e+37
    %v5022 = vand.u32 %v4962, 2147483648
    %v5023 = vor.u32 1.1754944e-38, %v5022
    %v5024 = vsel %vm5021, %v5023, %v5019
    %v5025 = vmul.f32 1.0, %v5024
    %v5026 = vrcp.pop %v4963
    %v5027 = vmul.f32 %v4963, %v5026
    %v5028 = vsub.f32 1.0, %v5027
    %v5029 = vmul.f32 %v5026, %v5028
    %v5030 = vadd.f32 %v5026, %v5029
    %vm5031 = vweird.f32 %v4963
    %vm5032 = vweird.f32 %v5026
    %vm5033 = vmor %vm5031, %vm5032
    %v5034 = vsel %vm5033, %v5026, %v5030
    %v5035 = vand.u32 2147483647, %v4963
    %vm5036 = vcmp.eq.f32.partialorder %v5035, 8.507059e+37
    %v5037 = vand.u32 %v4963, 2147483648
    %v5038 = vor.u32 1.1754944e-38, %v5037
    %v5039 = vsel %vm5036, %v5038, %v5034
    %v5040 = vmul.f32 1.0, %v5039
    %v5041 = vrcp.pop %v4964
    %v5042 = vmul.f32 %v4964, %v5041
    %v5043 = vsub.f32 1.0, %v5042
    %v5044 = vmul.f32 %v5041, %v5043
    %v5045 = vadd.f32 %v5041, %v5044
    %vm5046 = vweird.f32 %v4964
    %vm5047 = vweird.f32 %v5041
    %vm5048 = vmor %vm5046, %vm5047
    %v5049 = vsel %vm5048, %v5041, %v5045
    %v5050 = vand.u32 2147483647, %v4964
    %vm5051 = vcmp.eq.f32.partialorder %v5050, 8.507059e+37
    %v5052 = vand.u32 %v4964, 2147483648
    %v5053 = vor.u32 1.1754944e-38, %v5052
    %v5054 = vsel %vm5051, %v5053, %v5049
    %v5055 = vmul.f32 1.0, %v5054
    %v5056 = vrcp.pop %v4965
    %v5057 = vmul.f32 %v4965, %v5056
    %v5058 = vsub.f32 1.0, %v5057
    %v5059 = vmul.f32 %v5056, %v5058
    %v5060 = vadd.f32 %v5056, %v5059
    %vm5061 = vweird.f32 %v4965
    %vm5062 = vweird.f32 %v5056
    %vm5063 = vmor %vm5061, %vm5062
    %v5064 = vsel %vm5063, %v5056, %v5060
    %v5065 = vand.u32 2147483647, %v4965
    %vm5066 = vcmp.eq.f32.partialorder %v5065, 8.507059e+37
    %v5067 = vand.u32 %v4965, 2147483648
    %v5068 = vor.u32 1.1754944e-38, %v5067
    %v5069 = vsel %vm5066, %v5068, %v5064
    %v5070 = vmul.f32 1.0, %v5069
    %v5078 = vrot.slane %v4995, 6
    %v5079 = vrot.slane %v5010, 4
    %v5080 = vrot.slane %v5025, 2
    %v5081 = vrot.slane %v5055, 6
    %v5082 = vrot.slane %v5070, 4
    %v5083 = vsel %vm4922, %v4980, %v5078
    %v5084 = vsel %vm4924, %v5079, %v5080
    %v5085 = vsel %vm4926, %v5083, %v5084
    %v5086 = vsel %vm4922, %v5040, %v5081
    %v5087 = vsel %vm4926, %v5086, %v5082
    %5090 = vst [vmem:[#allocation4] sm:$0xff] %v5085
    %5091 = vst.msk [vmem:[#allocation4 + $0x8] sm:$0x3f] %vm4936, %v5087
    // Predicated region
    $region58: #{tpu_custom_call.1} parent=1 // pred_check
      _
    $region59: #{tpu_custom_call.1} parent=1 // pred_check_branch
      %5093 = sbr.rel (0) target = $region61
    $region60: #{tpu_custom_call.1} parent=1 // pred_region
      %5095 = vsyncadd [#allocation3], 0
      %s5097 = sshll.u32 [#allocation2], 4
      %s5098 = int_to_ptr.vmem [resolvable:$true] %s5097
      %s5099 = sshll.u32 %s14, 4
      %s5100 = int_to_ptr.hbm [resolvable:$true] %s5099
      %5102 = dma.vmem_to_hbm [thread:$0]  %s5098, 32, %s5100, [#allocation3]
    $region61: #{tpu_custom_call.1} parent=1 // pred_fallthru
      _
    // Predicated region
    $region62: #{tpu_custom_call.1} parent=1 // pred_check
      _
    $region63: #{tpu_custom_call.1} parent=1 // pred_check_branch
      %5104 = sbr.rel (0) target = $region65
    $region64: #{tpu_custom_call.1} parent=1 // pred_region
      %5106 = vsyncadd [#allocation5], 0
      %s5108 = sshll.u32 [#allocation4], 4
      %s5109 = int_to_ptr.vmem [resolvable:$true] %s5108
      %s5110 = sshll.u32 %s15, 4
      %s5111 = int_to_ptr.hbm [resolvable:$true] %s5110
      %5113 = dma.vmem_to_hbm [thread:$0]  %s5109, 224, %s5111, [#allocation5]
    $region65: #{tpu_custom_call.1} parent=1 // pred_fallthru
      _
    // Predicated region
    $region66: #{tpu_custom_call.1} parent=1 // pred_check
      _
    $region67: #{tpu_custom_call.1} parent=1 // pred_check_branch
      %5115 = sbr.rel (0) target = $region69
    $region68: #{tpu_custom_call.1} parent=1 // pred_region
      %5117 = vsyncadd [#allocation5], 0
      %s5119 = sshll.u32 [#allocation6], 4
      %s5120 = int_to_ptr.vmem [resolvable:$true] %s5119
      %s5121 = sshll.u32 %s16, 4
      %s5122 = int_to_ptr.hbm [resolvable:$true] %s5121
      %5124 = dma.vmem_to_hbm [thread:$0]  %s5120, 224, %s5122, [#allocation5]
    $region69: #{tpu_custom_call.1} parent=1 // pred_fallthru
      _
    // Predicated region
    $region70: #{tpu_custom_call.1} parent=1 // pred_check
      _
    $region71: #{tpu_custom_call.1} parent=1 // pred_check_branch
      %5126 = sbr.rel (0) target = $region73
    $region72: #{tpu_custom_call.1} parent=1 // pred_region
      %5128 = dma.done [#allocation3], 32
    $region73: #{tpu_custom_call.1} parent=1 // pred_fallthru
      _
    // Predicated region
    $region74: #{tpu_custom_call.1} parent=1 // pred_check
      _
    $region75: #{tpu_custom_call.1} parent=1 // pred_check_branch
      %5130 = sbr.rel (0) target = $region77
    $region76: #{tpu_custom_call.1} parent=1 // pred_region
      %5132 = dma.done [#allocation5], 224
    $region77: #{tpu_custom_call.1} parent=1 // pred_fallthru
      _
    // Predicated region
    $region78: #{tpu_custom_call.1} parent=1 // pred_check
      _
    $region79: #{tpu_custom_call.1} parent=1 // pred_check_branch
      %5134 = sbr.rel (0) target = $region81
    $region80: #{tpu_custom_call.1} parent=1 // pred_region
      %5136 = dma.done [#allocation5], 224
    $region81: #{tpu_custom_call.1} parent=1 // pred_fallthru
      _
    %5137 = vsyncpa [#allocation3], 1
    %5138 = vsyncpa [#allocation5], 1

</llo_original>
